<compile_context>
chip_gen: v7x
topology: tpu7x:2x2x1
jax: 0.10.0
libtpu: 0.0.40
codegen_flags: <defaults>
</compile_context>

<pallas_src>
import jax
import jax.numpy as jnp
from jax import lax
from jax.experimental import pallas as pl
from jax.experimental.pallas import tpu as pltpu
import numpy as np


def decoder_block_kernel(x_ref, w1_ref, b1_ref, w2_ref, b2_ref, z_ref,
                         xp_ref, p1_ref, yp_ref, p2_ref):
    """Fused ConvRelu(3x3) + ConvTranspose2d(k=4,s=2,p=1) + ReLU, one batch elem.

    x_ref : (1, H, W, Cin)    bf16  input tile (NHWC)
    w1_ref: (9*Cin, Cmid)     bf16  im2col conv weight, K order (kh, kw, cin)
    b1_ref: (1, Cmid)         f32
    w2_ref: (9*Cmid, 4*Cout)  bf16  packed deconv weight, K order (rh, rw, cmid),
                                    N order (parity p=ph*2+pw, cout)
    b2_ref: (1, 4*Cout)       f32
    z_ref : (1, 4*Cout, H*W)  f32   z[0, p*Cout+c, m*W+n] == out[2m+ph, 2n+pw, c]
    xp_ref: VMEM (H+2, W+2, Cin)  f32   zero-haloed input
    p1_ref: VMEM (H, W, 9*Cin)    bf16  staged conv patches (im2col slab)
    yp_ref: VMEM (H+2, W+2, Cmid) f32   zero-haloed conv1 output (never in HBM)
    p2_ref: VMEM (H, W, 9*Cmid)   bf16  staged deconv windows
    """
    H, W, Cin = x_ref.shape[1], x_ref.shape[2], x_ref.shape[3]
    Cmid = yp_ref.shape[2]
    mxu_dt = p1_ref.dtype          # bf16 (MXU operands only)
    acc_dt = jnp.float32           # all elementwise / accumulation work

    # ---- stage 0: zero ONLY the 1-px halo strips, then copy the interior ----
    # (unconditional every step: under "parallel" megacore each core owns its
    #  scratch and may start at program_id != 0, so no first-step guard.)
    xp_ref[0:1, :, :] = jnp.zeros((1, W + 2, Cin), acc_dt)
    xp_ref[H + 1:H + 2, :, :] = jnp.zeros((1, W + 2, Cin), acc_dt)
    xp_ref[1:H + 1, 0:1, :] = jnp.zeros((H, 1, Cin), acc_dt)
    xp_ref[1:H + 1, W + 1:W + 2, :] = jnp.zeros((H, 1, Cin), acc_dt)
    xp_ref[1:H + 1, 1:W + 1, :] = x_ref[0].astype(acc_dt)

    # ---- stage 1: 3x3 conv + bias + ReLU as ONE K-packed MXU matmul ---------
    for kh in range(3):
        for kw in range(3):
            t = kh * 3 + kw
            p1_ref[:, :, t * Cin:(t + 1) * Cin] = (
                xp_ref[kh:kh + H, kw:kw + W, :].astype(mxu_dt))
    patches = p1_ref[...].reshape(H * W, 9 * Cin)                  # bf16
    y = jnp.dot(patches, w1_ref[...], preferred_element_type=acc_dt)
    y = jnp.maximum(y + b1_ref[...], 0.0)                          # (H*W, Cmid) f32

    # ---- keep the conv1 result resident in VMEM with its zero halo ----------
    yp_ref[0:1, :, :] = jnp.zeros((1, W + 2, Cmid), acc_dt)
    yp_ref[H + 1:H + 2, :, :] = jnp.zeros((1, W + 2, Cmid), acc_dt)
    yp_ref[1:H + 1, 0:1, :] = jnp.zeros((H, 1, Cmid), acc_dt)
    yp_ref[1:H + 1, W + 1:W + 2, :] = jnp.zeros((H, 1, Cmid), acc_dt)
    yp_ref[1:H + 1, 1:W + 1, :] = y.reshape(H, W, Cmid)

    # ---- stage 2: ConvTranspose2d(k=4,s=2,p=1) + bias + ReLU as ONE matmul --
    # The 16 (parity, tap) pairs touch only 9 distinct shifted windows of the
    # padded conv1 output.  Stage each window once, then contract against the
    # wrapper-packed (9*Cmid, 4*Cout) weight (zeros where a parity skips a
    # window) -> all 4 output-parity planes in a single MXU pass.
    for rh in range(3):
        for rw in range(3):
            widx = rh * 3 + rw
            p2_ref[:, :, widx * Cmid:(widx + 1) * Cmid] = (
                yp_ref[rh:rh + H, rw:rw + W, :].astype(mxu_dt))
    wins = p2_ref[...].reshape(H * W, 9 * Cmid)                    # bf16
    res = jnp.dot(wins, w2_ref[...], preferred_element_type=acc_dt)
    res = jnp.maximum(res + b2_ref[...], 0.0)                      # (H*W, 4*Cout) f32

    # ---- lane-dense store: last (lane) dim of the output is H*W -------------
    z_ref[0] = res.T.astype(z_ref.dtype)                           # (4*Cout, H*W)


@jax.jit
def decoder_block_v2(x_nchw, w1, b1, w2, b2):
    """x_nchw: (B, Cin, H, W).  w1: (Cmid, Cin, 3, 3), b1: (Cmid,)
       w2: (Cmid, Cout, 4, 4) [PyTorch ConvTranspose2d layout], b2: (Cout,)
       returns: (B, Cout, 2H, 2W)"""
    B, Cin, H, W = x_nchw.shape
    Cmid = w1.shape[0]
    Cout = w2.shape[1]
    mxu_dt = jnp.bfloat16

    x = jnp.transpose(x_nchw, (0, 2, 3, 1)).astype(mxu_dt)         # NHWC, bf16

    # conv3x3 weight as a single im2col matrix (9*Cin, Cmid), K order (kh,kw,cin)
    w1p = jnp.transpose(w1, (2, 3, 1, 0)).reshape(9 * Cin, Cmid).astype(mxu_dt)
    b1p = b1.reshape(1, Cmid).astype(jnp.float32)

    # Deconv weight packed as (9*Cmid, 4*Cout): rows grouped by shifted-window
    # index widx = rh*3 + rw, cols grouped by output parity p = ph*2 + pw.
    # Sub-pixel mapping (k=4, s=2, p=1): oh = 2*ih + kh - 1, so
    #   even output index -> (kh, padded row offset rh) in {(1,1),(3,0)}
    #   odd  output index -> {(2,1),(0,2)}   (same for columns).
    taps = {0: ((1, 1), (3, 0)),
            1: ((2, 1), (0, 2))}
    w2p = jnp.zeros((9 * Cmid, 4 * Cout), jnp.float32)
    for ph in (0, 1):
        for pw in (0, 1):
            p = ph * 2 + pw
            for kh, rh in taps[ph]:
                for kw, rw in taps[pw]:
                    widx = rh * 3 + rw
                    w2p = w2p.at[widx * Cmid:(widx + 1) * Cmid,
                                 p * Cout:(p + 1) * Cout].set(w2[:, :, kh, kw])
    w2p = w2p.astype(mxu_dt)
    b2p = jnp.tile(b2, 4).reshape(1, 4 * Cout).astype(jnp.float32)

    z = pl.pallas_call(
        decoder_block_kernel,
        out_shape=jax.ShapeDtypeStruct((B, 4 * Cout, H * W), jnp.float32),
        grid=(B,),
        in_specs=[
            pl.BlockSpec((1, H, W, Cin), lambda b: (b, 0, 0, 0)),
            pl.BlockSpec((9 * Cin, Cmid), lambda b: (0, 0)),
            pl.BlockSpec((1, Cmid), lambda b: (0, 0)),
            pl.BlockSpec((9 * Cmid, 4 * Cout), lambda b: (0, 0)),
            pl.BlockSpec((1, 4 * Cout), lambda b: (0, 0)),
        ],
        out_specs=pl.BlockSpec((1, 4 * Cout, H * W), lambda b: (b, 0, 0)),
        scratch_shapes=[
            pltpu.VMEM((H + 2, W + 2, Cin), jnp.float32),    # padded input
            pltpu.VMEM((H, W, 9 * Cin), mxu_dt),             # im2col slab (conv)
            pltpu.VMEM((H + 2, W + 2, Cmid), jnp.float32),   # padded conv1 out
            pltpu.VMEM((H, W, 9 * Cmid), mxu_dt),            # window slab (deconv)
        ],
        compiler_params=pltpu.CompilerParams(
            dimension_semantics=("parallel",),
            vmem_limit_bytes=32 * 1024 * 1024),
    )(x, w1p, b1p, w2p, b2p)

    # z[b, (ph*2+pw)*Cout + c, m*W + n] -> out[b, c, 2m+ph, 2n+pw]
    out = (z.reshape(B, 2, 2, Cout, H, W)
             .transpose(0, 3, 4, 1, 5, 2)
             .reshape(B, Cout, 2 * H, 2 * W))
    return out


# ----------------------------------------------------------------------------
# Pure-JAX f32 reference (matches PyTorch semantics) for verification.
# ----------------------------------------------------------------------------
def reference(x, w1, b1, w2, b2):
    y = lax.conv_general_dilated(
        x, w1, window_strides=(1, 1), padding=((1, 1), (1, 1)),
        dimension_numbers=('NCHW', 'OIHW', 'NCHW'))
    y = jax.nn.relu(y + b1[None, :, None, None])
    # ConvTranspose2d(k=4,s=2,p=1) == lhs-dilated conv with flipped kernel,
    # padding k-1-p = 2 on each side.
    w2f = jnp.flip(w2, axis=(2, 3)).transpose(1, 0, 2, 3)   # (out, in, 4, 4)
    z = lax.conv_general_dilated(
        y, w2f, window_strides=(1, 1), padding=((2, 2), (2, 2)),
        lhs_dilation=(2, 2), dimension_numbers=('NCHW', 'OIHW', 'NCHW'))
    z = jax.nn.relu(z + b2[None, :, None, None])
    return z


if __name__ == "__main__":
    # small shapes consistent with the module
    B, Cin, H, W = 2, 4, 16, 16
    Cmid, Cout = 8, 4

    key = jax.random.PRNGKey(0)
    k1, k2, k3, k4, kx = jax.random.split(key, 5)

    # deterministic synthetic parameters (PyTorch layouts)
    w1 = jax.random.normal(k1, (Cmid, Cin, 3, 3), jnp.float32) * 0.1   # Conv2d
    b1 = jax.random.normal(k2, (Cmid,), jnp.float32) * 0.1
    b2 = jax.random.normal(k4, (Cout,), jnp.float32) * 0.1
    w2 = jax.random.normal(k3, (Cmid, Cout, 4, 4), jnp.float32) * 0.1  # ConvTranspose2d
    x = jax.random.normal(kx, (B, Cin, H, W), jnp.float32)

    out = jax.block_until_ready(decoder_block_v2(x, w1, b1, w2, b2))
    ref = jax.block_until_ready(reference(x, w1, b1, w2, b2))

    assert out.shape == (B, Cout, 2 * H, 2 * W), out.shape
    # bf16 MXU operands with f32 accumulation: tolerance relaxed from 1e-4.
    np.testing.assert_allclose(np.asarray(out), np.asarray(ref),
                               rtol=2e-2, atol=2e-2)

    print("KERNEL_OK")
</pallas_src>

<mosaic_0001>
module attributes {stable_mosaic.version = 11 : i64} {
  func.func @decoder_block_kernel(%arg0: i32, %arg1: memref<1x16x16x4xbf16, #tpu.memory_space<vmem>>, %arg2: memref<36x8xbf16, #tpu.memory_space<vmem>>, %arg3: memref<1x8xf32, #tpu.memory_space<vmem>>, %arg4: memref<72x16xbf16, #tpu.memory_space<vmem>>, %arg5: memref<1x16xf32, #tpu.memory_space<vmem>>, %arg6: memref<1x16x256xf32, #tpu.memory_space<vmem>>, %arg7: memref<18x18x4xf32, #tpu.memory_space<vmem>>, %arg8: memref<16x16x36xbf16, #tpu.memory_space<vmem>>, %arg9: memref<18x18x8xf32, #tpu.memory_space<vmem>>, %arg10: memref<16x16x72xbf16, #tpu.memory_space<vmem>>) attributes {dimension_semantics = [#tpu.dimension_semantics<parallel>], iteration_bounds = array<i64: 2>, scalar_prefetch = 0 : i64, scratch_operands = 4 : i64, tpu.core_type = #tpu.core_type<tc>, window_params = [{transform_indices = @transform_0, window_bounds = array<i64: 1, 16, 16, 4>}, {pipeline_mode = #tpu.pipeline_mode<synchronous>, transform_indices = @transform_1, window_bounds = array<i64: 36, 8>}, {pipeline_mode = #tpu.pipeline_mode<synchronous>, transform_indices = @transform_2, window_bounds = array<i64: 1, 8>}, {pipeline_mode = #tpu.pipeline_mode<synchronous>, transform_indices = @transform_3, window_bounds = array<i64: 72, 16>}, {pipeline_mode = #tpu.pipeline_mode<synchronous>, transform_indices = @transform_4, window_bounds = array<i64: 1, 16>}, {transform_indices = @transform_5, window_bounds = array<i64: 1, 16, 256>}]} {
    %cst = arith.constant 0.000000e+00 : f32
    %0 = vector.broadcast %cst : f32 to vector<1x18x4xf32>
    %c0 = arith.constant 0 : index
    %c0_0 = arith.constant 0 : index
    %c0_1 = arith.constant 0 : index
    %1 = vector.load %arg7[%c0, %c0_0, %c0_1] : memref<18x18x4xf32, #tpu.memory_space<vmem>>, vector<1x18x4xf32>
    tpu.vector_store %arg7[%c0, %c0_0, %c0_1], %0 {strides = array<i32>} : memref<18x18x4xf32, #tpu.memory_space<vmem>>, vector<1x18x4xf32>,
    %cst_2 = arith.constant 0.000000e+00 : f32
    %2 = vector.broadcast %cst_2 : f32 to vector<1x18x4xf32>
    %c17 = arith.constant 17 : index
    %c0_3 = arith.constant 0 : index
    %c0_4 = arith.constant 0 : index
    %3 = vector.load %arg7[%c17, %c0_3, %c0_4] : memref<18x18x4xf32, #tpu.memory_space<vmem>>, vector<1x18x4xf32>
    tpu.vector_store %arg7[%c17, %c0_3, %c0_4], %2 {strides = array<i32>} : memref<18x18x4xf32, #tpu.memory_space<vmem>>, vector<1x18x4xf32>,
    %cst_5 = arith.constant 0.000000e+00 : f32
    %4 = vector.broadcast %cst_5 : f32 to vector<16x1x4xf32>
    %c1 = arith.constant 1 : index
    %c0_6 = arith.constant 0 : index
    %c0_7 = arith.constant 0 : index
    %5 = vector.load %arg7[%c1, %c0_6, %c0_7] : memref<18x18x4xf32, #tpu.memory_space<vmem>>, vector<16x1x4xf32>
    tpu.vector_store %arg7[%c1, %c0_6, %c0_7], %4 {strides = array<i32>} : memref<18x18x4xf32, #tpu.memory_space<vmem>>, vector<16x1x4xf32>,
    %cst_8 = arith.constant 0.000000e+00 : f32
    %6 = vector.broadcast %cst_8 : f32 to vector<16x1x4xf32>
    %c1_9 = arith.constant 1 : index
    %c17_10 = arith.constant 17 : index
    %c0_11 = arith.constant 0 : index
    %7 = vector.load %arg7[%c1_9, %c17_10, %c0_11] : memref<18x18x4xf32, #tpu.memory_space<vmem>>, vector<16x1x4xf32>
    tpu.vector_store %arg7[%c1_9, %c17_10, %c0_11], %6 {strides = array<i32>} : memref<18x18x4xf32, #tpu.memory_space<vmem>>, vector<16x1x4xf32>,
    %c0_12 = arith.constant 0 : index
    %c0_13 = arith.constant 0 : index
    %c0_14 = arith.constant 0 : index
    %c0_15 = arith.constant 0 : index
    %8 = vector.load %arg1[%c0_12, %c0_13, %c0_14, %c0_15] : memref<1x16x16x4xbf16, #tpu.memory_space<vmem>>, vector<1x16x16x4xbf16>
    %9 = vector.shape_cast %8 : vector<1x16x16x4xbf16> to vector<16x16x4xbf16>
    %10 = arith.extf %9 : vector<16x16x4xbf16> to vector<16x16x4xf32>
    %c1_16 = arith.constant 1 : index
    %c1_17 = arith.constant 1 : index
    %c0_18 = arith.constant 0 : index
    %11 = vector.load %arg7[%c1_16, %c1_17, %c0_18] : memref<18x18x4xf32, #tpu.memory_space<vmem>>, vector<16x16x4xf32>
    tpu.vector_store %arg7[%c1_16, %c1_17, %c0_18], %10 {strides = array<i32>} : memref<18x18x4xf32, #tpu.memory_space<vmem>>, vector<16x16x4xf32>,
    %c0_19 = arith.constant 0 : index
    %c0_20 = arith.constant 0 : index
    %c0_21 = arith.constant 0 : index
    %12 = vector.load %arg7[%c0_19, %c0_20, %c0_21] : memref<18x18x4xf32, #tpu.memory_space<vmem>>, vector<16x16x4xf32>
    %13 = arith.truncf %12 : vector<16x16x4xf32> to vector<16x16x4xbf16>
    %c0_22 = arith.constant 0 : index
    %c0_23 = arith.constant 0 : index
    %c0_24 = arith.constant 0 : index
    %14 = vector.load %arg8[%c0_22, %c0_23, %c0_24] : memref<16x16x36xbf16, #tpu.memory_space<vmem>>, vector<16x16x4xbf16>
    tpu.vector_store %arg8[%c0_22, %c0_23, %c0_24], %13 {strides = array<i32>} : memref<16x16x36xbf16, #tpu.memory_space<vmem>>, vector<16x16x4xbf16>,
    %c0_25 = arith.constant 0 : index
    %c1_26 = arith.constant 1 : index
    %c0_27 = arith.constant 0 : index
    %15 = vector.load %arg7[%c0_25, %c1_26, %c0_27] : memref<18x18x4xf32, #tpu.memory_space<vmem>>, vector<16x16x4xf32>
    %16 = arith.truncf %15 : vector<16x16x4xf32> to vector<16x16x4xbf16>
    %c0_28 = arith.constant 0 : index
    %c0_29 = arith.constant 0 : index
    %c4 = arith.constant 4 : index
    %17 = vector.load %arg8[%c0_28, %c0_29, %c4] : memref<16x16x36xbf16, #tpu.memory_space<vmem>>, vector<16x16x4xbf16>
    tpu.vector_store %arg8[%c0_28, %c0_29, %c4], %16 {strides = array<i32>} : memref<16x16x36xbf16, #tpu.memory_space<vmem>>, vector<16x16x4xbf16>,
    %c0_30 = arith.constant 0 : index
    %c2 = arith.constant 2 : index
    %c0_31 = arith.constant 0 : index
    %18 = vector.load %arg7[%c0_30, %c2, %c0_31] : memref<18x18x4xf32, #tpu.memory_space<vmem>>, vector<16x16x4xf32>
    %19 = arith.truncf %18 : vector<16x16x4xf32> to vector<16x16x4xbf16>
    %c0_32 = arith.constant 0 : index
    %c0_33 = arith.constant 0 : index
    %c8 = arith.constant 8 : index
    %20 = vector.load %arg8[%c0_32, %c0_33, %c8] : memref<16x16x36xbf16, #tpu.memory_space<vmem>>, vector<16x16x4xbf16>
    tpu.vector_store %arg8[%c0_32, %c0_33, %c8], %19 {strides = array<i32>} : memref<16x16x36xbf16, #tpu.memory_space<vmem>>, vector<16x16x4xbf16>,
    %c1_34 = arith.constant 1 : index
    %c0_35 = arith.constant 0 : index
    %c0_36 = arith.constant 0 : index
    %21 = vector.load %arg7[%c1_34, %c0_35, %c0_36] : memref<18x18x4xf32, #tpu.memory_space<vmem>>, vector<16x16x4xf32>
    %22 = arith.truncf %21 : vector<16x16x4xf32> to vector<16x16x4xbf16>
    %c0_37 = arith.constant 0 : index
    %c0_38 = arith.constant 0 : index
    %c12 = arith.constant 12 : index
    %23 = vector.load %arg8[%c0_37, %c0_38, %c12] : memref<16x16x36xbf16, #tpu.memory_space<vmem>>, vector<16x16x4xbf16>
    tpu.vector_store %arg8[%c0_37, %c0_38, %c12], %22 {strides = array<i32>} : memref<16x16x36xbf16, #tpu.memory_space<vmem>>, vector<16x16x4xbf16>,
    %c1_39 = arith.constant 1 : index
    %c1_40 = arith.constant 1 : index
    %c0_41 = arith.constant 0 : index
    %24 = vector.load %arg7[%c1_39, %c1_40, %c0_41] : memref<18x18x4xf32, #tpu.memory_space<vmem>>, vector<16x16x4xf32>
    %25 = arith.truncf %24 : vector<16x16x4xf32> to vector<16x16x4xbf16>
    %c0_42 = arith.constant 0 : index
    %c0_43 = arith.constant 0 : index
    %c16 = arith.constant 16 : index
    %26 = vector.load %arg8[%c0_42, %c0_43, %c16] : memref<16x16x36xbf16, #tpu.memory_space<vmem>>, vector<16x16x4xbf16>
    tpu.vector_store %arg8[%c0_42, %c0_43, %c16], %25 {strides = array<i32>} : memref<16x16x36xbf16, #tpu.memory_space<vmem>>, vector<16x16x4xbf16>,
    %c1_44 = arith.constant 1 : index
    %c2_45 = arith.constant 2 : index
    %c0_46 = arith.constant 0 : index
    %27 = vector.load %arg7[%c1_44, %c2_45, %c0_46] : memref<18x18x4xf32, #tpu.memory_space<vmem>>, vector<16x16x4xf32>
    %28 = arith.truncf %27 : vector<16x16x4xf32> to vector<16x16x4xbf16>
    %c0_47 = arith.constant 0 : index
    %c0_48 = arith.constant 0 : index
    %c20 = arith.constant 20 : index
    %29 = vector.load %arg8[%c0_47, %c0_48, %c20] : memref<16x16x36xbf16, #tpu.memory_space<vmem>>, vector<16x16x4xbf16>
    tpu.vector_store %arg8[%c0_47, %c0_48, %c20], %28 {strides = array<i32>} : memref<16x16x36xbf16, #tpu.memory_space<vmem>>, vector<16x16x4xbf16>,
    %c2_49 = arith.constant 2 : index
    %c0_50 = arith.constant 0 : index
    %c0_51 = arith.constant 0 : index
    %30 = vector.load %arg7[%c2_49, %c0_50, %c0_51] : memref<18x18x4xf32, #tpu.memory_space<vmem>>, vector<16x16x4xf32>
    %31 = arith.truncf %30 : vector<16x16x4xf32> to vector<16x16x4xbf16>
    %c0_52 = arith.constant 0 : index
    %c0_53 = arith.constant 0 : index
    %c24 = arith.constant 24 : index
    %32 = vector.load %arg8[%c0_52, %c0_53, %c24] : memref<16x16x36xbf16, #tpu.memory_space<vmem>>, vector<16x16x4xbf16>
    tpu.vector_store %arg8[%c0_52, %c0_53, %c24], %31 {strides = array<i32>} : memref<16x16x36xbf16, #tpu.memory_space<vmem>>, vector<16x16x4xbf16>,
    %c2_54 = arith.constant 2 : index
    %c1_55 = arith.constant 1 : index
    %c0_56 = arith.constant 0 : index
    %33 = vector.load %arg7[%c2_54, %c1_55, %c0_56] : memref<18x18x4xf32, #tpu.memory_space<vmem>>, vector<16x16x4xf32>
    %34 = arith.truncf %33 : vector<16x16x4xf32> to vector<16x16x4xbf16>
    %c0_57 = arith.constant 0 : index
    %c0_58 = arith.constant 0 : index
    %c28 = arith.constant 28 : index
    %35 = vector.load %arg8[%c0_57, %c0_58, %c28] : memref<16x16x36xbf16, #tpu.memory_space<vmem>>, vector<16x16x4xbf16>
    tpu.vector_store %arg8[%c0_57, %c0_58, %c28], %34 {strides = array<i32>} : memref<16x16x36xbf16, #tpu.memory_space<vmem>>, vector<16x16x4xbf16>,
    %c2_59 = arith.constant 2 : index
    %c2_60 = arith.constant 2 : index
    %c0_61 = arith.constant 0 : index
    %36 = vector.load %arg7[%c2_59, %c2_60, %c0_61] : memref<18x18x4xf32, #tpu.memory_space<vmem>>, vector<16x16x4xf32>
    %37 = arith.truncf %36 : vector<16x16x4xf32> to vector<16x16x4xbf16>
    %c0_62 = arith.constant 0 : index
    %c0_63 = arith.constant 0 : index
    %c32 = arith.constant 32 : index
    %38 = vector.load %arg8[%c0_62, %c0_63, %c32] : memref<16x16x36xbf16, #tpu.memory_space<vmem>>, vector<16x16x4xbf16>
    tpu.vector_store %arg8[%c0_62, %c0_63, %c32], %37 {strides = array<i32>} : memref<16x16x36xbf16, #tpu.memory_space<vmem>>, vector<16x16x4xbf16>,
    %c0_64 = arith.constant 0 : index
    %c0_65 = arith.constant 0 : index
    %c0_66 = arith.constant 0 : index
    %39 = vector.load %arg8[%c0_64, %c0_65, %c0_66] : memref<16x16x36xbf16, #tpu.memory_space<vmem>>, vector<16x16x36xbf16>
    %40 = vector.shape_cast %39 : vector<16x16x36xbf16> to vector<256x36xbf16>
    %c0_67 = arith.constant 0 : index
    %c0_68 = arith.constant 0 : index
    %41 = vector.load %arg2[%c0_67, %c0_68] : memref<36x8xbf16, #tpu.memory_space<vmem>>, vector<36x8xbf16>
    %cst_69 = arith.constant dense<0.000000e+00> : vector<256x8xf32>
    %42 = tpu.matmul %40, %41, %cst_69 {dimension_numbers = #tpu.dot_dimension_numbers<[1], [0], [0], [1], [0, 0, 1, 1], [], []>} : vector<256x36xbf16>, vector<36x8xbf16>, vector<256x8xf32> -> vector<256x8xf32>
    %c0_70 = arith.constant 0 : index
    %c0_71 = arith.constant 0 : index
    %43 = vector.load %arg3[%c0_70, %c0_71] : memref<1x8xf32, #tpu.memory_space<vmem>>, vector<1x8xf32>
    %44 = vector.broadcast %43 : vector<1x8xf32> to vector<256x8xf32>
    %45 = arith.addf %42, %44 : vector<256x8xf32>
    %cst_72 = arith.constant 0.000000e+00 : f32
    %46 = vector.broadcast %cst_72 : f32 to vector<256x8xf32>
    %47 = arith.maximumf %45, %46 : vector<256x8xf32>
    %cst_73 = arith.constant 0.000000e+00 : f32
    %48 = vector.broadcast %cst_73 : f32 to vector<1x18x8xf32>
    %c0_74 = arith.constant 0 : index
    %c0_75 = arith.constant 0 : index
    %c0_76 = arith.constant 0 : index
    %49 = vector.load %arg9[%c0_74, %c0_75, %c0_76] : memref<18x18x8xf32, #tpu.memory_space<vmem>>, vector<1x18x8xf32>
    tpu.vector_store %arg9[%c0_74, %c0_75, %c0_76], %48 {strides = array<i32>} : memref<18x18x8xf32, #tpu.memory_space<vmem>>, vector<1x18x8xf32>,
    %cst_77 = arith.constant 0.000000e+00 : f32
    %50 = vector.broadcast %cst_77 : f32 to vector<1x18x8xf32>
    %c17_78 = arith.constant 17 : index
    %c0_79 = arith.constant 0 : index
    %c0_80 = arith.constant 0 : index
    %51 = vector.load %arg9[%c17_78, %c0_79, %c0_80] : memref<18x18x8xf32, #tpu.memory_space<vmem>>, vector<1x18x8xf32>
    tpu.vector_store %arg9[%c17_78, %c0_79, %c0_80], %50 {strides = array<i32>} : memref<18x18x8xf32, #tpu.memory_space<vmem>>, vector<1x18x8xf32>,
    %cst_81 = arith.constant 0.000000e+00 : f32
    %52 = vector.broadcast %cst_81 : f32 to vector<16x1x8xf32>
    %c1_82 = arith.constant 1 : index
    %c0_83 = arith.constant 0 : index
    %c0_84 = arith.constant 0 : index
    %53 = vector.load %arg9[%c1_82, %c0_83, %c0_84] : memref<18x18x8xf32, #tpu.memory_space<vmem>>, vector<16x1x8xf32>
    tpu.vector_store %arg9[%c1_82, %c0_83, %c0_84], %52 {strides = array<i32>} : memref<18x18x8xf32, #tpu.memory_space<vmem>>, vector<16x1x8xf32>,
    %cst_85 = arith.constant 0.000000e+00 : f32
    %54 = vector.broadcast %cst_85 : f32 to vector<16x1x8xf32>
    %c1_86 = arith.constant 1 : index
    %c17_87 = arith.constant 17 : index
    %c0_88 = arith.constant 0 : index
    %55 = vector.load %arg9[%c1_86, %c17_87, %c0_88] : memref<18x18x8xf32, #tpu.memory_space<vmem>>, vector<16x1x8xf32>
    tpu.vector_store %arg9[%c1_86, %c17_87, %c0_88], %54 {strides = array<i32>} : memref<18x18x8xf32, #tpu.memory_space<vmem>>, vector<16x1x8xf32>,
    %56 = vector.shape_cast %47 : vector<256x8xf32> to vector<16x16x8xf32>
    %c1_89 = arith.constant 1 : index
    %c1_90 = arith.constant 1 : index
    %c0_91 = arith.constant 0 : index
    %57 = vector.load %arg9[%c1_89, %c1_90, %c0_91] : memref<18x18x8xf32, #tpu.memory_space<vmem>>, vector<16x16x8xf32>
    tpu.vector_store %arg9[%c1_89, %c1_90, %c0_91], %56 {strides = array<i32>} : memref<18x18x8xf32, #tpu.memory_space<vmem>>, vector<16x16x8xf32>,
    %c0_92 = arith.constant 0 : index
    %c0_93 = arith.constant 0 : index
    %c0_94 = arith.constant 0 : index
    %58 = vector.load %arg9[%c0_92, %c0_93, %c0_94] : memref<18x18x8xf32, #tpu.memory_space<vmem>>, vector<16x16x8xf32>
    %59 = arith.truncf %58 : vector<16x16x8xf32> to vector<16x16x8xbf16>
    %c0_95 = arith.constant 0 : index
    %c0_96 = arith.constant 0 : index
    %c0_97 = arith.constant 0 : index
    %60 = vector.load %arg10[%c0_95, %c0_96, %c0_97] : memref<16x16x72xbf16, #tpu.memory_space<vmem>>, vector<16x16x8xbf16>
    tpu.vector_store %arg10[%c0_95, %c0_96, %c0_97], %59 {strides = array<i32>} : memref<16x16x72xbf16, #tpu.memory_space<vmem>>, vector<16x16x8xbf16>,
    %c0_98 = arith.constant 0 : index
    %c1_99 = arith.constant 1 : index
    %c0_100 = arith.constant 0 : index
    %61 = vector.load %arg9[%c0_98, %c1_99, %c0_100] : memref<18x18x8xf32, #tpu.memory_space<vmem>>, vector<16x16x8xf32>
    %62 = arith.truncf %61 : vector<16x16x8xf32> to vector<16x16x8xbf16>
    %c0_101 = arith.constant 0 : index
    %c0_102 = arith.constant 0 : index
    %c8_103 = arith.constant 8 : index
    %63 = vector.load %arg10[%c0_101, %c0_102, %c8_103] : memref<16x16x72xbf16, #tpu.memory_space<vmem>>, vector<16x16x8xbf16>
    tpu.vector_store %arg10[%c0_101, %c0_102, %c8_103], %62 {strides = array<i32>} : memref<16x16x72xbf16, #tpu.memory_space<vmem>>, vector<16x16x8xbf16>,
    %c0_104 = arith.constant 0 : index
    %c2_105 = arith.constant 2 : index
    %c0_106 = arith.constant 0 : index
    %64 = vector.load %arg9[%c0_104, %c2_105, %c0_106] : memref<18x18x8xf32, #tpu.memory_space<vmem>>, vector<16x16x8xf32>
    %65 = arith.truncf %64 : vector<16x16x8xf32> to vector<16x16x8xbf16>
    %c0_107 = arith.constant 0 : index
    %c0_108 = arith.constant 0 : index
    %c16_109 = arith.constant 16 : index
    %66 = vector.load %arg10[%c0_107, %c0_108, %c16_109] : memref<16x16x72xbf16, #tpu.memory_space<vmem>>, vector<16x16x8xbf16>
    tpu.vector_store %arg10[%c0_107, %c0_108, %c16_109], %65 {strides = array<i32>} : memref<16x16x72xbf16, #tpu.memory_space<vmem>>, vector<16x16x8xbf16>,
    %c1_110 = arith.constant 1 : index
    %c0_111 = arith.constant 0 : index
    %c0_112 = arith.constant 0 : index
    %67 = vector.load %arg9[%c1_110, %c0_111, %c0_112] : memref<18x18x8xf32, #tpu.memory_space<vmem>>, vector<16x16x8xf32>
    %68 = arith.truncf %67 : vector<16x16x8xf32> to vector<16x16x8xbf16>
    %c0_113 = arith.constant 0 : index
    %c0_114 = arith.constant 0 : index
    %c24_115 = arith.constant 24 : index
    %69 = vector.load %arg10[%c0_113, %c0_114, %c24_115] : memref<16x16x72xbf16, #tpu.memory_space<vmem>>, vector<16x16x8xbf16>
    tpu.vector_store %arg10[%c0_113, %c0_114, %c24_115], %68 {strides = array<i32>} : memref<16x16x72xbf16, #tpu.memory_space<vmem>>, vector<16x16x8xbf16>,
    %c1_116 = arith.constant 1 : index
    %c1_117 = arith.constant 1 : index
    %c0_118 = arith.constant 0 : index
    %70 = vector.load %arg9[%c1_116, %c1_117, %c0_118] : memref<18x18x8xf32, #tpu.memory_space<vmem>>, vector<16x16x8xf32>
    %71 = arith.truncf %70 : vector<16x16x8xf32> to vector<16x16x8xbf16>
    %c0_119 = arith.constant 0 : index
    %c0_120 = arith.constant 0 : index
    %c32_121 = arith.constant 32 : index
    %72 = vector.load %arg10[%c0_119, %c0_120, %c32_121] : memref<16x16x72xbf16, #tpu.memory_space<vmem>>, vector<16x16x8xbf16>
    tpu.vector_store %arg10[%c0_119, %c0_120, %c32_121], %71 {strides = array<i32>} : memref<16x16x72xbf16, #tpu.memory_space<vmem>>, vector<16x16x8xbf16>,
    %c1_122 = arith.constant 1 : index
    %c2_123 = arith.constant 2 : index
    %c0_124 = arith.constant 0 : index
    %73 = vector.load %arg9[%c1_122, %c2_123, %c0_124] : memref<18x18x8xf32, #tpu.memory_space<vmem>>, vector<16x16x8xf32>
    %74 = arith.truncf %73 : vector<16x16x8xf32> to vector<16x16x8xbf16>
    %c0_125 = arith.constant 0 : index
    %c0_126 = arith.constant 0 : index
    %c40 = arith.constant 40 : index
    %75 = vector.load %arg10[%c0_125, %c0_126, %c40] : memref<16x16x72xbf16, #tpu.memory_space<vmem>>, vector<16x16x8xbf16>
    tpu.vector_store %arg10[%c0_125, %c0_126, %c40], %74 {strides = array<i32>} : memref<16x16x72xbf16, #tpu.memory_space<vmem>>, vector<16x16x8xbf16>,
    %c2_127 = arith.constant 2 : index
    %c0_128 = arith.constant 0 : index
    %c0_129 = arith.constant 0 : index
    %76 = vector.load %arg9[%c2_127, %c0_128, %c0_129] : memref<18x18x8xf32, #tpu.memory_space<vmem>>, vector<16x16x8xf32>
    %77 = arith.truncf %76 : vector<16x16x8xf32> to vector<16x16x8xbf16>
    %c0_130 = arith.constant 0 : index
    %c0_131 = arith.constant 0 : index
    %c48 = arith.constant 48 : index
    %78 = vector.load %arg10[%c0_130, %c0_131, %c48] : memref<16x16x72xbf16, #tpu.memory_space<vmem>>, vector<16x16x8xbf16>
    tpu.vector_store %arg10[%c0_130, %c0_131, %c48], %77 {strides = array<i32>} : memref<16x16x72xbf16, #tpu.memory_space<vmem>>, vector<16x16x8xbf16>,
    %c2_132 = arith.constant 2 : index
    %c1_133 = arith.constant 1 : index
    %c0_134 = arith.constant 0 : index
    %79 = vector.load %arg9[%c2_132, %c1_133, %c0_134] : memref<18x18x8xf32, #tpu.memory_space<vmem>>, vector<16x16x8xf32>
    %80 = arith.truncf %79 : vector<16x16x8xf32> to vector<16x16x8xbf16>
    %c0_135 = arith.constant 0 : index
    %c0_136 = arith.constant 0 : index
    %c56 = arith.constant 56 : index
    %81 = vector.load %arg10[%c0_135, %c0_136, %c56] : memref<16x16x72xbf16, #tpu.memory_space<vmem>>, vector<16x16x8xbf16>
    tpu.vector_store %arg10[%c0_135, %c0_136, %c56], %80 {strides = array<i32>} : memref<16x16x72xbf16, #tpu.memory_space<vmem>>, vector<16x16x8xbf16>,
    %c2_137 = arith.constant 2 : index
    %c2_138 = arith.constant 2 : index
    %c0_139 = arith.constant 0 : index
    %82 = vector.load %arg9[%c2_137, %c2_138, %c0_139] : memref<18x18x8xf32, #tpu.memory_space<vmem>>, vector<16x16x8xf32>
    %83 = arith.truncf %82 : vector<16x16x8xf32> to vector<16x16x8xbf16>
    %c0_140 = arith.constant 0 : index
    %c0_141 = arith.constant 0 : index
    %c64 = arith.constant 64 : index
    %84 = vector.load %arg10[%c0_140, %c0_141, %c64] : memref<16x16x72xbf16, #tpu.memory_space<vmem>>, vector<16x16x8xbf16>
    tpu.vector_store %arg10[%c0_140, %c0_141, %c64], %83 {strides = array<i32>} : memref<16x16x72xbf16, #tpu.memory_space<vmem>>, vector<16x16x8xbf16>,
    %c0_142 = arith.constant 0 : index
    %c0_143 = arith.constant 0 : index
    %c0_144 = arith.constant 0 : index
    %85 = vector.load %arg10[%c0_142, %c0_143, %c0_144] : memref<16x16x72xbf16, #tpu.memory_space<vmem>>, vector<16x16x72xbf16>
    %86 = vector.shape_cast %85 : vector<16x16x72xbf16> to vector<256x72xbf16>
    %c0_145 = arith.constant 0 : index
    %c0_146 = arith.constant 0 : index
    %87 = vector.load %arg4[%c0_145, %c0_146] : memref<72x16xbf16, #tpu.memory_space<vmem>>, vector<72x16xbf16>
    %cst_147 = arith.constant dense<0.000000e+00> : vector<256x16xf32>
    %88 = tpu.matmul %86, %87, %cst_147 {dimension_numbers = #tpu.dot_dimension_numbers<[1], [0], [0], [1], [0, 0, 1, 1], [], []>} : vector<256x72xbf16>, vector<72x16xbf16>, vector<256x16xf32> -> vector<256x16xf32>
    %c0_148 = arith.constant 0 : index
    %c0_149 = arith.constant 0 : index
    %89 = vector.load %arg5[%c0_148, %c0_149] : memref<1x16xf32, #tpu.memory_space<vmem>>, vector<1x16xf32>
    %90 = vector.broadcast %89 : vector<1x16xf32> to vector<256x16xf32>
    %91 = arith.addf %88, %90 : vector<256x16xf32>
    %cst_150 = arith.constant 0.000000e+00 : f32
    %92 = vector.broadcast %cst_150 : f32 to vector<256x16xf32>
    %93 = arith.maximumf %91, %92 : vector<256x16xf32>
    %94 = tpu.transpose %93, [1, 0] : vector<256x16xf32> -> vector<16x256xf32>
    %c0_151 = arith.constant 0 : index
    %c0_152 = arith.constant 0 : index
    %c0_153 = arith.constant 0 : index
    %95 = vector.load %arg6[%c0_151, %c0_152, %c0_153] : memref<1x16x256xf32, #tpu.memory_space<vmem>>, vector<1x16x256xf32>
    %96 = vector.shape_cast %95 : vector<1x16x256xf32> to vector<16x256xf32>
    %97 = vector.shape_cast %94 : vector<16x256xf32> to vector<1x16x256xf32>
    tpu.vector_store %arg6[%c0_151, %c0_152, %c0_153], %97 {strides = array<i32>} : memref<1x16x256xf32, #tpu.memory_space<vmem>>, vector<1x16x256xf32>,
    return
  }
  func.func @transform_0(%arg0: i32) -> (i32, i32, i32, i32) {
    %c0_i32 = arith.constant 0 : i32
    %c0_i32_0 = arith.constant 0 : i32
    %c0_i32_1 = arith.constant 0 : i32
    %c0_i32_2 = arith.constant 0 : i32
    return %arg0, %c0_i32, %c0_i32_0, %c0_i32_1 : i32, i32, i32, i32
  }
  func.func @transform_1(%arg0: i32) -> (i32, i32) {
    %c0_i32 = arith.constant 0 : i32
    %c0_i32_0 = arith.constant 0 : i32
    %c0_i32_1 = arith.constant 0 : i32
    return %c0_i32, %c0_i32_0 : i32, i32
  }
  func.func @transform_2(%arg0: i32) -> (i32, i32) {
    %c0_i32 = arith.constant 0 : i32
    %c0_i32_0 = arith.constant 0 : i32
    %c0_i32_1 = arith.constant 0 : i32
    return %c0_i32, %c0_i32_0 : i32, i32
  }
  func.func @transform_3(%arg0: i32) -> (i32, i32) {
    %c0_i32 = arith.constant 0 : i32
    %c0_i32_0 = arith.constant 0 : i32
    %c0_i32_1 = arith.constant 0 : i32
    return %c0_i32, %c0_i32_0 : i32, i32
  }
  func.func @transform_4(%arg0: i32) -> (i32, i32) {
    %c0_i32 = arith.constant 0 : i32
    %c0_i32_0 = arith.constant 0 : i32
    %c0_i32_1 = arith.constant 0 : i32
    return %c0_i32, %c0_i32_0 : i32, i32
  }
  func.func @transform_5(%arg0: i32) -> (i32, i32, i32) {
    %c0_i32 = arith.constant 0 : i32
    %c0_i32_0 = arith.constant 0 : i32
    %c0_i32_1 = arith.constant 0 : i32
    return %arg0, %c0_i32, %c0_i32_0 : i32, i32, i32
  }
}

</mosaic_0001>

<llo_original>
// kernel: tile.8
$region0: #{tile.8}
  #allocation0 [shape = 's32[1]{0}', space=sflag, size = 0x4, scoped, tag = 'scoped memory for tile.8']
  %s0 = inlined_call_operand.vmem [shape: f32[4], index: 0, kind: input, shape index: {}]
  %s1 = inlined_call_operand.vmem [shape: f32[4,4], index: 1, kind: output, shape index: {}]
  // Predicated region
  $region2: #{tile.8} parent=0 // pred_check
    _
  $region3: #{tile.8} parent=0 // pred_check_branch
    %3 = sbr.rel (0) target = $region5
  $region4: #{tile.8} parent=0 // pred_region
    _
  $region5: #{tile.8} parent=0 // pred_fallthru
    _
  %v4 = vld [vmem:[%s0] ss:$0 sm:$0xff]
  %5 = vst [vmem:[%s1] sm:$0xf] %v4

// kernel: tile.9
$region0: #{tile.9}
  %s0 = inlined_call_operand.vmem [shape: f32[4,4], index: 0, kind: input, shape index: {}]
  %s1 = inlined_call_operand.vmem [shape: f32[1,16], index: 1, kind: output, shape index: {}]
  $region1: #{tile.9} parent=0
    #allocation0 [shape = 'u8[4096]{0}', space=vmem, size = 0x1000, scoped, tag = 'scoped mem for output reshape']
    #allocation1 [shape = 'u8[4096]{0}', space=vmem, size = 0x1000, scoped, tag = 'scoped mem for input reshape']
    %s3 = sshllo.u32 0, 4
    %v4 = vld [vmem:[%s0] sm:%s3]
    %5 = vst [vmem:[#allocation1] sm:%s3] %v4
    %v6 = vld [vmem:[#allocation1] sm:$0x1]
    %vm7 = vcmask 31744
    %8 = vst.msk [vmem:[#allocation0] sm:$0x1] %vm7, %v6
    %s9 = scalar_lea.vmem [#allocation1], 3
    %v10 = vld [vmem:[%s9] sm:$0x1]
    %11 = vrot.lane.b32.xlu0 %v10, 12
    %v12 = vpop.permute.xlu0 %11
    %vm13 = vcmask 130144
    %14 = vst.msk [vmem:[#allocation0] sm:$0x1] %vm13, %v12
    %s15 = scalar_lea.vmem [#allocation1], 2
    %v16 = vld [vmem:[%s15] sm:$0x1]
    %17 = vrot.lane.b32.xlu0 %v16, 8
    %v18 = vpop.permute.xlu0 %17
    %vm19 = vcmask 97344
    %20 = vst.msk [vmem:[#allocation0] sm:$0x1] %vm19, %v18
    %s21 = scalar_lea.vmem [#allocation1], 1
    %v22 = vld [vmem:[%s21] sm:$0x1]
    %23 = vrot.lane.b32.xlu0 %v22, 4
    %v24 = vpop.permute.xlu0 %23
    %vm25 = vcmask 64544
    %26 = vst.msk [vmem:[#allocation0] sm:$0x1] %vm25, %v24
    %s28 = sshllo.u32 0, 1
    %v30 = vld [vmem:[#allocation0] sm:%s28]
    %s31 = sshllo.u32 0, 1
    %32 = vst [vmem:[%s1] sm:%s31] %v30

// kernel: decoder_block_v2.1
$region0: #{decoder_block_v2.1}
  #allocation0 [shape = 'u32[]', space=smem, size = 0x4, offset = 0x4, fixed_abs, tag = 'smem constant byte address 0x4 - core index']
  #allocation1 [shape = 'u32[144,128]{1,0:T(1,128)}', space=vmem, size = 0x12000, scoped, tag = 'internal scratch']
  #allocation2 [shape = 'f32[18,18,4]{2,1,0:T(8,128)}', space=vmem, size = 0x36000, scoped, tag = 'scratch operand']
  #allocation3 [shape = 'bf16[16,16,36]{2,1,0:T(16,128)(2,1)}', space=vmem, size = 0x10000, scoped, tag = 'scratch operand']
  #allocation4 [shape = 'f32[18,18,8]{2,1,0:T(8,128)}', space=vmem, size = 0x36000, scoped, tag = 'scratch operand']
  #allocation5 [shape = 'bf16[16,16,72]{2,1,0:T(16,128)(2,1)}', space=vmem, size = 0x10000, scoped, tag = 'scratch operand']
  %s0 = inlined_call_operand.vmem [shape: bf16[2,16,16,4], index: 0, kind: input, shape index: {}]
  %s1 = inlined_call_operand.vmem [shape: bf16[36,8], index: 1, kind: input, shape index: {}]
  %s2 = inlined_call_operand.vmem [shape: f32[1,8], index: 2, kind: input, shape index: {}]
  %s3 = inlined_call_operand.vmem [shape: bf16[72,16], index: 3, kind: input, shape index: {}]
  %s4 = inlined_call_operand.vmem [shape: f32[1,16], index: 4, kind: input, shape index: {}]
  %s5 = inlined_call_operand.vmem [shape: f32[2,16,256], index: 5, kind: output, shape index: {}]
  %s6 = sld [smem:[#allocation0]]
  $region53: #{decoder_block_v2.1} parent=0
    _
  %s8 = ssub.s32 1, %s6
  %s9 = scalar_select 0, %s8, %s6
  loop: start=0, step=1, limit=4
  $region2: #{decoder_block_v2.1} parent=0 // loop_pre_header
    _
  $region3: #{decoder_block_v2.1} parent=0 // loop_header
    %s11 = sphi 0, %s15
    %p12 = scmp.ge.s32.totalorder %s11, 4
    %s21 = sphi 0, %s23
    %s24 = sphi 0, %s21
    %s25 = sphi 0, %s24
    %s41 = sphi 0, %s25
    %s45 = sphi 0, %s45
    %s47 = sphi 0, %s45
    %s48 = sphi 0, %s47
    %s62 = sphi 0, %s48
    %s66 = sphi 0, %s66
    %s68 = sphi 0, %s66
    %s69 = sphi 0, %s68
    %s83 = sphi 0, %s69
    %s87 = sphi 0, %s87
    %s89 = sphi 0, %s87
    %s90 = sphi 0, %s89
    %s104 = sphi 0, %s90
    %s108 = sphi 0, %s108
    %s110 = sphi 0, %s108
    %s111 = sphi 0, %s110
    %s125 = sphi 0, %s111
    %s131 = sphi 0, %s133
    %s134 = sphi 0, %s131
    %s135 = sphi 0, %s134
    %s151 = sphi 0, %s135
  $region4: #{decoder_block_v2.1} parent=0 // loop_header_branch
    %14 = sbr.rel (%p12) target = $region8
  $region5: #{decoder_block_v2.1} parent=0 // loop_body
    %s16 = ssub.s32 %s11, 1
    %s17 = ssub.s32 %s11, 2
    %s18 = sadd.s32 %s11, 1
    %s19 = ssub.s32 %s11, %s18
    %p20 = scmp.eq.s32.totalorder %s19, 0
    %s22 = sadd.s32 %s21, 1
    %s23 = scalar_select %p20, %s21, %s22
    %p26 = pneg %p20
    %p27 = scmp.eq.s32.totalorder %s11, 1
    %p28 = por %p26, %p27
    %p29 = scmp.ne.s32.totalorder %s21, %s24
    %p30 = scmp.eq.s32.totalorder %s11, 0
    %p31 = por %p29, %p30
    %p32 = scmp.ne.s32.totalorder %s21, %s24
    %p33 = scmp.eq.s32.totalorder %s16, 1
    %p34 = por %p32, %p33
    %p35 = scmp.ne.s32.totalorder %s24, %s25
    %p36 = scmp.eq.s32.totalorder %s16, 0
    %p37 = por %p35, %p36
    %p38 = scmp.ne.s32.totalorder %s24, %s25
    %p39 = scmp.eq.s32.totalorder %s17, 1
    %p40 = por %p38, %p39
    %p42 = scmp.ne.s32.totalorder %s25, %s41
    %p43 = scmp.eq.s32.totalorder %s17, 0
    %p44 = por %p42, %p43
    %s46 = sadd.s32 %s45, 1
    %p49 = scmp.eq.s32.totalorder %s11, 1
    %p50 = scmp.ne.s32.totalorder %s45, %s47
    %p51 = scmp.eq.s32.totalorder %s11, 0
    %p52 = por %p50, %p51
    %p53 = scmp.ne.s32.totalorder %s45, %s47
    %p54 = scmp.eq.s32.totalorder %s16, 1
    %p55 = por %p53, %p54
    %p56 = scmp.ne.s32.totalorder %s47, %s48
    %p57 = scmp.eq.s32.totalorder %s16, 0
    %p58 = por %p56, %p57
    %p59 = scmp.ne.s32.totalorder %s47, %s48
    %p60 = scmp.eq.s32.totalorder %s17, 1
    %p61 = por %p59, %p60
    %p63 = scmp.ne.s32.totalorder %s48, %s62
    %p64 = scmp.eq.s32.totalorder %s17, 0
    %p65 = por %p63, %p64
    %s67 = sadd.s32 %s66, 1
    %p70 = scmp.eq.s32.totalorder %s11, 1
    %p71 = scmp.ne.s32.totalorder %s66, %s68
    %p72 = scmp.eq.s32.totalorder %s11, 0
    %p73 = por %p71, %p72
    %p74 = scmp.ne.s32.totalorder %s66, %s68
    %p75 = scmp.eq.s32.totalorder %s16, 1
    %p76 = por %p74, %p75
    %p77 = scmp.ne.s32.totalorder %s68, %s69
    %p78 = scmp.eq.s32.totalorder %s16, 0
    %p79 = por %p77, %p78
    %p80 = scmp.ne.s32.totalorder %s68, %s69
    %p81 = scmp.eq.s32.totalorder %s17, 1
    %p82 = por %p80, %p81
    %p84 = scmp.ne.s32.totalorder %s69, %s83
    %p85 = scmp.eq.s32.totalorder %s17, 0
    %p86 = por %p84, %p85
    %s88 = sadd.s32 %s87, 1
    %p91 = scmp.eq.s32.totalorder %s11, 1
    %p92 = scmp.ne.s32.totalorder %s87, %s89
    %p93 = scmp.eq.s32.totalorder %s11, 0
    %p94 = por %p92, %p93
    %p95 = scmp.ne.s32.totalorder %s87, %s89
    %p96 = scmp.eq.s32.totalorder %s16, 1
    %p97 = por %p95, %p96
    %p98 = scmp.ne.s32.totalorder %s89, %s90
    %p99 = scmp.eq.s32.totalorder %s16, 0
    %p100 = por %p98, %p99
    %p101 = scmp.ne.s32.totalorder %s89, %s90
    %p102 = scmp.eq.s32.totalorder %s17, 1
    %p103 = por %p101, %p102
    %p105 = scmp.ne.s32.totalorder %s90, %s104
    %p106 = scmp.eq.s32.totalorder %s17, 0
    %p107 = por %p105, %p106
    %s109 = sadd.s32 %s108, 1
    %p112 = scmp.eq.s32.totalorder %s11, 1
    %p113 = scmp.ne.s32.totalorder %s108, %s110
    %p114 = scmp.eq.s32.totalorder %s11, 0
    %p115 = por %p113, %p114
    %p116 = scmp.ne.s32.totalorder %s108, %s110
    %p117 = scmp.eq.s32.totalorder %s16, 1
    %p118 = por %p116, %p117
    %p119 = scmp.ne.s32.totalorder %s110, %s111
    %p120 = scmp.eq.s32.totalorder %s16, 0
    %p121 = por %p119, %p120
    %p122 = scmp.ne.s32.totalorder %s110, %s111
    %p123 = scmp.eq.s32.totalorder %s17, 1
    %p124 = por %p122, %p123
    %p126 = scmp.ne.s32.totalorder %s111, %s125
    %p127 = scmp.eq.s32.totalorder %s17, 0
    %p128 = por %p126, %p127
    %s129 = ssub.s32 %s11, %s18
    %p130 = scmp.eq.s32.totalorder %s129, 0
    %s132 = sadd.s32 %s131, 1
    %s133 = scalar_select %p130, %s131, %s132
    %p136 = pneg %p130
    %p137 = scmp.eq.s32.totalorder %s11, 1
    %p138 = por %p136, %p137
    %p139 = scmp.ne.s32.totalorder %s131, %s134
    %p140 = scmp.eq.s32.totalorder %s11, 0
    %p141 = por %p139, %p140
    %p142 = scmp.ne.s32.totalorder %s131, %s134
    %p143 = scmp.eq.s32.totalorder %s16, 1
    %p144 = por %p142, %p143
    %p145 = scmp.ne.s32.totalorder %s134, %s135
    %p146 = scmp.eq.s32.totalorder %s16, 0
    %p147 = por %p145, %p146
    %p148 = scmp.ne.s32.totalorder %s134, %s135
    %p149 = scmp.eq.s32.totalorder %s17, 1
    %p150 = por %p148, %p149
    %p152 = scmp.ne.s32.totalorder %s135, %s151
    %p153 = scmp.eq.s32.totalorder %s17, 0
    %p154 = por %p152, %p153
    %p155 = scmp.le.s32.totalorder 1, %s11
    %p156 = scmp.lt.s32.totalorder %s11, 3
    %p157 = pnand %p155, %p156
    %p158 = pneg %p157
    // Predicated region
    $region9: #{decoder_block_v2.1} parent=5 // pred_check
      _
    $region10: #{decoder_block_v2.1} parent=5 // pred_check_branch
      %160 = sbr.rel (%p157) target = $region12
    $region11: #{decoder_block_v2.1} parent=5 // pred_region
      %s161 = ssub.s32 %s11, 1
      // Predicated region
      $region13: #{decoder_block_v2.1} parent=11 // pred_check
        %p162 = pneg %p58
      $region14: #{decoder_block_v2.1} parent=11 // pred_check_branch
        %164 = sbr.rel (%p162) target = $region16
      $region15: #{decoder_block_v2.1} parent=11 // pred_region
        _
      $region16: #{decoder_block_v2.1} parent=11 // pred_fallthru
        _
      // Predicated region
      $region17: #{decoder_block_v2.1} parent=11 // pred_check
        %p165 = pneg %p79
      $region18: #{decoder_block_v2.1} parent=11 // pred_check_branch
        %167 = sbr.rel (%p165) target = $region20
      $region19: #{decoder_block_v2.1} parent=11 // pred_region
        _
      $region20: #{decoder_block_v2.1} parent=11 // pred_fallthru
        _
      // Predicated region
      $region21: #{decoder_block_v2.1} parent=11 // pred_check
        %p168 = pneg %p100
      $region22: #{decoder_block_v2.1} parent=11 // pred_check_branch
        %170 = sbr.rel (%p168) target = $region24
      $region23: #{decoder_block_v2.1} parent=11 // pred_region
        _
      $region24: #{decoder_block_v2.1} parent=11 // pred_fallthru
        _
      // Predicated region
      $region25: #{decoder_block_v2.1} parent=11 // pred_check
        %p171 = pneg %p121
      $region26: #{decoder_block_v2.1} parent=11 // pred_check_branch
        %173 = sbr.rel (%p171) target = $region28
      $region27: #{decoder_block_v2.1} parent=11 // pred_region
        _
      $region28: #{decoder_block_v2.1} parent=11 // pred_fallthru
        _
    $region12: #{decoder_block_v2.1} parent=5 // pred_fallthru
      _
    %p174 = scmp.lt.s32.totalorder %s11, 2
    // Predicated region
    $region29: #{decoder_block_v2.1} parent=5 // pred_check
      %p175 = pneg %p174
    $region30: #{decoder_block_v2.1} parent=5 // pred_check_branch
      %177 = sbr.rel (%p175) target = $region32
    $region31: #{decoder_block_v2.1} parent=5 // pred_region
      // Predicated region
      $region33: #{decoder_block_v2.1} parent=31 // pred_check
        %p178 = pneg %p31
      $region34: #{decoder_block_v2.1} parent=31 // pred_check_branch
        %180 = sbr.rel (%p178) target = $region36
      $region35: #{decoder_block_v2.1} parent=31 // pred_region
        %p181 = scmp.lt.s32.totalorder %s11, 1
        %s182 = scalar_select %p181, %s11, 1
        %s183 = smul.addr %s182, 32
        %s184 = smul.addr %s183, 4
        %s185 = scalar_lea.vmem %s0, %s184
      $region36: #{decoder_block_v2.1} parent=31 // pred_fallthru
        _
    $region32: #{decoder_block_v2.1} parent=5 // pred_fallthru
      _
    %p186 = scmp.le.s32.totalorder 1, %s11
    %p187 = scmp.lt.s32.totalorder %s11, 3
    %p188 = pnand %p186, %p187
    %p189 = pneg %p188
    // Predicated region
    $region37: #{decoder_block_v2.1} parent=5 // pred_check
      _
    $region38: #{decoder_block_v2.1} parent=5 // pred_check_branch
      %191 = sbr.rel (%p188) target = $region40
    $region39: #{decoder_block_v2.1} parent=5 // pred_region
      %s192 = ssub.s32 %s11, 1
      %p193 = scmp.lt.s32.totalorder %s16, 1
      %s194 = scalar_select %p193, %s16, 1
      %s195 = smul.addr %s194, 32
      %s196 = smul.addr %s195, 4
      %s197 = scalar_lea.vmem %s0, %s196
      %p198 = pneg %p37
      %p199 = pneg %p34
      %p200 = pneg %p58
      %p201 = pneg %p55
      %p202 = pneg %p79
      %p203 = pneg %p76
      %p204 = pneg %p100
      %p205 = pneg %p97
      %p206 = pneg %p121
      %p207 = pneg %p118
      %p208 = pneg %p147
      %p209 = pneg %p144
      %p210 = scmp.lt.s32.totalorder %s16, 1
      %s211 = scalar_select %p210, %s16, 1
      %s212 = smul.addr %s211, 4
      %s213 = smul.addr %s212, 8
      %s214 = scalar_lea.vmem %s5, %s213
      %p215 = scmp.lt.s32.totalorder %s16, 1
      %s216 = scalar_select %p215, %s16, 1
      %s217 = smul.addr %s216, 32
      %s218 = smul.addr %s217, 4
      %s219 = scalar_lea.vmem %s0, %s218
      %p220 = scmp.lt.s32.totalorder %s16, 1
      %s221 = scalar_select %p220, %s16, 1
      %s222 = smul.addr %s221, 4
      %s223 = smul.addr %s222, 8
      %s224 = scalar_lea.vmem %s5, %s223
      %vm226 = vcmask 31744
      %227 = vst.msk [vmem:[#allocation2] sm:$0xff] %vm226, 0.0
      %228 = vst.msk [vmem:[#allocation2 + $0x8] sm:$0xff] %vm226, 0.0
      %vm229 = vcmask 25600
      %230 = vst.msk [vmem:[#allocation2 + $0x10] sm:$0x3] %vm229, 0.0
      %s231 = scalar_lea.vmem [#allocation2], 408
      %232 = vst.msk [vmem:[%s231] sm:$0xff] %vm226, 0.0
      %233 = vst.msk [vmem:[%s231 + $0x8] sm:$0xff] %vm226, 0.0
      %234 = vst.msk [vmem:[%s231 + $0x10] sm:$0x3] %vm229, 0.0
      %s235 = scalar_lea.vmem [#allocation2], 24
      %vm236 = vcmask 24576
      %237 = vst.msk [vmem:[%s235] sm:$0x1] %vm236, 0.0
      %238 = vst.msk [vmem:[%s235 + $0x18] sm:$0x1] %vm236, 0.0
      %239 = vst.msk [vmem:[%s235 + $0x30] sm:$0x1] %vm236, 0.0
      %240 = vst.msk [vmem:[%s235 + $0x48] sm:$0x1] %vm236, 0.0
      %241 = vst.msk [vmem:[%s235 + $0x60] sm:$0x1] %vm236, 0.0
      %242 = vst.msk [vmem:[%s235 + $0x78] sm:$0x1] %vm236, 0.0
      %243 = vst.msk [vmem:[%s235 + $0x90] sm:$0x1] %vm236, 0.0
      %244 = vst.msk [vmem:[%s235 + $0xa8] sm:$0x1] %vm236, 0.0
      %245 = vst.msk [vmem:[%s235 + $0xc0] sm:$0x1] %vm236, 0.0
      %246 = vst.msk [vmem:[%s235 + $0xd8] sm:$0x1] %vm236, 0.0
      %247 = vst.msk [vmem:[%s235 + $0xf0] sm:$0x1] %vm236, 0.0
      %248 = vst.msk [vmem:[%s235 + $0x108] sm:$0x1] %vm236, 0.0
      %249 = vst.msk [vmem:[%s235 + $0x120] sm:$0x1] %vm236, 0.0
      %250 = vst.msk [vmem:[%s235 + $0x138] sm:$0x1] %vm236, 0.0
      %251 = vst.msk [vmem:[%s235 + $0x150] sm:$0x1] %vm236, 0.0
      %252 = vst.msk [vmem:[%s235 + $0x168] sm:$0x1] %vm236, 0.0
      %253 = vst.msk [vmem:[%s235 + $0x11] sm:$0x1] %vm236, 0.0
      %254 = vst.msk [vmem:[%s235 + $0x29] sm:$0x1] %vm236, 0.0
      %255 = vst.msk [vmem:[%s235 + $0x41] sm:$0x1] %vm236, 0.0
      %256 = vst.msk [vmem:[%s235 + $0x59] sm:$0x1] %vm236, 0.0
      %257 = vst.msk [vmem:[%s235 + $0x71] sm:$0x1] %vm236, 0.0
      %258 = vst.msk [vmem:[%s235 + $0x89] sm:$0x1] %vm236, 0.0
      %259 = vst.msk [vmem:[%s235 + $0xa1] sm:$0x1] %vm236, 0.0
      %260 = vst.msk [vmem:[%s235 + $0xb9] sm:$0x1] %vm236, 0.0
      %261 = vst.msk [vmem:[%s235 + $0xd1] sm:$0x1] %vm236, 0.0
      %262 = vst.msk [vmem:[%s235 + $0xe9] sm:$0x1] %vm236, 0.0
      %263 = vst.msk [vmem:[%s235 + $0x101] sm:$0x1] %vm236, 0.0
      %264 = vst.msk [vmem:[%s235 + $0x119] sm:$0x1] %vm236, 0.0
      %265 = vst.msk [vmem:[%s235 + $0x131] sm:$0x1] %vm236, 0.0
      %266 = vst.msk [vmem:[%s235 + $0x149] sm:$0x1] %vm236, 0.0
      %267 = vst.msk [vmem:[%s235 + $0x161] sm:$0x1] %vm236, 0.0
      %268 = vst.msk [vmem:[%s235 + $0x179] sm:$0x1] %vm236, 0.0
      %v269 = vld [vmem:[%s219] sm:$0xf]
      %v270 = vld [vmem:[%s219 + $0x4] sm:$0xf]
      %v271 = vld [vmem:[%s219 + $0x8] sm:$0xf]
      %v272 = vld [vmem:[%s219 + $0xc] sm:$0xf]
      %v273 = vld [vmem:[%s219 + $0x10] sm:$0xf]
      %v274 = vld [vmem:[%s219 + $0x14] sm:$0xf]
      %v275 = vld [vmem:[%s219 + $0x18] sm:$0xf]
      %v276 = vld [vmem:[%s219 + $0x1c] sm:$0xf]
      %v277 = vld [vmem:[%s219 + $0x20] sm:$0xf]
      %v278 = vld [vmem:[%s219 + $0x24] sm:$0xf]
      %v279 = vld [vmem:[%s219 + $0x28] sm:$0xf]
      %v280 = vld [vmem:[%s219 + $0x2c] sm:$0xf]
      %v281 = vld [vmem:[%s219 + $0x30] sm:$0xf]
      %v282 = vld [vmem:[%s219 + $0x34] sm:$0xf]
      %v283 = vld [vmem:[%s219 + $0x38] sm:$0xf]
      %v284 = vld [vmem:[%s219 + $0x3c] sm:$0xf]
      %v285 = vld [vmem:[%s219 + $0x40] sm:$0xf]
      %v286 = vld [vmem:[%s219 + $0x44] sm:$0xf]
      %v287 = vld [vmem:[%s219 + $0x48] sm:$0xf]
      %v288 = vld [vmem:[%s219 + $0x4c] sm:$0xf]
      %v289 = vld [vmem:[%s219 + $0x50] sm:$0xf]
      %v290 = vld [vmem:[%s219 + $0x54] sm:$0xf]
      %v291 = vld [vmem:[%s219 + $0x58] sm:$0xf]
      %v292 = vld [vmem:[%s219 + $0x5c] sm:$0xf]
      %v293 = vld [vmem:[%s219 + $0x60] sm:$0xf]
      %v294 = vld [vmem:[%s219 + $0x64] sm:$0xf]
      %v295 = vld [vmem:[%s219 + $0x68] sm:$0xf]
      %v296 = vld [vmem:[%s219 + $0x6c] sm:$0xf]
      %v297 = vld [vmem:[%s219 + $0x70] sm:$0xf]
      %v298 = vld [vmem:[%s219 + $0x74] sm:$0xf]
      %v299 = vld [vmem:[%s219 + $0x78] sm:$0xf]
      %v300 = vld [vmem:[%s219 + $0x7c] sm:$0xf]
      %v301 = vunpack.c.l.bf16 %v269
      %v302 = vunpack.c.l.bf16 %v270
      %v303 = vunpack.c.l.bf16 %v271
      %v304 = vunpack.c.l.bf16 %v272
      %v305 = vunpack.c.l.bf16 %v273
      %v306 = vunpack.c.l.bf16 %v274
      %v307 = vunpack.c.l.bf16 %v275
      %v308 = vunpack.c.l.bf16 %v276
      %v309 = vunpack.c.l.bf16 %v277
      %v310 = vunpack.c.l.bf16 %v278
      %v311 = vunpack.c.l.bf16 %v279
      %v312 = vunpack.c.l.bf16 %v280
      %v313 = vunpack.c.l.bf16 %v281
      %v314 = vunpack.c.l.bf16 %v282
      %v315 = vunpack.c.l.bf16 %v283
      %v316 = vunpack.c.l.bf16 %v284
      %v317 = vunpack.c.l.bf16 %v285
      %v318 = vunpack.c.l.bf16 %v286
      %v319 = vunpack.c.l.bf16 %v287
      %v320 = vunpack.c.l.bf16 %v288
      %v321 = vunpack.c.l.bf16 %v289
      %v322 = vunpack.c.l.bf16 %v290
      %v323 = vunpack.c.l.bf16 %v291
      %v324 = vunpack.c.l.bf16 %v292
      %v325 = vunpack.c.l.bf16 %v293
      %v326 = vunpack.c.l.bf16 %v294
      %v327 = vunpack.c.l.bf16 %v295
      %v328 = vunpack.c.l.bf16 %v296
      %v329 = vunpack.c.l.bf16 %v297
      %v330 = vunpack.c.l.bf16 %v298
      %v331 = vunpack.c.l.bf16 %v299
      %v332 = vunpack.c.l.bf16 %v300
      %333 = vst.msk [vmem:[%s235 + $0x1] sm:$0xff] %vm226, %v301
      %334 = vst.msk [vmem:[%s235 + $0x9] sm:$0xff] %vm226, %v302
      %335 = vst.msk [vmem:[%s235 + $0x19] sm:$0xff] %vm226, %v303
      %336 = vst.msk [vmem:[%s235 + $0x21] sm:$0xff] %vm226, %v304
      %337 = vst.msk [vmem:[%s235 + $0x31] sm:$0xff] %vm226, %v305
      %338 = vst.msk [vmem:[%s235 + $0x39] sm:$0xff] %vm226, %v306
      %339 = vst.msk [vmem:[%s235 + $0x49] sm:$0xff] %vm226, %v307
      %340 = vst.msk [vmem:[%s235 + $0x51] sm:$0xff] %vm226, %v308
      %341 = vst.msk [vmem:[%s235 + $0x61] sm:$0xff] %vm226, %v309
      %342 = vst.msk [vmem:[%s235 + $0x69] sm:$0xff] %vm226, %v310
      %343 = vst.msk [vmem:[%s235 + $0x79] sm:$0xff] %vm226, %v311
      %344 = vst.msk [vmem:[%s235 + $0x81] sm:$0xff] %vm226, %v312
      %345 = vst.msk [vmem:[%s235 + $0x91] sm:$0xff] %vm226, %v313
      %346 = vst.msk [vmem:[%s235 + $0x99] sm:$0xff] %vm226, %v314
      %347 = vst.msk [vmem:[%s235 + $0xa9] sm:$0xff] %vm226, %v315
      %348 = vst.msk [vmem:[%s235 + $0xb1] sm:$0xff] %vm226, %v316
      %349 = vst.msk [vmem:[%s235 + $0xc1] sm:$0xff] %vm226, %v317
      %350 = vst.msk [vmem:[%s235 + $0xc9] sm:$0xff] %vm226, %v318
      %351 = vst.msk [vmem:[%s235 + $0xd9] sm:$0xff] %vm226, %v319
      %352 = vst.msk [vmem:[%s235 + $0xe1] sm:$0xff] %vm226, %v320
      %353 = vst.msk [vmem:[%s235 + $0xf1] sm:$0xff] %vm226, %v321
      %354 = vst.msk [vmem:[%s235 + $0xf9] sm:$0xff] %vm226, %v322
      %355 = vst.msk [vmem:[%s235 + $0x109] sm:$0xff] %vm226, %v323
      %356 = vst.msk [vmem:[%s235 + $0x111] sm:$0xff] %vm226, %v324
      %357 = vst.msk [vmem:[%s235 + $0x121] sm:$0xff] %vm226, %v325
      %358 = vst.msk [vmem:[%s235 + $0x129] sm:$0xff] %vm226, %v326
      %359 = vst.msk [vmem:[%s235 + $0x139] sm:$0xff] %vm226, %v327
      %360 = vst.msk [vmem:[%s235 + $0x141] sm:$0xff] %vm226, %v328
      %361 = vst.msk [vmem:[%s235 + $0x151] sm:$0xff] %vm226, %v329
      %362 = vst.msk [vmem:[%s235 + $0x159] sm:$0xff] %vm226, %v330
      %363 = vst.msk [vmem:[%s235 + $0x169] sm:$0xff] %vm226, %v331
      %364 = vst.msk [vmem:[%s235 + $0x171] sm:$0xff] %vm226, %v332
      %v365 = vld [vmem:[#allocation2] sm:$0xff]
      %v366 = vld [vmem:[#allocation2 + $0x8] sm:$0xff]
      %v367 = vld [vmem:[#allocation2 + $0x18] sm:$0xff]
      %v368 = vld [vmem:[#allocation2 + $0x20] sm:$0xff]
      %v369 = vld [vmem:[#allocation2 + $0x30] sm:$0xff]
      %v370 = vld [vmem:[#allocation2 + $0x38] sm:$0xff]
      %v371 = vld [vmem:[#allocation2 + $0x48] sm:$0xff]
      %v372 = vld [vmem:[#allocation2 + $0x50] sm:$0xff]
      %v373 = vld [vmem:[#allocation2 + $0x60] sm:$0xff]
      %v374 = vld [vmem:[#allocation2 + $0x68] sm:$0xff]
      %v375 = vld [vmem:[#allocation2 + $0x78] sm:$0xff]
      %v376 = vld [vmem:[#allocation2 + $0x80] sm:$0xff]
      %v377 = vld [vmem:[#allocation2 + $0x90] sm:$0xff]
      %v378 = vld [vmem:[#allocation2 + $0x98] sm:$0xff]
      %v379 = vld [vmem:[#allocation2 + $0xa8] sm:$0xff]
      %v380 = vld [vmem:[#allocation2 + $0xb0] sm:$0xff]
      %v381 = vld [vmem:[#allocation2 + $0xc0] sm:$0xff]
      %v382 = vld [vmem:[#allocation2 + $0xc8] sm:$0xff]
      %v383 = vld [vmem:[#allocation2 + $0xd8] sm:$0xff]
      %v384 = vld [vmem:[#allocation2 + $0xe0] sm:$0xff]
      %v385 = vld [vmem:[#allocation2 + $0xf0] sm:$0xff]
      %v386 = vld [vmem:[#allocation2 + $0xf8] sm:$0xff]
      %v387 = vld [vmem:[#allocation2 + $0x108] sm:$0xff]
      %v388 = vld [vmem:[#allocation2 + $0x110] sm:$0xff]
      %v389 = vld [vmem:[#allocation2 + $0x120] sm:$0xff]
      %v390 = vld [vmem:[#allocation2 + $0x128] sm:$0xff]
      %v391 = vld [vmem:[#allocation2 + $0x138] sm:$0xff]
      %v392 = vld [vmem:[#allocation2 + $0x140] sm:$0xff]
      %v393 = vld [vmem:[#allocation2 + $0x150] sm:$0xff]
      %v394 = vld [vmem:[#allocation2 + $0x158] sm:$0xff]
      %v395 = vld [vmem:[#allocation2 + $0x168] sm:$0xff]
      %v396 = vld [vmem:[#allocation2 + $0x170] sm:$0xff]
      %v397 = vpack.c.bf16 %v366, %v365
      %v398 = vpack.c.bf16 %v368, %v367
      %v399 = vpack.c.bf16 %v370, %v369
      %v400 = vpack.c.bf16 %v372, %v371
      %v401 = vpack.c.bf16 %v374, %v373
      %v402 = vpack.c.bf16 %v376, %v375
      %v403 = vpack.c.bf16 %v378, %v377
      %v404 = vpack.c.bf16 %v380, %v379
      %v405 = vpack.c.bf16 %v382, %v381
      %v406 = vpack.c.bf16 %v384, %v383
      %v407 = vpack.c.bf16 %v386, %v385
      %v408 = vpack.c.bf16 %v388, %v387
      %v409 = vpack.c.bf16 %v390, %v389
      %v410 = vpack.c.bf16 %v392, %v391
      %v411 = vpack.c.bf16 %v394, %v393
      %v412 = vpack.c.bf16 %v396, %v395
      %413 = vst.msk [vmem:[#allocation3] sm:$0xff] %vm226, %v397
      %414 = vst.msk [vmem:[#allocation3 + $0x8] sm:$0xff] %vm226, %v398
      %415 = vst.msk [vmem:[#allocation3 + $0x10] sm:$0xff] %vm226, %v399
      %416 = vst.msk [vmem:[#allocation3 + $0x18] sm:$0xff] %vm226, %v400
      %417 = vst.msk [vmem:[#allocation3 + $0x20] sm:$0xff] %vm226, %v401
      %418 = vst.msk [vmem:[#allocation3 + $0x28] sm:$0xff] %vm226, %v402
      %419 = vst.msk [vmem:[#allocation3 + $0x30] sm:$0xff] %vm226, %v403
      %420 = vst.msk [vmem:[#allocation3 + $0x38] sm:$0xff] %vm226, %v404
      %421 = vst.msk [vmem:[#allocation3 + $0x40] sm:$0xff] %vm226, %v405
      %422 = vst.msk [vmem:[#allocation3 + $0x48] sm:$0xff] %vm226, %v406
      %423 = vst.msk [vmem:[#allocation3 + $0x50] sm:$0xff] %vm226, %v407
      %424 = vst.msk [vmem:[#allocation3 + $0x58] sm:$0xff] %vm226, %v408
      %425 = vst.msk [vmem:[#allocation3 + $0x60] sm:$0xff] %vm226, %v409
      %426 = vst.msk [vmem:[#allocation3 + $0x68] sm:$0xff] %vm226, %v410
      %427 = vst.msk [vmem:[#allocation3 + $0x70] sm:$0xff] %vm226, %v411
      %428 = vst.msk [vmem:[#allocation3 + $0x78] sm:$0xff] %vm226, %v412
      %v429 = vld [vmem:[#allocation2 + $0x1] sm:$0xff]
      %v430 = vld [vmem:[#allocation2 + $0x9] sm:$0xff]
      %v431 = vld [vmem:[#allocation2 + $0x19] sm:$0xff]
      %v432 = vld [vmem:[#allocation2 + $0x21] sm:$0xff]
      %v433 = vld [vmem:[#allocation2 + $0x31] sm:$0xff]
      %v434 = vld [vmem:[#allocation2 + $0x39] sm:$0xff]
      %v435 = vld [vmem:[#allocation2 + $0x49] sm:$0xff]
      %v436 = vld [vmem:[#allocation2 + $0x51] sm:$0xff]
      %v437 = vld [vmem:[#allocation2 + $0x61] sm:$0xff]
      %v438 = vld [vmem:[#allocation2 + $0x69] sm:$0xff]
      %v439 = vld [vmem:[#allocation2 + $0x79] sm:$0xff]
      %v440 = vld [vmem:[#allocation2 + $0x81] sm:$0xff]
      %v441 = vld [vmem:[#allocation2 + $0x91] sm:$0xff]
      %v442 = vld [vmem:[#allocation2 + $0x99] sm:$0xff]
      %v443 = vld [vmem:[#allocation2 + $0xa9] sm:$0xff]
      %v444 = vld [vmem:[#allocation2 + $0xb1] sm:$0xff]
      %v445 = vld [vmem:[#allocation2 + $0xc1] sm:$0xff]
      %v446 = vld [vmem:[#allocation2 + $0xc9] sm:$0xff]
      %v447 = vld [vmem:[#allocation2 + $0xd9] sm:$0xff]
      %v448 = vld [vmem:[#allocation2 + $0xe1] sm:$0xff]
      %v449 = vld [vmem:[#allocation2 + $0xf1] sm:$0xff]
      %v450 = vld [vmem:[#allocation2 + $0xf9] sm:$0xff]
      %v451 = vld [vmem:[#allocation2 + $0x109] sm:$0xff]
      %v452 = vld [vmem:[#allocation2 + $0x111] sm:$0xff]
      %v453 = vld [vmem:[#allocation2 + $0x121] sm:$0xff]
      %v454 = vld [vmem:[#allocation2 + $0x129] sm:$0xff]
      %v455 = vld [vmem:[#allocation2 + $0x139] sm:$0xff]
      %v456 = vld [vmem:[#allocation2 + $0x141] sm:$0xff]
      %v457 = vld [vmem:[#allocation2 + $0x151] sm:$0xff]
      %v458 = vld [vmem:[#allocation2 + $0x159] sm:$0xff]
      %v459 = vld [vmem:[#allocation2 + $0x169] sm:$0xff]
      %v460 = vld [vmem:[#allocation2 + $0x171] sm:$0xff]
      %v461 = vpack.c.bf16 %v430, %v429
      %v462 = vpack.c.bf16 %v432, %v431
      %v463 = vpack.c.bf16 %v434, %v433
      %v464 = vpack.c.bf16 %v436, %v435
      %v465 = vpack.c.bf16 %v438, %v437
      %v466 = vpack.c.bf16 %v440, %v439
      %v467 = vpack.c.bf16 %v442, %v441
      %v468 = vpack.c.bf16 %v444, %v443
      %v469 = vpack.c.bf16 %v446, %v445
      %v470 = vpack.c.bf16 %v448, %v447
      %v471 = vpack.c.bf16 %v450, %v449
      %v472 = vpack.c.bf16 %v452, %v451
      %v473 = vpack.c.bf16 %v454, %v453
      %v474 = vpack.c.bf16 %v456, %v455
      %v475 = vpack.c.bf16 %v458, %v457
      %v476 = vpack.c.bf16 %v460, %v459
      %493 = vrot.lane.b32.xlu0 %v461, 4
      %v494 = vpop.permute.xlu0 %493
      %495 = vrot.lane.b32.xlu0 %v462, 4
      %v496 = vpop.permute.xlu0 %495
      %497 = vrot.lane.b32.xlu0 %v463, 4
      %v498 = vpop.permute.xlu0 %497
      %499 = vrot.lane.b32.xlu0 %v464, 4
      %v500 = vpop.permute.xlu0 %499
      %501 = vrot.lane.b32.xlu0 %v465, 4
      %v502 = vpop.permute.xlu0 %501
      %503 = vrot.lane.b32.xlu0 %v466, 4
      %v504 = vpop.permute.xlu0 %503
      %505 = vrot.lane.b32.xlu0 %v467, 4
      %v506 = vpop.permute.xlu0 %505
      %507 = vrot.lane.b32.xlu0 %v468, 4
      %v508 = vpop.permute.xlu0 %507
      %509 = vrot.lane.b32.xlu0 %v469, 4
      %v510 = vpop.permute.xlu0 %509
      %511 = vrot.lane.b32.xlu0 %v470, 4
      %v512 = vpop.permute.xlu0 %511
      %513 = vrot.lane.b32.xlu0 %v471, 4
      %v514 = vpop.permute.xlu0 %513
      %515 = vrot.lane.b32.xlu0 %v472, 4
      %v516 = vpop.permute.xlu0 %515
      %517 = vrot.lane.b32.xlu0 %v473, 4
      %v518 = vpop.permute.xlu0 %517
      %519 = vrot.lane.b32.xlu0 %v474, 4
      %v520 = vpop.permute.xlu0 %519
      %521 = vrot.lane.b32.xlu0 %v475, 4
      %v522 = vpop.permute.xlu0 %521
      %523 = vrot.lane.b32.xlu0 %v476, 4
      %v524 = vpop.permute.xlu0 %523
      %vm541 = vcmask 64544
      %542 = vst.msk [vmem:[#allocation3] sm:$0xff] %vm541, %v494
      %543 = vst.msk [vmem:[#allocation3 + $0x8] sm:$0xff] %vm541, %v496
      %544 = vst.msk [vmem:[#allocation3 + $0x10] sm:$0xff] %vm541, %v498
      %545 = vst.msk [vmem:[#allocation3 + $0x18] sm:$0xff] %vm541, %v500
      %546 = vst.msk [vmem:[#allocation3 + $0x20] sm:$0xff] %vm541, %v502
      %547 = vst.msk [vmem:[#allocation3 + $0x28] sm:$0xff] %vm541, %v504
      %548 = vst.msk [vmem:[#allocation3 + $0x30] sm:$0xff] %vm541, %v506
      %549 = vst.msk [vmem:[#allocation3 + $0x38] sm:$0xff] %vm541, %v508
      %550 = vst.msk [vmem:[#allocation3 + $0x40] sm:$0xff] %vm541, %v510
      %551 = vst.msk [vmem:[#allocation3 + $0x48] sm:$0xff] %vm541, %v512
      %552 = vst.msk [vmem:[#allocation3 + $0x50] sm:$0xff] %vm541, %v514
      %553 = vst.msk [vmem:[#allocation3 + $0x58] sm:$0xff] %vm541, %v516
      %554 = vst.msk [vmem:[#allocation3 + $0x60] sm:$0xff] %vm541, %v518
      %555 = vst.msk [vmem:[#allocation3 + $0x68] sm:$0xff] %vm541, %v520
      %556 = vst.msk [vmem:[#allocation3 + $0x70] sm:$0xff] %vm541, %v522
      %557 = vst.msk [vmem:[#allocation3 + $0x78] sm:$0xff] %vm541, %v524
      %v558 = vld [vmem:[#allocation2 + $0x2] sm:$0xff]
      %v559 = vld [vmem:[#allocation2 + $0xa] sm:$0xff]
      %v560 = vld [vmem:[#allocation2 + $0x1a] sm:$0xff]
      %v561 = vld [vmem:[#allocation2 + $0x22] sm:$0xff]
      %v562 = vld [vmem:[#allocation2 + $0x32] sm:$0xff]
      %v563 = vld [vmem:[#allocation2 + $0x3a] sm:$0xff]
      %v564 = vld [vmem:[#allocation2 + $0x4a] sm:$0xff]
      %v565 = vld [vmem:[#allocation2 + $0x52] sm:$0xff]
      %v566 = vld [vmem:[#allocation2 + $0x62] sm:$0xff]
      %v567 = vld [vmem:[#allocation2 + $0x6a] sm:$0xff]
      %v568 = vld [vmem:[#allocation2 + $0x7a] sm:$0xff]
      %v569 = vld [vmem:[#allocation2 + $0x82] sm:$0xff]
      %v570 = vld [vmem:[#allocation2 + $0x92] sm:$0xff]
      %v571 = vld [vmem:[#allocation2 + $0x9a] sm:$0xff]
      %v572 = vld [vmem:[#allocation2 + $0xaa] sm:$0xff]
      %v573 = vld [vmem:[#allocation2 + $0xb2] sm:$0xff]
      %v574 = vld [vmem:[#allocation2 + $0xc2] sm:$0xff]
      %v575 = vld [vmem:[#allocation2 + $0xca] sm:$0xff]
      %v576 = vld [vmem:[#allocation2 + $0xda] sm:$0xff]
      %v577 = vld [vmem:[#allocation2 + $0xe2] sm:$0xff]
      %v578 = vld [vmem:[#allocation2 + $0xf2] sm:$0xff]
      %v579 = vld [vmem:[#allocation2 + $0xfa] sm:$0xff]
      %v580 = vld [vmem:[#allocation2 + $0x10a] sm:$0xff]
      %v581 = vld [vmem:[#allocation2 + $0x112] sm:$0xff]
      %v582 = vld [vmem:[#allocation2 + $0x122] sm:$0xff]
      %v583 = vld [vmem:[#allocation2 + $0x12a] sm:$0xff]
      %v584 = vld [vmem:[#allocation2 + $0x13a] sm:$0xff]
      %v585 = vld [vmem:[#allocation2 + $0x142] sm:$0xff]
      %v586 = vld [vmem:[#allocation2 + $0x152] sm:$0xff]
      %v587 = vld [vmem:[#allocation2 + $0x15a] sm:$0xff]
      %v588 = vld [vmem:[#allocation2 + $0x16a] sm:$0xff]
      %v589 = vld [vmem:[#allocation2 + $0x172] sm:$0xff]
      %v590 = vpack.c.bf16 %v559, %v558
      %v591 = vpack.c.bf16 %v561, %v560
      %v592 = vpack.c.bf16 %v563, %v562
      %v593 = vpack.c.bf16 %v565, %v564
      %v594 = vpack.c.bf16 %v567, %v566
      %v595 = vpack.c.bf16 %v569, %v568
      %v596 = vpack.c.bf16 %v571, %v570
      %v597 = vpack.c.bf16 %v573, %v572
      %v598 = vpack.c.bf16 %v575, %v574
      %v599 = vpack.c.bf16 %v577, %v576
      %v600 = vpack.c.bf16 %v579, %v578
      %v601 = vpack.c.bf16 %v581, %v580
      %v602 = vpack.c.bf16 %v583, %v582
      %v603 = vpack.c.bf16 %v585, %v584
      %v604 = vpack.c.bf16 %v587, %v586
      %v605 = vpack.c.bf16 %v589, %v588
      %622 = vrot.lane.b32.xlu0 %v590, 8
      %v623 = vpop.permute.xlu0 %622
      %624 = vrot.lane.b32.xlu0 %v591, 8
      %v625 = vpop.permute.xlu0 %624
      %626 = vrot.lane.b32.xlu0 %v592, 8
      %v627 = vpop.permute.xlu0 %626
      %628 = vrot.lane.b32.xlu0 %v593, 8
      %v629 = vpop.permute.xlu0 %628
      %630 = vrot.lane.b32.xlu0 %v594, 8
      %v631 = vpop.permute.xlu0 %630
      %632 = vrot.lane.b32.xlu0 %v595, 8
      %v633 = vpop.permute.xlu0 %632
      %634 = vrot.lane.b32.xlu0 %v596, 8
      %v635 = vpop.permute.xlu0 %634
      %636 = vrot.lane.b32.xlu0 %v597, 8
      %v637 = vpop.permute.xlu0 %636
      %638 = vrot.lane.b32.xlu0 %v598, 8
      %v639 = vpop.permute.xlu0 %638
      %640 = vrot.lane.b32.xlu0 %v599, 8
      %v641 = vpop.permute.xlu0 %640
      %642 = vrot.lane.b32.xlu0 %v600, 8
      %v643 = vpop.permute.xlu0 %642
      %644 = vrot.lane.b32.xlu0 %v601, 8
      %v645 = vpop.permute.xlu0 %644
      %646 = vrot.lane.b32.xlu0 %v602, 8
      %v647 = vpop.permute.xlu0 %646
      %648 = vrot.lane.b32.xlu0 %v603, 8
      %v649 = vpop.permute.xlu0 %648
      %650 = vrot.lane.b32.xlu0 %v604, 8
      %v651 = vpop.permute.xlu0 %650
      %652 = vrot.lane.b32.xlu0 %v605, 8
      %v653 = vpop.permute.xlu0 %652
      %vm670 = vcmask 97344
      %671 = vst.msk [vmem:[#allocation3] sm:$0xff] %vm670, %v623
      %672 = vst.msk [vmem:[#allocation3 + $0x8] sm:$0xff] %vm670, %v625
      %673 = vst.msk [vmem:[#allocation3 + $0x10] sm:$0xff] %vm670, %v627
      %674 = vst.msk [vmem:[#allocation3 + $0x18] sm:$0xff] %vm670, %v629
      %675 = vst.msk [vmem:[#allocation3 + $0x20] sm:$0xff] %vm670, %v631
      %676 = vst.msk [vmem:[#allocation3 + $0x28] sm:$0xff] %vm670, %v633
      %677 = vst.msk [vmem:[#allocation3 + $0x30] sm:$0xff] %vm670, %v635
      %678 = vst.msk [vmem:[#allocation3 + $0x38] sm:$0xff] %vm670, %v637
      %679 = vst.msk [vmem:[#allocation3 + $0x40] sm:$0xff] %vm670, %v639
      %680 = vst.msk [vmem:[#allocation3 + $0x48] sm:$0xff] %vm670, %v641
      %681 = vst.msk [vmem:[#allocation3 + $0x50] sm:$0xff] %vm670, %v643
      %682 = vst.msk [vmem:[#allocation3 + $0x58] sm:$0xff] %vm670, %v645
      %683 = vst.msk [vmem:[#allocation3 + $0x60] sm:$0xff] %vm670, %v647
      %684 = vst.msk [vmem:[#allocation3 + $0x68] sm:$0xff] %vm670, %v649
      %685 = vst.msk [vmem:[#allocation3 + $0x70] sm:$0xff] %vm670, %v651
      %686 = vst.msk [vmem:[#allocation3 + $0x78] sm:$0xff] %vm670, %v653
      %v687 = vld [vmem:[%s235] sm:$0xff]
      %v688 = vld [vmem:[%s235 + $0x8] sm:$0xff]
      %v689 = vld [vmem:[%s235 + $0x18] sm:$0xff]
      %v690 = vld [vmem:[%s235 + $0x20] sm:$0xff]
      %v691 = vld [vmem:[%s235 + $0x30] sm:$0xff]
      %v692 = vld [vmem:[%s235 + $0x38] sm:$0xff]
      %v693 = vld [vmem:[%s235 + $0x48] sm:$0xff]
      %v694 = vld [vmem:[%s235 + $0x50] sm:$0xff]
      %v695 = vld [vmem:[%s235 + $0x60] sm:$0xff]
      %v696 = vld [vmem:[%s235 + $0x68] sm:$0xff]
      %v697 = vld [vmem:[%s235 + $0x78] sm:$0xff]
      %v698 = vld [vmem:[%s235 + $0x80] sm:$0xff]
      %v699 = vld [vmem:[%s235 + $0x90] sm:$0xff]
      %v700 = vld [vmem:[%s235 + $0x98] sm:$0xff]
      %v701 = vld [vmem:[%s235 + $0xa8] sm:$0xff]
      %v702 = vld [vmem:[%s235 + $0xb0] sm:$0xff]
      %v703 = vld [vmem:[%s235 + $0xc0] sm:$0xff]
      %v704 = vld [vmem:[%s235 + $0xc8] sm:$0xff]
      %v705 = vld [vmem:[%s235 + $0xd8] sm:$0xff]
      %v706 = vld [vmem:[%s235 + $0xe0] sm:$0xff]
      %v707 = vld [vmem:[%s235 + $0xf0] sm:$0xff]
      %v708 = vld [vmem:[%s235 + $0xf8] sm:$0xff]
      %v709 = vld [vmem:[%s235 + $0x108] sm:$0xff]
      %v710 = vld [vmem:[%s235 + $0x110] sm:$0xff]
      %v711 = vld [vmem:[%s235 + $0x120] sm:$0xff]
      %v712 = vld [vmem:[%s235 + $0x128] sm:$0xff]
      %v713 = vld [vmem:[%s235 + $0x138] sm:$0xff]
      %v714 = vld [vmem:[%s235 + $0x140] sm:$0xff]
      %v715 = vld [vmem:[%s235 + $0x150] sm:$0xff]
      %v716 = vld [vmem:[%s235 + $0x158] sm:$0xff]
      %v717 = vld [vmem:[%s235 + $0x168] sm:$0xff]
      %v718 = vld [vmem:[%s235 + $0x170] sm:$0xff]
      %v719 = vpack.c.bf16 %v688, %v687
      %v720 = vpack.c.bf16 %v690, %v689
      %v721 = vpack.c.bf16 %v692, %v691
      %v722 = vpack.c.bf16 %v694, %v693
      %v723 = vpack.c.bf16 %v696, %v695
      %v724 = vpack.c.bf16 %v698, %v697
      %v725 = vpack.c.bf16 %v700, %v699
      %v726 = vpack.c.bf16 %v702, %v701
      %v727 = vpack.c.bf16 %v704, %v703
      %v728 = vpack.c.bf16 %v706, %v705
      %v729 = vpack.c.bf16 %v708, %v707
      %v730 = vpack.c.bf16 %v710, %v709
      %v731 = vpack.c.bf16 %v712, %v711
      %v732 = vpack.c.bf16 %v714, %v713
      %v733 = vpack.c.bf16 %v716, %v715
      %v734 = vpack.c.bf16 %v718, %v717
      %751 = vrot.lane.b32.xlu0 %v719, 12
      %v752 = vpop.permute.xlu0 %751
      %753 = vrot.lane.b32.xlu0 %v720, 12
      %v754 = vpop.permute.xlu0 %753
      %755 = vrot.lane.b32.xlu0 %v721, 12
      %v756 = vpop.permute.xlu0 %755
      %757 = vrot.lane.b32.xlu0 %v722, 12
      %v758 = vpop.permute.xlu0 %757
      %759 = vrot.lane.b32.xlu0 %v723, 12
      %v760 = vpop.permute.xlu0 %759
      %761 = vrot.lane.b32.xlu0 %v724, 12
      %v762 = vpop.permute.xlu0 %761
      %763 = vrot.lane.b32.xlu0 %v725, 12
      %v764 = vpop.permute.xlu0 %763
      %765 = vrot.lane.b32.xlu0 %v726, 12
      %v766 = vpop.permute.xlu0 %765
      %767 = vrot.lane.b32.xlu0 %v727, 12
      %v768 = vpop.permute.xlu0 %767
      %769 = vrot.lane.b32.xlu0 %v728, 12
      %v770 = vpop.permute.xlu0 %769
      %771 = vrot.lane.b32.xlu0 %v729, 12
      %v772 = vpop.permute.xlu0 %771
      %773 = vrot.lane.b32.xlu0 %v730, 12
      %v774 = vpop.permute.xlu0 %773
      %775 = vrot.lane.b32.xlu0 %v731, 12
      %v776 = vpop.permute.xlu0 %775
      %777 = vrot.lane.b32.xlu0 %v732, 12
      %v778 = vpop.permute.xlu0 %777
      %779 = vrot.lane.b32.xlu0 %v733, 12
      %v780 = vpop.permute.xlu0 %779
      %781 = vrot.lane.b32.xlu0 %v734, 12
      %v782 = vpop.permute.xlu0 %781
      %vm799 = vcmask 130144
      %800 = vst.msk [vmem:[#allocation3] sm:$0xff] %vm799, %v752
      %801 = vst.msk [vmem:[#allocation3 + $0x8] sm:$0xff] %vm799, %v754
      %802 = vst.msk [vmem:[#allocation3 + $0x10] sm:$0xff] %vm799, %v756
      %803 = vst.msk [vmem:[#allocation3 + $0x18] sm:$0xff] %vm799, %v758
      %804 = vst.msk [vmem:[#allocation3 + $0x20] sm:$0xff] %vm799, %v760
      %805 = vst.msk [vmem:[#allocation3 + $0x28] sm:$0xff] %vm799, %v762
      %806 = vst.msk [vmem:[#allocation3 + $0x30] sm:$0xff] %vm799, %v764
      %807 = vst.msk [vmem:[#allocation3 + $0x38] sm:$0xff] %vm799, %v766
      %808 = vst.msk [vmem:[#allocation3 + $0x40] sm:$0xff] %vm799, %v768
      %809 = vst.msk [vmem:[#allocation3 + $0x48] sm:$0xff] %vm799, %v770
      %810 = vst.msk [vmem:[#allocation3 + $0x50] sm:$0xff] %vm799, %v772
      %811 = vst.msk [vmem:[#allocation3 + $0x58] sm:$0xff] %vm799, %v774
      %812 = vst.msk [vmem:[#allocation3 + $0x60] sm:$0xff] %vm799, %v776
      %813 = vst.msk [vmem:[#allocation3 + $0x68] sm:$0xff] %vm799, %v778
      %814 = vst.msk [vmem:[#allocation3 + $0x70] sm:$0xff] %vm799, %v780
      %815 = vst.msk [vmem:[#allocation3 + $0x78] sm:$0xff] %vm799, %v782
      %v816 = vld [vmem:[%s235 + $0x1] sm:$0xff]
      %v817 = vld [vmem:[%s235 + $0x9] sm:$0xff]
      %v818 = vld [vmem:[%s235 + $0x19] sm:$0xff]
      %v819 = vld [vmem:[%s235 + $0x21] sm:$0xff]
      %v820 = vld [vmem:[%s235 + $0x31] sm:$0xff]
      %v821 = vld [vmem:[%s235 + $0x39] sm:$0xff]
      %v822 = vld [vmem:[%s235 + $0x49] sm:$0xff]
      %v823 = vld [vmem:[%s235 + $0x51] sm:$0xff]
      %v824 = vld [vmem:[%s235 + $0x61] sm:$0xff]
      %v825 = vld [vmem:[%s235 + $0x69] sm:$0xff]
      %v826 = vld [vmem:[%s235 + $0x79] sm:$0xff]
      %v827 = vld [vmem:[%s235 + $0x81] sm:$0xff]
      %v828 = vld [vmem:[%s235 + $0x91] sm:$0xff]
      %v829 = vld [vmem:[%s235 + $0x99] sm:$0xff]
      %v830 = vld [vmem:[%s235 + $0xa9] sm:$0xff]
      %v831 = vld [vmem:[%s235 + $0xb1] sm:$0xff]
      %v832 = vld [vmem:[%s235 + $0xc1] sm:$0xff]
      %v833 = vld [vmem:[%s235 + $0xc9] sm:$0xff]
      %v834 = vld [vmem:[%s235 + $0xd9] sm:$0xff]
      %v835 = vld [vmem:[%s235 + $0xe1] sm:$0xff]
      %v836 = vld [vmem:[%s235 + $0xf1] sm:$0xff]
      %v837 = vld [vmem:[%s235 + $0xf9] sm:$0xff]
      %v838 = vld [vmem:[%s235 + $0x109] sm:$0xff]
      %v839 = vld [vmem:[%s235 + $0x111] sm:$0xff]
      %v840 = vld [vmem:[%s235 + $0x121] sm:$0xff]
      %v841 = vld [vmem:[%s235 + $0x129] sm:$0xff]
      %v842 = vld [vmem:[%s235 + $0x139] sm:$0xff]
      %v843 = vld [vmem:[%s235 + $0x141] sm:$0xff]
      %v844 = vld [vmem:[%s235 + $0x151] sm:$0xff]
      %v845 = vld [vmem:[%s235 + $0x159] sm:$0xff]
      %v846 = vld [vmem:[%s235 + $0x169] sm:$0xff]
      %v847 = vld [vmem:[%s235 + $0x171] sm:$0xff]
      %v848 = vpack.c.bf16 %v817, %v816
      %v849 = vpack.c.bf16 %v819, %v818
      %v850 = vpack.c.bf16 %v821, %v820
      %v851 = vpack.c.bf16 %v823, %v822
      %v852 = vpack.c.bf16 %v825, %v824
      %v853 = vpack.c.bf16 %v827, %v826
      %v854 = vpack.c.bf16 %v829, %v828
      %v855 = vpack.c.bf16 %v831, %v830
      %v856 = vpack.c.bf16 %v833, %v832
      %v857 = vpack.c.bf16 %v835, %v834
      %v858 = vpack.c.bf16 %v837, %v836
      %v859 = vpack.c.bf16 %v839, %v838
      %v860 = vpack.c.bf16 %v841, %v840
      %v861 = vpack.c.bf16 %v843, %v842
      %v862 = vpack.c.bf16 %v845, %v844
      %v863 = vpack.c.bf16 %v847, %v846
      %880 = vrot.lane.b32.xlu0 %v848, 16
      %v881 = vpop.permute.xlu0 %880
      %882 = vrot.lane.b32.xlu0 %v849, 16
      %v883 = vpop.permute.xlu0 %882
      %884 = vrot.lane.b32.xlu0 %v850, 16
      %v885 = vpop.permute.xlu0 %884
      %886 = vrot.lane.b32.xlu0 %v851, 16
      %v887 = vpop.permute.xlu0 %886
      %888 = vrot.lane.b32.xlu0 %v852, 16
      %v889 = vpop.permute.xlu0 %888
      %890 = vrot.lane.b32.xlu0 %v853, 16
      %v891 = vpop.permute.xlu0 %890
      %892 = vrot.lane.b32.xlu0 %v854, 16
      %v893 = vpop.permute.xlu0 %892
      %894 = vrot.lane.b32.xlu0 %v855, 16
      %v895 = vpop.permute.xlu0 %894
      %896 = vrot.lane.b32.xlu0 %v856, 16
      %v897 = vpop.permute.xlu0 %896
      %898 = vrot.lane.b32.xlu0 %v857, 16
      %v899 = vpop.permute.xlu0 %898
      %900 = vrot.lane.b32.xlu0 %v858, 16
      %v901 = vpop.permute.xlu0 %900
      %902 = vrot.lane.b32.xlu0 %v859, 16
      %v903 = vpop.permute.xlu0 %902
      %904 = vrot.lane.b32.xlu0 %v860, 16
      %v905 = vpop.permute.xlu0 %904
      %906 = vrot.lane.b32.xlu0 %v861, 16
      %v907 = vpop.permute.xlu0 %906
      %908 = vrot.lane.b32.xlu0 %v862, 16
      %v909 = vpop.permute.xlu0 %908
      %910 = vrot.lane.b32.xlu0 %v863, 16
      %v911 = vpop.permute.xlu0 %910
      %vm928 = vcmask 162944
      %929 = vst.msk [vmem:[#allocation3] sm:$0xff] %vm928, %v881
      %930 = vst.msk [vmem:[#allocation3 + $0x8] sm:$0xff] %vm928, %v883
      %931 = vst.msk [vmem:[#allocation3 + $0x10] sm:$0xff] %vm928, %v885
      %932 = vst.msk [vmem:[#allocation3 + $0x18] sm:$0xff] %vm928, %v887
      %933 = vst.msk [vmem:[#allocation3 + $0x20] sm:$0xff] %vm928, %v889
      %934 = vst.msk [vmem:[#allocation3 + $0x28] sm:$0xff] %vm928, %v891
      %935 = vst.msk [vmem:[#allocation3 + $0x30] sm:$0xff] %vm928, %v893
      %936 = vst.msk [vmem:[#allocation3 + $0x38] sm:$0xff] %vm928, %v895
      %937 = vst.msk [vmem:[#allocation3 + $0x40] sm:$0xff] %vm928, %v897
      %938 = vst.msk [vmem:[#allocation3 + $0x48] sm:$0xff] %vm928, %v899
      %939 = vst.msk [vmem:[#allocation3 + $0x50] sm:$0xff] %vm928, %v901
      %940 = vst.msk [vmem:[#allocation3 + $0x58] sm:$0xff] %vm928, %v903
      %941 = vst.msk [vmem:[#allocation3 + $0x60] sm:$0xff] %vm928, %v905
      %942 = vst.msk [vmem:[#allocation3 + $0x68] sm:$0xff] %vm928, %v907
      %943 = vst.msk [vmem:[#allocation3 + $0x70] sm:$0xff] %vm928, %v909
      %944 = vst.msk [vmem:[#allocation3 + $0x78] sm:$0xff] %vm928, %v911
      %v945 = vld [vmem:[%s235 + $0x2] sm:$0xff]
      %v946 = vld [vmem:[%s235 + $0xa] sm:$0xff]
      %v947 = vld [vmem:[%s235 + $0x1a] sm:$0xff]
      %v948 = vld [vmem:[%s235 + $0x22] sm:$0xff]
      %v949 = vld [vmem:[%s235 + $0x32] sm:$0xff]
      %v950 = vld [vmem:[%s235 + $0x3a] sm:$0xff]
      %v951 = vld [vmem:[%s235 + $0x4a] sm:$0xff]
      %v952 = vld [vmem:[%s235 + $0x52] sm:$0xff]
      %v953 = vld [vmem:[%s235 + $0x62] sm:$0xff]
      %v954 = vld [vmem:[%s235 + $0x6a] sm:$0xff]
      %v955 = vld [vmem:[%s235 + $0x7a] sm:$0xff]
      %v956 = vld [vmem:[%s235 + $0x82] sm:$0xff]
      %v957 = vld [vmem:[%s235 + $0x92] sm:$0xff]
      %v958 = vld [vmem:[%s235 + $0x9a] sm:$0xff]
      %v959 = vld [vmem:[%s235 + $0xaa] sm:$0xff]
      %v960 = vld [vmem:[%s235 + $0xb2] sm:$0xff]
      %v961 = vld [vmem:[%s235 + $0xc2] sm:$0xff]
      %v962 = vld [vmem:[%s235 + $0xca] sm:$0xff]
      %v963 = vld [vmem:[%s235 + $0xda] sm:$0xff]
      %v964 = vld [vmem:[%s235 + $0xe2] sm:$0xff]
      %v965 = vld [vmem:[%s235 + $0xf2] sm:$0xff]
      %v966 = vld [vmem:[%s235 + $0xfa] sm:$0xff]
      %v967 = vld [vmem:[%s235 + $0x10a] sm:$0xff]
      %v968 = vld [vmem:[%s235 + $0x112] sm:$0xff]
      %v969 = vld [vmem:[%s235 + $0x122] sm:$0xff]
      %v970 = vld [vmem:[%s235 + $0x12a] sm:$0xff]
      %v971 = vld [vmem:[%s235 + $0x13a] sm:$0xff]
      %v972 = vld [vmem:[%s235 + $0x142] sm:$0xff]
      %v973 = vld [vmem:[%s235 + $0x152] sm:$0xff]
      %v974 = vld [vmem:[%s235 + $0x15a] sm:$0xff]
      %v975 = vld [vmem:[%s235 + $0x16a] sm:$0xff]
      %v976 = vld [vmem:[%s235 + $0x172] sm:$0xff]
      %v977 = vpack.c.bf16 %v946, %v945
      %v978 = vpack.c.bf16 %v948, %v947
      %v979 = vpack.c.bf16 %v950, %v949
      %v980 = vpack.c.bf16 %v952, %v951
      %v981 = vpack.c.bf16 %v954, %v953
      %v982 = vpack.c.bf16 %v956, %v955
      %v983 = vpack.c.bf16 %v958, %v957
      %v984 = vpack.c.bf16 %v960, %v959
      %v985 = vpack.c.bf16 %v962, %v961
      %v986 = vpack.c.bf16 %v964, %v963
      %v987 = vpack.c.bf16 %v966, %v965
      %v988 = vpack.c.bf16 %v968, %v967
      %v989 = vpack.c.bf16 %v970, %v969
      %v990 = vpack.c.bf16 %v972, %v971
      %v991 = vpack.c.bf16 %v974, %v973
      %v992 = vpack.c.bf16 %v976, %v975
      %1009 = vrot.lane.b32.xlu0 %v977, 20
      %v1010 = vpop.permute.xlu0 %1009
      %1011 = vrot.lane.b32.xlu0 %v978, 20
      %v1012 = vpop.permute.xlu0 %1011
      %1013 = vrot.lane.b32.xlu0 %v979, 20
      %v1014 = vpop.permute.xlu0 %1013
      %1015 = vrot.lane.b32.xlu0 %v980, 20
      %v1016 = vpop.permute.xlu0 %1015
      %1017 = vrot.lane.b32.xlu0 %v981, 20
      %v1018 = vpop.permute.xlu0 %1017
      %1019 = vrot.lane.b32.xlu0 %v982, 20
      %v1020 = vpop.permute.xlu0 %1019
      %1021 = vrot.lane.b32.xlu0 %v983, 20
      %v1022 = vpop.permute.xlu0 %1021
      %1023 = vrot.lane.b32.xlu0 %v984, 20
      %v1024 = vpop.permute.xlu0 %1023
      %1025 = vrot.lane.b32.xlu0 %v985, 20
      %v1026 = vpop.permute.xlu0 %1025
      %1027 = vrot.lane.b32.xlu0 %v986, 20
      %v1028 = vpop.permute.xlu0 %1027
      %1029 = vrot.lane.b32.xlu0 %v987, 20
      %v1030 = vpop.permute.xlu0 %1029
      %1031 = vrot.lane.b32.xlu0 %v988, 20
      %v1032 = vpop.permute.xlu0 %1031
      %1033 = vrot.lane.b32.xlu0 %v989, 20
      %v1034 = vpop.permute.xlu0 %1033
      %1035 = vrot.lane.b32.xlu0 %v990, 20
      %v1036 = vpop.permute.xlu0 %1035
      %1037 = vrot.lane.b32.xlu0 %v991, 20
      %v1038 = vpop.permute.xlu0 %1037
      %1039 = vrot.lane.b32.xlu0 %v992, 20
      %v1040 = vpop.permute.xlu0 %1039
      %vm1057 = vcmask 195744
      %1058 = vst.msk [vmem:[#allocation3] sm:$0xff] %vm1057, %v1010
      %1059 = vst.msk [vmem:[#allocation3 + $0x8] sm:$0xff] %vm1057, %v1012
      %1060 = vst.msk [vmem:[#allocation3 + $0x10] sm:$0xff] %vm1057, %v1014
      %1061 = vst.msk [vmem:[#allocation3 + $0x18] sm:$0xff] %vm1057, %v1016
      %1062 = vst.msk [vmem:[#allocation3 + $0x20] sm:$0xff] %vm1057, %v1018
      %1063 = vst.msk [vmem:[#allocation3 + $0x28] sm:$0xff] %vm1057, %v1020
      %1064 = vst.msk [vmem:[#allocation3 + $0x30] sm:$0xff] %vm1057, %v1022
      %1065 = vst.msk [vmem:[#allocation3 + $0x38] sm:$0xff] %vm1057, %v1024
      %1066 = vst.msk [vmem:[#allocation3 + $0x40] sm:$0xff] %vm1057, %v1026
      %1067 = vst.msk [vmem:[#allocation3 + $0x48] sm:$0xff] %vm1057, %v1028
      %1068 = vst.msk [vmem:[#allocation3 + $0x50] sm:$0xff] %vm1057, %v1030
      %1069 = vst.msk [vmem:[#allocation3 + $0x58] sm:$0xff] %vm1057, %v1032
      %1070 = vst.msk [vmem:[#allocation3 + $0x60] sm:$0xff] %vm1057, %v1034
      %1071 = vst.msk [vmem:[#allocation3 + $0x68] sm:$0xff] %vm1057, %v1036
      %1072 = vst.msk [vmem:[#allocation3 + $0x70] sm:$0xff] %vm1057, %v1038
      %1073 = vst.msk [vmem:[#allocation3 + $0x78] sm:$0xff] %vm1057, %v1040
      %s1074 = scalar_lea.vmem [#allocation2], 48
      %v1075 = vld [vmem:[%s1074] sm:$0xff]
      %v1076 = vld [vmem:[%s1074 + $0x8] sm:$0xff]
      %v1077 = vld [vmem:[%s1074 + $0x18] sm:$0xff]
      %v1078 = vld [vmem:[%s1074 + $0x20] sm:$0xff]
      %v1079 = vld [vmem:[%s1074 + $0x30] sm:$0xff]
      %v1080 = vld [vmem:[%s1074 + $0x38] sm:$0xff]
      %v1081 = vld [vmem:[%s1074 + $0x48] sm:$0xff]
      %v1082 = vld [vmem:[%s1074 + $0x50] sm:$0xff]
      %v1083 = vld [vmem:[%s1074 + $0x60] sm:$0xff]
      %v1084 = vld [vmem:[%s1074 + $0x68] sm:$0xff]
      %v1085 = vld [vmem:[%s1074 + $0x78] sm:$0xff]
      %v1086 = vld [vmem:[%s1074 + $0x80] sm:$0xff]
      %v1087 = vld [vmem:[%s1074 + $0x90] sm:$0xff]
      %v1088 = vld [vmem:[%s1074 + $0x98] sm:$0xff]
      %v1089 = vld [vmem:[%s1074 + $0xa8] sm:$0xff]
      %v1090 = vld [vmem:[%s1074 + $0xb0] sm:$0xff]
      %v1091 = vld [vmem:[%s1074 + $0xc0] sm:$0xff]
      %v1092 = vld [vmem:[%s1074 + $0xc8] sm:$0xff]
      %v1093 = vld [vmem:[%s1074 + $0xd8] sm:$0xff]
      %v1094 = vld [vmem:[%s1074 + $0xe0] sm:$0xff]
      %v1095 = vld [vmem:[%s1074 + $0xf0] sm:$0xff]
      %v1096 = vld [vmem:[%s1074 + $0xf8] sm:$0xff]
      %v1097 = vld [vmem:[%s1074 + $0x108] sm:$0xff]
      %v1098 = vld [vmem:[%s1074 + $0x110] sm:$0xff]
      %v1099 = vld [vmem:[%s1074 + $0x120] sm:$0xff]
      %v1100 = vld [vmem:[%s1074 + $0x128] sm:$0xff]
      %v1101 = vld [vmem:[%s1074 + $0x138] sm:$0xff]
      %v1102 = vld [vmem:[%s1074 + $0x140] sm:$0xff]
      %v1103 = vld [vmem:[%s1074 + $0x150] sm:$0xff]
      %v1104 = vld [vmem:[%s1074 + $0x158] sm:$0xff]
      %v1105 = vld [vmem:[%s1074 + $0x168] sm:$0xff]
      %v1106 = vld [vmem:[%s1074 + $0x170] sm:$0xff]
      %v1107 = vpack.c.bf16 %v1076, %v1075
      %v1108 = vpack.c.bf16 %v1078, %v1077
      %v1109 = vpack.c.bf16 %v1080, %v1079
      %v1110 = vpack.c.bf16 %v1082, %v1081
      %v1111 = vpack.c.bf16 %v1084, %v1083
      %v1112 = vpack.c.bf16 %v1086, %v1085
      %v1113 = vpack.c.bf16 %v1088, %v1087
      %v1114 = vpack.c.bf16 %v1090, %v1089
      %v1115 = vpack.c.bf16 %v1092, %v1091
      %v1116 = vpack.c.bf16 %v1094, %v1093
      %v1117 = vpack.c.bf16 %v1096, %v1095
      %v1118 = vpack.c.bf16 %v1098, %v1097
      %v1119 = vpack.c.bf16 %v1100, %v1099
      %v1120 = vpack.c.bf16 %v1102, %v1101
      %v1121 = vpack.c.bf16 %v1104, %v1103
      %v1122 = vpack.c.bf16 %v1106, %v1105
      %1139 = vrot.lane.b32.xlu0 %v1107, 24
      %v1140 = vpop.permute.xlu0 %1139
      %1141 = vrot.lane.b32.xlu0 %v1108, 24
      %v1142 = vpop.permute.xlu0 %1141
      %1143 = vrot.lane.b32.xlu0 %v1109, 24
      %v1144 = vpop.permute.xlu0 %1143
      %1145 = vrot.lane.b32.xlu0 %v1110, 24
      %v1146 = vpop.permute.xlu0 %1145
      %1147 = vrot.lane.b32.xlu0 %v1111, 24
      %v1148 = vpop.permute.xlu0 %1147
      %1149 = vrot.lane.b32.xlu0 %v1112, 24
      %v1150 = vpop.permute.xlu0 %1149
      %1151 = vrot.lane.b32.xlu0 %v1113, 24
      %v1152 = vpop.permute.xlu0 %1151
      %1153 = vrot.lane.b32.xlu0 %v1114, 24
      %v1154 = vpop.permute.xlu0 %1153
      %1155 = vrot.lane.b32.xlu0 %v1115, 24
      %v1156 = vpop.permute.xlu0 %1155
      %1157 = vrot.lane.b32.xlu0 %v1116, 24
      %v1158 = vpop.permute.xlu0 %1157
      %1159 = vrot.lane.b32.xlu0 %v1117, 24
      %v1160 = vpop.permute.xlu0 %1159
      %1161 = vrot.lane.b32.xlu0 %v1118, 24
      %v1162 = vpop.permute.xlu0 %1161
      %1163 = vrot.lane.b32.xlu0 %v1119, 24
      %v1164 = vpop.permute.xlu0 %1163
      %1165 = vrot.lane.b32.xlu0 %v1120, 24
      %v1166 = vpop.permute.xlu0 %1165
      %1167 = vrot.lane.b32.xlu0 %v1121, 24
      %v1168 = vpop.permute.xlu0 %1167
      %1169 = vrot.lane.b32.xlu0 %v1122, 24
      %v1170 = vpop.permute.xlu0 %1169
      %vm1187 = vcmask 228544
      %1188 = vst.msk [vmem:[#allocation3] sm:$0xff] %vm1187, %v1140
      %1189 = vst.msk [vmem:[#allocation3 + $0x8] sm:$0xff] %vm1187, %v1142
      %1190 = vst.msk [vmem:[#allocation3 + $0x10] sm:$0xff] %vm1187, %v1144
      %1191 = vst.msk [vmem:[#allocation3 + $0x18] sm:$0xff] %vm1187, %v1146
      %1192 = vst.msk [vmem:[#allocation3 + $0x20] sm:$0xff] %vm1187, %v1148
      %1193 = vst.msk [vmem:[#allocation3 + $0x28] sm:$0xff] %vm1187, %v1150
      %1194 = vst.msk [vmem:[#allocation3 + $0x30] sm:$0xff] %vm1187, %v1152
      %1195 = vst.msk [vmem:[#allocation3 + $0x38] sm:$0xff] %vm1187, %v1154
      %1196 = vst.msk [vmem:[#allocation3 + $0x40] sm:$0xff] %vm1187, %v1156
      %1197 = vst.msk [vmem:[#allocation3 + $0x48] sm:$0xff] %vm1187, %v1158
      %1198 = vst.msk [vmem:[#allocation3 + $0x50] sm:$0xff] %vm1187, %v1160
      %1199 = vst.msk [vmem:[#allocation3 + $0x58] sm:$0xff] %vm1187, %v1162
      %1200 = vst.msk [vmem:[#allocation3 + $0x60] sm:$0xff] %vm1187, %v1164
      %1201 = vst.msk [vmem:[#allocation3 + $0x68] sm:$0xff] %vm1187, %v1166
      %1202 = vst.msk [vmem:[#allocation3 + $0x70] sm:$0xff] %vm1187, %v1168
      %1203 = vst.msk [vmem:[#allocation3 + $0x78] sm:$0xff] %vm1187, %v1170
      %v1204 = vld [vmem:[%s1074 + $0x1] sm:$0xff]
      %v1205 = vld [vmem:[%s1074 + $0x9] sm:$0xff]
      %v1206 = vld [vmem:[%s1074 + $0x19] sm:$0xff]
      %v1207 = vld [vmem:[%s1074 + $0x21] sm:$0xff]
      %v1208 = vld [vmem:[%s1074 + $0x31] sm:$0xff]
      %v1209 = vld [vmem:[%s1074 + $0x39] sm:$0xff]
      %v1210 = vld [vmem:[%s1074 + $0x49] sm:$0xff]
      %v1211 = vld [vmem:[%s1074 + $0x51] sm:$0xff]
      %v1212 = vld [vmem:[%s1074 + $0x61] sm:$0xff]
      %v1213 = vld [vmem:[%s1074 + $0x69] sm:$0xff]
      %v1214 = vld [vmem:[%s1074 + $0x79] sm:$0xff]
      %v1215 = vld [vmem:[%s1074 + $0x81] sm:$0xff]
      %v1216 = vld [vmem:[%s1074 + $0x91] sm:$0xff]
      %v1217 = vld [vmem:[%s1074 + $0x99] sm:$0xff]
      %v1218 = vld [vmem:[%s1074 + $0xa9] sm:$0xff]
      %v1219 = vld [vmem:[%s1074 + $0xb1] sm:$0xff]
      %v1220 = vld [vmem:[%s1074 + $0xc1] sm:$0xff]
      %v1221 = vld [vmem:[%s1074 + $0xc9] sm:$0xff]
      %v1222 = vld [vmem:[%s1074 + $0xd9] sm:$0xff]
      %v1223 = vld [vmem:[%s1074 + $0xe1] sm:$0xff]
      %v1224 = vld [vmem:[%s1074 + $0xf1] sm:$0xff]
      %v1225 = vld [vmem:[%s1074 + $0xf9] sm:$0xff]
      %v1226 = vld [vmem:[%s1074 + $0x109] sm:$0xff]
      %v1227 = vld [vmem:[%s1074 + $0x111] sm:$0xff]
      %v1228 = vld [vmem:[%s1074 + $0x121] sm:$0xff]
      %v1229 = vld [vmem:[%s1074 + $0x129] sm:$0xff]
      %v1230 = vld [vmem:[%s1074 + $0x139] sm:$0xff]
      %v1231 = vld [vmem:[%s1074 + $0x141] sm:$0xff]
      %v1232 = vld [vmem:[%s1074 + $0x151] sm:$0xff]
      %v1233 = vld [vmem:[%s1074 + $0x159] sm:$0xff]
      %v1234 = vld [vmem:[%s1074 + $0x169] sm:$0xff]
      %v1235 = vld [vmem:[%s1074 + $0x171] sm:$0xff]
      %v1236 = vpack.c.bf16 %v1205, %v1204
      %v1237 = vpack.c.bf16 %v1207, %v1206
      %v1238 = vpack.c.bf16 %v1209, %v1208
      %v1239 = vpack.c.bf16 %v1211, %v1210
      %v1240 = vpack.c.bf16 %v1213, %v1212
      %v1241 = vpack.c.bf16 %v1215, %v1214
      %v1242 = vpack.c.bf16 %v1217, %v1216
      %v1243 = vpack.c.bf16 %v1219, %v1218
      %v1244 = vpack.c.bf16 %v1221, %v1220
      %v1245 = vpack.c.bf16 %v1223, %v1222
      %v1246 = vpack.c.bf16 %v1225, %v1224
      %v1247 = vpack.c.bf16 %v1227, %v1226
      %v1248 = vpack.c.bf16 %v1229, %v1228
      %v1249 = vpack.c.bf16 %v1231, %v1230
      %v1250 = vpack.c.bf16 %v1233, %v1232
      %v1251 = vpack.c.bf16 %v1235, %v1234
      %1268 = vrot.lane.b32.xlu0 %v1236, 28
      %v1269 = vpop.permute.xlu0 %1268
      %1270 = vrot.lane.b32.xlu0 %v1237, 28
      %v1271 = vpop.permute.xlu0 %1270
      %1272 = vrot.lane.b32.xlu0 %v1238, 28
      %v1273 = vpop.permute.xlu0 %1272
      %1274 = vrot.lane.b32.xlu0 %v1239, 28
      %v1275 = vpop.permute.xlu0 %1274
      %1276 = vrot.lane.b32.xlu0 %v1240, 28
      %v1277 = vpop.permute.xlu0 %1276
      %1278 = vrot.lane.b32.xlu0 %v1241, 28
      %v1279 = vpop.permute.xlu0 %1278
      %1280 = vrot.lane.b32.xlu0 %v1242, 28
      %v1281 = vpop.permute.xlu0 %1280
      %1282 = vrot.lane.b32.xlu0 %v1243, 28
      %v1283 = vpop.permute.xlu0 %1282
      %1284 = vrot.lane.b32.xlu0 %v1244, 28
      %v1285 = vpop.permute.xlu0 %1284
      %1286 = vrot.lane.b32.xlu0 %v1245, 28
      %v1287 = vpop.permute.xlu0 %1286
      %1288 = vrot.lane.b32.xlu0 %v1246, 28
      %v1289 = vpop.permute.xlu0 %1288
      %1290 = vrot.lane.b32.xlu0 %v1247, 28
      %v1291 = vpop.permute.xlu0 %1290
      %1292 = vrot.lane.b32.xlu0 %v1248, 28
      %v1293 = vpop.permute.xlu0 %1292
      %1294 = vrot.lane.b32.xlu0 %v1249, 28
      %v1295 = vpop.permute.xlu0 %1294
      %1296 = vrot.lane.b32.xlu0 %v1250, 28
      %v1297 = vpop.permute.xlu0 %1296
      %1298 = vrot.lane.b32.xlu0 %v1251, 28
      %v1299 = vpop.permute.xlu0 %1298
      %vm1316 = vcmask 261344
      %1317 = vst.msk [vmem:[#allocation3] sm:$0xff] %vm1316, %v1269
      %1318 = vst.msk [vmem:[#allocation3 + $0x8] sm:$0xff] %vm1316, %v1271
      %1319 = vst.msk [vmem:[#allocation3 + $0x10] sm:$0xff] %vm1316, %v1273
      %1320 = vst.msk [vmem:[#allocation3 + $0x18] sm:$0xff] %vm1316, %v1275
      %1321 = vst.msk [vmem:[#allocation3 + $0x20] sm:$0xff] %vm1316, %v1277
      %1322 = vst.msk [vmem:[#allocation3 + $0x28] sm:$0xff] %vm1316, %v1279
      %1323 = vst.msk [vmem:[#allocation3 + $0x30] sm:$0xff] %vm1316, %v1281
      %1324 = vst.msk [vmem:[#allocation3 + $0x38] sm:$0xff] %vm1316, %v1283
      %1325 = vst.msk [vmem:[#allocation3 + $0x40] sm:$0xff] %vm1316, %v1285
      %1326 = vst.msk [vmem:[#allocation3 + $0x48] sm:$0xff] %vm1316, %v1287
      %1327 = vst.msk [vmem:[#allocation3 + $0x50] sm:$0xff] %vm1316, %v1289
      %1328 = vst.msk [vmem:[#allocation3 + $0x58] sm:$0xff] %vm1316, %v1291
      %1329 = vst.msk [vmem:[#allocation3 + $0x60] sm:$0xff] %vm1316, %v1293
      %1330 = vst.msk [vmem:[#allocation3 + $0x68] sm:$0xff] %vm1316, %v1295
      %1331 = vst.msk [vmem:[#allocation3 + $0x70] sm:$0xff] %vm1316, %v1297
      %1332 = vst.msk [vmem:[#allocation3 + $0x78] sm:$0xff] %vm1316, %v1299
      %v1333 = vld [vmem:[%s1074 + $0x2] sm:$0xff]
      %v1334 = vld [vmem:[%s1074 + $0xa] sm:$0xff]
      %v1335 = vld [vmem:[%s1074 + $0x1a] sm:$0xff]
      %v1336 = vld [vmem:[%s1074 + $0x22] sm:$0xff]
      %v1337 = vld [vmem:[%s1074 + $0x32] sm:$0xff]
      %v1338 = vld [vmem:[%s1074 + $0x3a] sm:$0xff]
      %v1339 = vld [vmem:[%s1074 + $0x4a] sm:$0xff]
      %v1340 = vld [vmem:[%s1074 + $0x52] sm:$0xff]
      %v1341 = vld [vmem:[%s1074 + $0x62] sm:$0xff]
      %v1342 = vld [vmem:[%s1074 + $0x6a] sm:$0xff]
      %v1343 = vld [vmem:[%s1074 + $0x7a] sm:$0xff]
      %v1344 = vld [vmem:[%s1074 + $0x82] sm:$0xff]
      %v1345 = vld [vmem:[%s1074 + $0x92] sm:$0xff]
      %v1346 = vld [vmem:[%s1074 + $0x9a] sm:$0xff]
      %v1347 = vld [vmem:[%s1074 + $0xaa] sm:$0xff]
      %v1348 = vld [vmem:[%s1074 + $0xb2] sm:$0xff]
      %v1349 = vld [vmem:[%s1074 + $0xc2] sm:$0xff]
      %v1350 = vld [vmem:[%s1074 + $0xca] sm:$0xff]
      %v1351 = vld [vmem:[%s1074 + $0xda] sm:$0xff]
      %v1352 = vld [vmem:[%s1074 + $0xe2] sm:$0xff]
      %v1353 = vld [vmem:[%s1074 + $0xf2] sm:$0xff]
      %v1354 = vld [vmem:[%s1074 + $0xfa] sm:$0xff]
      %v1355 = vld [vmem:[%s1074 + $0x10a] sm:$0xff]
      %v1356 = vld [vmem:[%s1074 + $0x112] sm:$0xff]
      %v1357 = vld [vmem:[%s1074 + $0x122] sm:$0xff]
      %v1358 = vld [vmem:[%s1074 + $0x12a] sm:$0xff]
      %v1359 = vld [vmem:[%s1074 + $0x13a] sm:$0xff]
      %v1360 = vld [vmem:[%s1074 + $0x142] sm:$0xff]
      %v1361 = vld [vmem:[%s1074 + $0x152] sm:$0xff]
      %v1362 = vld [vmem:[%s1074 + $0x15a] sm:$0xff]
      %v1363 = vld [vmem:[%s1074 + $0x16a] sm:$0xff]
      %v1364 = vld [vmem:[%s1074 + $0x172] sm:$0xff]
      %v1365 = vpack.c.bf16 %v1334, %v1333
      %v1366 = vpack.c.bf16 %v1336, %v1335
      %v1367 = vpack.c.bf16 %v1338, %v1337
      %v1368 = vpack.c.bf16 %v1340, %v1339
      %v1369 = vpack.c.bf16 %v1342, %v1341
      %v1370 = vpack.c.bf16 %v1344, %v1343
      %v1371 = vpack.c.bf16 %v1346, %v1345
      %v1372 = vpack.c.bf16 %v1348, %v1347
      %v1373 = vpack.c.bf16 %v1350, %v1349
      %v1374 = vpack.c.bf16 %v1352, %v1351
      %v1375 = vpack.c.bf16 %v1354, %v1353
      %v1376 = vpack.c.bf16 %v1356, %v1355
      %v1377 = vpack.c.bf16 %v1358, %v1357
      %v1378 = vpack.c.bf16 %v1360, %v1359
      %v1379 = vpack.c.bf16 %v1362, %v1361
      %v1380 = vpack.c.bf16 %v1364, %v1363
      %1397 = vrot.lane.b32.xlu0 %v1365, 32
      %v1398 = vpop.permute.xlu0 %1397
      %1399 = vrot.lane.b32.xlu0 %v1366, 32
      %v1400 = vpop.permute.xlu0 %1399
      %1401 = vrot.lane.b32.xlu0 %v1367, 32
      %v1402 = vpop.permute.xlu0 %1401
      %1403 = vrot.lane.b32.xlu0 %v1368, 32
      %v1404 = vpop.permute.xlu0 %1403
      %1405 = vrot.lane.b32.xlu0 %v1369, 32
      %v1406 = vpop.permute.xlu0 %1405
      %1407 = vrot.lane.b32.xlu0 %v1370, 32
      %v1408 = vpop.permute.xlu0 %1407
      %1409 = vrot.lane.b32.xlu0 %v1371, 32
      %v1410 = vpop.permute.xlu0 %1409
      %1411 = vrot.lane.b32.xlu0 %v1372, 32
      %v1412 = vpop.permute.xlu0 %1411
      %1413 = vrot.lane.b32.xlu0 %v1373, 32
      %v1414 = vpop.permute.xlu0 %1413
      %1415 = vrot.lane.b32.xlu0 %v1374, 32
      %v1416 = vpop.permute.xlu0 %1415
      %1417 = vrot.lane.b32.xlu0 %v1375, 32
      %v1418 = vpop.permute.xlu0 %1417
      %1419 = vrot.lane.b32.xlu0 %v1376, 32
      %v1420 = vpop.permute.xlu0 %1419
      %1421 = vrot.lane.b32.xlu0 %v1377, 32
      %v1422 = vpop.permute.xlu0 %1421
      %1423 = vrot.lane.b32.xlu0 %v1378, 32
      %v1424 = vpop.permute.xlu0 %1423
      %1425 = vrot.lane.b32.xlu0 %v1379, 32
      %v1426 = vpop.permute.xlu0 %1425
      %1427 = vrot.lane.b32.xlu0 %v1380, 32
      %v1428 = vpop.permute.xlu0 %1427
      %vm1445 = vcmask 294144
      %1446 = vst.msk [vmem:[#allocation3] sm:$0xff] %vm1445, %v1398
      %1447 = vst.msk [vmem:[#allocation3 + $0x8] sm:$0xff] %vm1445, %v1400
      %1448 = vst.msk [vmem:[#allocation3 + $0x10] sm:$0xff] %vm1445, %v1402
      %1449 = vst.msk [vmem:[#allocation3 + $0x18] sm:$0xff] %vm1445, %v1404
      %1450 = vst.msk [vmem:[#allocation3 + $0x20] sm:$0xff] %vm1445, %v1406
      %1451 = vst.msk [vmem:[#allocation3 + $0x28] sm:$0xff] %vm1445, %v1408
      %1452 = vst.msk [vmem:[#allocation3 + $0x30] sm:$0xff] %vm1445, %v1410
      %1453 = vst.msk [vmem:[#allocation3 + $0x38] sm:$0xff] %vm1445, %v1412
      %1454 = vst.msk [vmem:[#allocation3 + $0x40] sm:$0xff] %vm1445, %v1414
      %1455 = vst.msk [vmem:[#allocation3 + $0x48] sm:$0xff] %vm1445, %v1416
      %1456 = vst.msk [vmem:[#allocation3 + $0x50] sm:$0xff] %vm1445, %v1418
      %1457 = vst.msk [vmem:[#allocation3 + $0x58] sm:$0xff] %vm1445, %v1420
      %1458 = vst.msk [vmem:[#allocation3 + $0x60] sm:$0xff] %vm1445, %v1422
      %1459 = vst.msk [vmem:[#allocation3 + $0x68] sm:$0xff] %vm1445, %v1424
      %1460 = vst.msk [vmem:[#allocation3 + $0x70] sm:$0xff] %vm1445, %v1426
      %1461 = vst.msk [vmem:[#allocation3 + $0x78] sm:$0xff] %vm1445, %v1428
      %v1462 = vld [vmem:[#allocation3] sm:$0xff]
      %v1463 = vld [vmem:[#allocation3 + $0x8] sm:$0xff]
      %v1464 = vld [vmem:[#allocation3 + $0x10] sm:$0xff]
      %v1465 = vld [vmem:[#allocation3 + $0x18] sm:$0xff]
      %v1466 = vld [vmem:[#allocation3 + $0x20] sm:$0xff]
      %v1467 = vld [vmem:[#allocation3 + $0x28] sm:$0xff]
      %v1468 = vld [vmem:[#allocation3 + $0x30] sm:$0xff]
      %v1469 = vld [vmem:[#allocation3 + $0x38] sm:$0xff]
      %v1470 = vld [vmem:[#allocation3 + $0x40] sm:$0xff]
      %v1471 = vld [vmem:[#allocation3 + $0x48] sm:$0xff]
      %v1472 = vld [vmem:[#allocation3 + $0x50] sm:$0xff]
      %v1473 = vld [vmem:[#allocation3 + $0x58] sm:$0xff]
      %v1474 = vld [vmem:[#allocation3 + $0x60] sm:$0xff]
      %v1475 = vld [vmem:[#allocation3 + $0x68] sm:$0xff]
      %v1476 = vld [vmem:[#allocation3 + $0x70] sm:$0xff]
      %v1477 = vld [vmem:[#allocation3 + $0x78] sm:$0xff]
      %v1478 = vld [vmem:[%s1] sm:$0xf]
      %v1479 = vld [vmem:[%s1 + $0x4] sm:$0xf]
      %v1480 = vld [vmem:[%s1 + $0x8] sm:$0xf]
      %v1481 = vld [vmem:[%s1 + $0xc] sm:$0xf]
      %v1482 = vld [vmem:[%s1 + $0x10] sm:$0x3]
      %v1483 = vld [vmem:[%s2] sm:$0x1]
      %v1485 = vlaneseq
      %v1486 = vshrl.u32 %v1485, 7
      %v1487 = vsub.s32 0, %v1486
      %v1488 = vrot.slane %v1483, %v1487
      %v1495 = vunpack.c.l.b16 %v1478
      %v1496 = vunpack.c.l.b16 %v1479
      %v1497 = vunpack.c.l.b16 %v1480
      %v1498 = vunpack.c.l.b16 %v1481
      %v1499 = vunpack.c.l.b16 %v1482
      %v1500 = vpack.c.b16 %v1496, %v1495
      %v1501 = vpack.c.b16 %v1498, %v1497
      %v1502 = vpack.c.b16 %v1499, %v1499
      %vm1505 = vcmask 293888
      %v1507 = vsel %vm1505, %v1462, 0
      %v1510 = vsel %vm1505, %v1463, 0
      %v1513 = vsel %vm1505, %v1464, 0
      %v1516 = vsel %vm1505, %v1465, 0
      %v1519 = vsel %vm1505, %v1466, 0
      %v1522 = vsel %vm1505, %v1467, 0
      %v1525 = vsel %vm1505, %v1468, 0
      %v1528 = vsel %vm1505, %v1469, 0
      %v1531 = vsel %vm1505, %v1470, 0
      %v1534 = vsel %vm1505, %v1471, 0
      %v1537 = vsel %vm1505, %v1472, 0
      %v1540 = vsel %vm1505, %v1473, 0
      %v1543 = vsel %vm1505, %v1474, 0
      %v1546 = vsel %vm1505, %v1475, 0
      %v1549 = vsel %vm1505, %v1476, 0
      %v1552 = vsel %vm1505, %v1477, 0
      %vm1554 = vcmask 1041408
      %v1556 = vsel %vm1554, %v1502, 0
      %1558 = vmatprep.subr.bf16.mxu0 0
      %1559 = vmatpush1.bf16.msra.mxu0 %v1500
      %1560 = vmatprep.subr.bf16.mxu0 0
      %1561 = vmatpush1.bf16.msra.mxu0 %v1501
      %1562 = vmatprep.subr.bf16.mxu0 0
      %1563 = vmatpush1.bf16.msra.mxu0 %v1556
      %1564 = vmatprep.subr.bf16.mxu0 0
      %1565 = vmatpush1.bf16.msra.mxu0 0
      %1566 = vmatprep.subr.bf16.mxu0 0
      %1567 = vmatpush1.bf16.msra.mxu0 0
      %1568 = vmatprep.subr.bf16.mxu0 0
      %1569 = vmatpush1.bf16.msra.mxu0 0
      %1570 = vmatprep.subr.bf16.mxu0 0
      %1571 = vmatpush1.bf16.msra.mxu0 0
      %1572 = vmatprep.subr.bf16.mxu0 0
      %1573 = vmatpush1.bf16.msra.mxu0 0
      %1574 = vmatprep.subr.bf16.mxu0 0
      %1575 = vmatpush1.bf16.msra.mxu0 0
      %1576 = vmatprep.subr.bf16.mxu0 0
      %1577 = vmatpush1.bf16.msra.mxu0 0
      %1578 = vmatprep.subr.bf16.mxu0 0
      %1579 = vmatpush1.bf16.msra.mxu0 0
      %1580 = vmatprep.subr.bf16.mxu0 0
      %1581 = vmatpush1.bf16.msra.mxu0 0
      %1582 = vmatprep.subr.bf16.mxu0 0
      %1583 = vmatpush1.bf16.msra.mxu0 0
      %1584 = vmatprep.subr.bf16.mxu0 0
      %1585 = vmatpush1.bf16.msra.mxu0 0
      %1586 = vmatprep.subr.bf16.mxu0 0
      %1587 = vmatpush1.bf16.msra.mxu0 0
      %1588 = vmatprep.subr.bf16.mxu0 0
      %1589 = vmatpush1.bf16.msra.mxu0 0
      %1590 = vmatprep.mubr.bf16.mxu0 0
      %1591 = vmatmul.mubr.bf16.gmra.mrb[0].mxu0 %v1507
      %v1592 = vpop.f32.mrb[0].mxu0
      %v1593 = vadd.f32 %v1488, %v1592
      %v1594 = vpop.f32.mrb[0].mxu0
      %v1595 = vpop.f32.mrb[0].mxu0
      %v1596 = vadd.f32 %v1488, %v1595
      %v1597 = vpop.f32.mrb[0].mxu0
      %1598 = vmatprep.mubr.bf16.mxu0 0
      %1599 = vmatmul.mubr.bf16.gmra.mrb[0].mxu0 %v1510
      %v1600 = vpop.f32.mrb[0].mxu0
      %v1601 = vadd.f32 %v1488, %v1600
      %v1602 = vpop.f32.mrb[0].mxu0
      %v1603 = vpop.f32.mrb[0].mxu0
      %v1604 = vadd.f32 %v1488, %v1603
      %v1605 = vpop.f32.mrb[0].mxu0
      %1606 = vmatprep.mubr.bf16.mxu0 0
      %1607 = vmatmul.mubr.bf16.gmra.mrb[0].mxu0 %v1513
      %v1608 = vpop.f32.mrb[0].mxu0
      %v1609 = vadd.f32 %v1488, %v1608
      %v1610 = vpop.f32.mrb[0].mxu0
      %v1611 = vpop.f32.mrb[0].mxu0
      %v1612 = vadd.f32 %v1488, %v1611
      %v1613 = vpop.f32.mrb[0].mxu0
      %1614 = vmatprep.mubr.bf16.mxu0 0
      %1615 = vmatmul.mubr.bf16.gmra.mrb[0].mxu0 %v1516
      %v1616 = vpop.f32.mrb[0].mxu0
      %v1617 = vadd.f32 %v1488, %v1616
      %v1618 = vpop.f32.mrb[0].mxu0
      %v1619 = vpop.f32.mrb[0].mxu0
      %v1620 = vadd.f32 %v1488, %v1619
      %v1621 = vpop.f32.mrb[0].mxu0
      %1622 = vmatprep.mubr.bf16.mxu0 0
      %1623 = vmatmul.mubr.bf16.gmra.mrb[0].mxu0 %v1519
      %v1624 = vpop.f32.mrb[0].mxu0
      %v1625 = vadd.f32 %v1488, %v1624
      %v1626 = vpop.f32.mrb[0].mxu0
      %v1627 = vpop.f32.mrb[0].mxu0
      %v1628 = vadd.f32 %v1488, %v1627
      %v1629 = vpop.f32.mrb[0].mxu0
      %1630 = vmatprep.mubr.bf16.mxu0 0
      %1631 = vmatmul.mubr.bf16.gmra.mrb[0].mxu0 %v1522
      %v1632 = vpop.f32.mrb[0].mxu0
      %v1633 = vadd.f32 %v1488, %v1632
      %v1634 = vpop.f32.mrb[0].mxu0
      %v1635 = vpop.f32.mrb[0].mxu0
      %v1636 = vadd.f32 %v1488, %v1635
      %v1637 = vpop.f32.mrb[0].mxu0
      %1638 = vmatprep.mubr.bf16.mxu0 0
      %1639 = vmatmul.mubr.bf16.gmra.mrb[0].mxu0 %v1525
      %v1640 = vpop.f32.mrb[0].mxu0
      %v1641 = vadd.f32 %v1488, %v1640
      %v1642 = vpop.f32.mrb[0].mxu0
      %v1643 = vpop.f32.mrb[0].mxu0
      %v1644 = vadd.f32 %v1488, %v1643
      %v1645 = vpop.f32.mrb[0].mxu0
      %1646 = vmatprep.mubr.bf16.mxu0 0
      %1647 = vmatmul.mubr.bf16.gmra.mrb[0].mxu0 %v1528
      %v1648 = vpop.f32.mrb[0].mxu0
      %v1649 = vadd.f32 %v1488, %v1648
      %v1650 = vpop.f32.mrb[0].mxu0
      %v1651 = vpop.f32.mrb[0].mxu0
      %v1652 = vadd.f32 %v1488, %v1651
      %v1653 = vpop.f32.mrb[0].mxu0
      %1654 = vmatprep.mubr.bf16.mxu0 0
      %1655 = vmatmul.mubr.bf16.gmra.mrb[0].mxu0 %v1531
      %v1656 = vpop.f32.mrb[0].mxu0
      %v1657 = vadd.f32 %v1488, %v1656
      %v1658 = vpop.f32.mrb[0].mxu0
      %v1659 = vpop.f32.mrb[0].mxu0
      %v1660 = vadd.f32 %v1488, %v1659
      %v1661 = vpop.f32.mrb[0].mxu0
      %1662 = vmatprep.mubr.bf16.mxu0 0
      %1663 = vmatmul.mubr.bf16.gmra.mrb[0].mxu0 %v1534
      %v1664 = vpop.f32.mrb[0].mxu0
      %v1665 = vadd.f32 %v1488, %v1664
      %v1666 = vpop.f32.mrb[0].mxu0
      %v1667 = vpop.f32.mrb[0].mxu0
      %v1668 = vadd.f32 %v1488, %v1667
      %v1669 = vpop.f32.mrb[0].mxu0
      %1670 = vmatprep.mubr.bf16.mxu0 0
      %1671 = vmatmul.mubr.bf16.gmra.mrb[0].mxu0 %v1537
      %v1672 = vpop.f32.mrb[0].mxu0
      %v1673 = vadd.f32 %v1488, %v1672
      %v1674 = vpop.f32.mrb[0].mxu0
      %v1675 = vpop.f32.mrb[0].mxu0
      %v1676 = vadd.f32 %v1488, %v1675
      %v1677 = vpop.f32.mrb[0].mxu0
      %1678 = vmatprep.mubr.bf16.mxu0 0
      %1679 = vmatmul.mubr.bf16.gmra.mrb[0].mxu0 %v1540
      %v1680 = vpop.f32.mrb[0].mxu0
      %v1681 = vadd.f32 %v1488, %v1680
      %v1682 = vpop.f32.mrb[0].mxu0
      %v1683 = vpop.f32.mrb[0].mxu0
      %v1684 = vadd.f32 %v1488, %v1683
      %v1685 = vpop.f32.mrb[0].mxu0
      %1686 = vmatprep.mubr.bf16.mxu0 0
      %1687 = vmatmul.mubr.bf16.gmra.mrb[0].mxu0 %v1543
      %v1688 = vpop.f32.mrb[0].mxu0
      %v1689 = vadd.f32 %v1488, %v1688
      %v1690 = vpop.f32.mrb[0].mxu0
      %v1691 = vpop.f32.mrb[0].mxu0
      %v1692 = vadd.f32 %v1488, %v1691
      %v1693 = vpop.f32.mrb[0].mxu0
      %1694 = vmatprep.mubr.bf16.mxu0 0
      %1695 = vmatmul.mubr.bf16.gmra.mrb[0].mxu0 %v1546
      %v1696 = vpop.f32.mrb[0].mxu0
      %v1697 = vadd.f32 %v1488, %v1696
      %v1698 = vpop.f32.mrb[0].mxu0
      %v1699 = vpop.f32.mrb[0].mxu0
      %v1700 = vadd.f32 %v1488, %v1699
      %v1701 = vpop.f32.mrb[0].mxu0
      %1702 = vmatprep.mubr.bf16.mxu0 0
      %1703 = vmatmul.mubr.bf16.gmra.mrb[0].mxu0 %v1549
      %v1704 = vpop.f32.mrb[0].mxu0
      %v1705 = vadd.f32 %v1488, %v1704
      %v1706 = vpop.f32.mrb[0].mxu0
      %v1707 = vpop.f32.mrb[0].mxu0
      %v1708 = vadd.f32 %v1488, %v1707
      %v1709 = vpop.f32.mrb[0].mxu0
      %1710 = vmatprep.mubr.bf16.mxu0 0
      %1711 = vmatmul.mubr.bf16.gmra.mrb[0].mxu0 %v1552
      %v1712 = vpop.f32.mrb[0].mxu0
      %v1713 = vadd.f32 %v1488, %v1712
      %v1714 = vpop.f32.mrb[0].mxu0
      %v1715 = vpop.f32.mrb[0].mxu0
      %v1716 = vadd.f32 %v1488, %v1715
      %v1717 = vpop.f32.mrb[0].mxu0
      %1718 = vdwg.mxu0
      %v1719 = vmax.f32 %v1593, 0.0
      %v1720 = vmax.f32 %v1596, 0.0
      %v1721 = vmax.f32 %v1601, 0.0
      %v1722 = vmax.f32 %v1604, 0.0
      %v1723 = vmax.f32 %v1609, 0.0
      %v1724 = vmax.f32 %v1612, 0.0
      %v1725 = vmax.f32 %v1617, 0.0
      %v1726 = vmax.f32 %v1620, 0.0
      %v1727 = vmax.f32 %v1625, 0.0
      %v1728 = vmax.f32 %v1628, 0.0
      %v1729 = vmax.f32 %v1633, 0.0
      %v1730 = vmax.f32 %v1636, 0.0
      %v1731 = vmax.f32 %v1641, 0.0
      %v1732 = vmax.f32 %v1644, 0.0
      %v1733 = vmax.f32 %v1649, 0.0
      %v1734 = vmax.f32 %v1652, 0.0
      %v1735 = vmax.f32 %v1657, 0.0
      %v1736 = vmax.f32 %v1660, 0.0
      %v1737 = vmax.f32 %v1665, 0.0
      %v1738 = vmax.f32 %v1668, 0.0
      %v1739 = vmax.f32 %v1673, 0.0
      %v1740 = vmax.f32 %v1676, 0.0
      %v1741 = vmax.f32 %v1681, 0.0
      %v1742 = vmax.f32 %v1684, 0.0
      %v1743 = vmax.f32 %v1689, 0.0
      %v1744 = vmax.f32 %v1692, 0.0
      %v1745 = vmax.f32 %v1697, 0.0
      %v1746 = vmax.f32 %v1700, 0.0
      %v1747 = vmax.f32 %v1705, 0.0
      %v1748 = vmax.f32 %v1708, 0.0
      %v1749 = vmax.f32 %v1713, 0.0
      %v1750 = vmax.f32 %v1716, 0.0
      %vm1751 = vcmask 64512
      %1752 = vst.msk [vmem:[#allocation4] sm:$0xff] %vm1751, 0.0
      %1753 = vst.msk [vmem:[#allocation4 + $0x8] sm:$0xff] %vm1751, 0.0
      %vm1754 = vcmask 58368
      %1755 = vst.msk [vmem:[#allocation4 + $0x10] sm:$0x3] %vm1754, 0.0
      %s1756 = scalar_lea.vmem [#allocation4], 408
      %1757 = vst.msk [vmem:[%s1756] sm:$0xff] %vm1751, 0.0
      %1758 = vst.msk [vmem:[%s1756 + $0x8] sm:$0xff] %vm1751, 0.0
      %1759 = vst.msk [vmem:[%s1756 + $0x10] sm:$0x3] %vm1754, 0.0
      %s1760 = scalar_lea.vmem [#allocation4], 24
      %vm1761 = vcmask 57344
      %1762 = vst.msk [vmem:[%s1760] sm:$0x1] %vm1761, 0.0
      %1763 = vst.msk [vmem:[%s1760 + $0x18] sm:$0x1] %vm1761, 0.0
      %1764 = vst.msk [vmem:[%s1760 + $0x30] sm:$0x1] %vm1761, 0.0
      %1765 = vst.msk [vmem:[%s1760 + $0x48] sm:$0x1] %vm1761, 0.0
      %1766 = vst.msk [vmem:[%s1760 + $0x60] sm:$0x1] %vm1761, 0.0
      %1767 = vst.msk [vmem:[%s1760 + $0x78] sm:$0x1] %vm1761, 0.0
      %1768 = vst.msk [vmem:[%s1760 + $0x90] sm:$0x1] %vm1761, 0.0
      %1769 = vst.msk [vmem:[%s1760 + $0xa8] sm:$0x1] %vm1761, 0.0
      %1770 = vst.msk [vmem:[%s1760 + $0xc0] sm:$0x1] %vm1761, 0.0
      %1771 = vst.msk [vmem:[%s1760 + $0xd8] sm:$0x1] %vm1761, 0.0
      %1772 = vst.msk [vmem:[%s1760 + $0xf0] sm:$0x1] %vm1761, 0.0
      %1773 = vst.msk [vmem:[%s1760 + $0x108] sm:$0x1] %vm1761, 0.0
      %1774 = vst.msk [vmem:[%s1760 + $0x120] sm:$0x1] %vm1761, 0.0
      %1775 = vst.msk [vmem:[%s1760 + $0x138] sm:$0x1] %vm1761, 0.0
      %1776 = vst.msk [vmem:[%s1760 + $0x150] sm:$0x1] %vm1761, 0.0
      %1777 = vst.msk [vmem:[%s1760 + $0x168] sm:$0x1] %vm1761, 0.0
      %1778 = vst.msk [vmem:[%s1760 + $0x11] sm:$0x1] %vm1761, 0.0
      %1779 = vst.msk [vmem:[%s1760 + $0x29] sm:$0x1] %vm1761, 0.0
      %1780 = vst.msk [vmem:[%s1760 + $0x41] sm:$0x1] %vm1761, 0.0
      %1781 = vst.msk [vmem:[%s1760 + $0x59] sm:$0x1] %vm1761, 0.0
      %1782 = vst.msk [vmem:[%s1760 + $0x71] sm:$0x1] %vm1761, 0.0
      %1783 = vst.msk [vmem:[%s1760 + $0x89] sm:$0x1] %vm1761, 0.0
      %1784 = vst.msk [vmem:[%s1760 + $0xa1] sm:$0x1] %vm1761, 0.0
      %1785 = vst.msk [vmem:[%s1760 + $0xb9] sm:$0x1] %vm1761, 0.0
      %1786 = vst.msk [vmem:[%s1760 + $0xd1] sm:$0x1] %vm1761, 0.0
      %1787 = vst.msk [vmem:[%s1760 + $0xe9] sm:$0x1] %vm1761, 0.0
      %1788 = vst.msk [vmem:[%s1760 + $0x101] sm:$0x1] %vm1761, 0.0
      %1789 = vst.msk [vmem:[%s1760 + $0x119] sm:$0x1] %vm1761, 0.0
      %1790 = vst.msk [vmem:[%s1760 + $0x131] sm:$0x1] %vm1761, 0.0
      %1791 = vst.msk [vmem:[%s1760 + $0x149] sm:$0x1] %vm1761, 0.0
      %1792 = vst.msk [vmem:[%s1760 + $0x161] sm:$0x1] %vm1761, 0.0
      %1793 = vst.msk [vmem:[%s1760 + $0x179] sm:$0x1] %vm1761, 0.0
      %1794 = vst.msk [vmem:[%s1760 + $0x1] sm:$0xff] %vm1751, %v1719
      %1795 = vst.msk [vmem:[%s1760 + $0x9] sm:$0xff] %vm1751, %v1720
      %1796 = vst.msk [vmem:[%s1760 + $0x19] sm:$0xff] %vm1751, %v1721
      %1797 = vst.msk [vmem:[%s1760 + $0x21] sm:$0xff] %vm1751, %v1722
      %1798 = vst.msk [vmem:[%s1760 + $0x31] sm:$0xff] %vm1751, %v1723
      %1799 = vst.msk [vmem:[%s1760 + $0x39] sm:$0xff] %vm1751, %v1724
      %1800 = vst.msk [vmem:[%s1760 + $0x49] sm:$0xff] %vm1751, %v1725
      %1801 = vst.msk [vmem:[%s1760 + $0x51] sm:$0xff] %vm1751, %v1726
      %1802 = vst.msk [vmem:[%s1760 + $0x61] sm:$0xff] %vm1751, %v1727
      %1803 = vst.msk [vmem:[%s1760 + $0x69] sm:$0xff] %vm1751, %v1728
      %1804 = vst.msk [vmem:[%s1760 + $0x79] sm:$0xff] %vm1751, %v1729
      %1805 = vst.msk [vmem:[%s1760 + $0x81] sm:$0xff] %vm1751, %v1730
      %1806 = vst.msk [vmem:[%s1760 + $0x91] sm:$0xff] %vm1751, %v1731
      %1807 = vst.msk [vmem:[%s1760 + $0x99] sm:$0xff] %vm1751, %v1732
      %1808 = vst.msk [vmem:[%s1760 + $0xa9] sm:$0xff] %vm1751, %v1733
      %1809 = vst.msk [vmem:[%s1760 + $0xb1] sm:$0xff] %vm1751, %v1734
      %1810 = vst.msk [vmem:[%s1760 + $0xc1] sm:$0xff] %vm1751, %v1735
      %1811 = vst.msk [vmem:[%s1760 + $0xc9] sm:$0xff] %vm1751, %v1736
      %1812 = vst.msk [vmem:[%s1760 + $0xd9] sm:$0xff] %vm1751, %v1737
      %1813 = vst.msk [vmem:[%s1760 + $0xe1] sm:$0xff] %vm1751, %v1738
      %1814 = vst.msk [vmem:[%s1760 + $0xf1] sm:$0xff] %vm1751, %v1739
      %1815 = vst.msk [vmem:[%s1760 + $0xf9] sm:$0xff] %vm1751, %v1740
      %1816 = vst.msk [vmem:[%s1760 + $0x109] sm:$0xff] %vm1751, %v1741
      %1817 = vst.msk [vmem:[%s1760 + $0x111] sm:$0xff] %vm1751, %v1742
      %1818 = vst.msk [vmem:[%s1760 + $0x121] sm:$0xff] %vm1751, %v1743
      %1819 = vst.msk [vmem:[%s1760 + $0x129] sm:$0xff] %vm1751, %v1744
      %1820 = vst.msk [vmem:[%s1760 + $0x139] sm:$0xff] %vm1751, %v1745
      %1821 = vst.msk [vmem:[%s1760 + $0x141] sm:$0xff] %vm1751, %v1746
      %1822 = vst.msk [vmem:[%s1760 + $0x151] sm:$0xff] %vm1751, %v1747
      %1823 = vst.msk [vmem:[%s1760 + $0x159] sm:$0xff] %vm1751, %v1748
      %1824 = vst.msk [vmem:[%s1760 + $0x169] sm:$0xff] %vm1751, %v1749
      %1825 = vst.msk [vmem:[%s1760 + $0x171] sm:$0xff] %vm1751, %v1750
      %v1826 = vld [vmem:[#allocation4] sm:$0xff]
      %v1827 = vld [vmem:[#allocation4 + $0x8] sm:$0xff]
      %v1828 = vld [vmem:[#allocation4 + $0x18] sm:$0xff]
      %v1829 = vld [vmem:[#allocation4 + $0x20] sm:$0xff]
      %v1830 = vld [vmem:[#allocation4 + $0x30] sm:$0xff]
      %v1831 = vld [vmem:[#allocation4 + $0x38] sm:$0xff]
      %v1832 = vld [vmem:[#allocation4 + $0x48] sm:$0xff]
      %v1833 = vld [vmem:[#allocation4 + $0x50] sm:$0xff]
      %v1834 = vld [vmem:[#allocation4 + $0x60] sm:$0xff]
      %v1835 = vld [vmem:[#allocation4 + $0x68] sm:$0xff]
      %v1836 = vld [vmem:[#allocation4 + $0x78] sm:$0xff]
      %v1837 = vld [vmem:[#allocation4 + $0x80] sm:$0xff]
      %v1838 = vld [vmem:[#allocation4 + $0x90] sm:$0xff]
      %v1839 = vld [vmem:[#allocation4 + $0x98] sm:$0xff]
      %v1840 = vld [vmem:[#allocation4 + $0xa8] sm:$0xff]
      %v1841 = vld [vmem:[#allocation4 + $0xb0] sm:$0xff]
      %v1842 = vld [vmem:[#allocation4 + $0xc0] sm:$0xff]
      %v1843 = vld [vmem:[#allocation4 + $0xc8] sm:$0xff]
      %v1844 = vld [vmem:[#allocation4 + $0xd8] sm:$0xff]
      %v1845 = vld [vmem:[#allocation4 + $0xe0] sm:$0xff]
      %v1846 = vld [vmem:[#allocation4 + $0xf0] sm:$0xff]
      %v1847 = vld [vmem:[#allocation4 + $0xf8] sm:$0xff]
      %v1848 = vld [vmem:[#allocation4 + $0x108] sm:$0xff]
      %v1849 = vld [vmem:[#allocation4 + $0x110] sm:$0xff]
      %v1850 = vld [vmem:[#allocation4 + $0x120] sm:$0xff]
      %v1851 = vld [vmem:[#allocation4 + $0x128] sm:$0xff]
      %v1852 = vld [vmem:[#allocation4 + $0x138] sm:$0xff]
      %v1853 = vld [vmem:[#allocation4 + $0x140] sm:$0xff]
      %v1854 = vld [vmem:[#allocation4 + $0x150] sm:$0xff]
      %v1855 = vld [vmem:[#allocation4 + $0x158] sm:$0xff]
      %v1856 = vld [vmem:[#allocation4 + $0x168] sm:$0xff]
      %v1857 = vld [vmem:[#allocation4 + $0x170] sm:$0xff]
      %v1858 = vpack.c.bf16 %v1827, %v1826
      %v1859 = vpack.c.bf16 %v1829, %v1828
      %v1860 = vpack.c.bf16 %v1831, %v1830
      %v1861 = vpack.c.bf16 %v1833, %v1832
      %v1862 = vpack.c.bf16 %v1835, %v1834
      %v1863 = vpack.c.bf16 %v1837, %v1836
      %v1864 = vpack.c.bf16 %v1839, %v1838
      %v1865 = vpack.c.bf16 %v1841, %v1840
      %v1866 = vpack.c.bf16 %v1843, %v1842
      %v1867 = vpack.c.bf16 %v1845, %v1844
      %v1868 = vpack.c.bf16 %v1847, %v1846
      %v1869 = vpack.c.bf16 %v1849, %v1848
      %v1870 = vpack.c.bf16 %v1851, %v1850
      %v1871 = vpack.c.bf16 %v1853, %v1852
      %v1872 = vpack.c.bf16 %v1855, %v1854
      %v1873 = vpack.c.bf16 %v1857, %v1856
      %1874 = vst.msk [vmem:[#allocation5] sm:$0xff] %vm1751, %v1858
      %1875 = vst.msk [vmem:[#allocation5 + $0x8] sm:$0xff] %vm1751, %v1859
      %1876 = vst.msk [vmem:[#allocation5 + $0x10] sm:$0xff] %vm1751, %v1860
      %1877 = vst.msk [vmem:[#allocation5 + $0x18] sm:$0xff] %vm1751, %v1861
      %1878 = vst.msk [vmem:[#allocation5 + $0x20] sm:$0xff] %vm1751, %v1862
      %1879 = vst.msk [vmem:[#allocation5 + $0x28] sm:$0xff] %vm1751, %v1863
      %1880 = vst.msk [vmem:[#allocation5 + $0x30] sm:$0xff] %vm1751, %v1864
      %1881 = vst.msk [vmem:[#allocation5 + $0x38] sm:$0xff] %vm1751, %v1865
      %1882 = vst.msk [vmem:[#allocation5 + $0x40] sm:$0xff] %vm1751, %v1866
      %1883 = vst.msk [vmem:[#allocation5 + $0x48] sm:$0xff] %vm1751, %v1867
      %1884 = vst.msk [vmem:[#allocation5 + $0x50] sm:$0xff] %vm1751, %v1868
      %1885 = vst.msk [vmem:[#allocation5 + $0x58] sm:$0xff] %vm1751, %v1869
      %1886 = vst.msk [vmem:[#allocation5 + $0x60] sm:$0xff] %vm1751, %v1870
      %1887 = vst.msk [vmem:[#allocation5 + $0x68] sm:$0xff] %vm1751, %v1871
      %1888 = vst.msk [vmem:[#allocation5 + $0x70] sm:$0xff] %vm1751, %v1872
      %1889 = vst.msk [vmem:[#allocation5 + $0x78] sm:$0xff] %vm1751, %v1873
      %v1890 = vld [vmem:[#allocation4 + $0x1] sm:$0xff]
      %v1891 = vld [vmem:[#allocation4 + $0x9] sm:$0xff]
      %v1892 = vld [vmem:[#allocation4 + $0x19] sm:$0xff]
      %v1893 = vld [vmem:[#allocation4 + $0x21] sm:$0xff]
      %v1894 = vld [vmem:[#allocation4 + $0x31] sm:$0xff]
      %v1895 = vld [vmem:[#allocation4 + $0x39] sm:$0xff]
      %v1896 = vld [vmem:[#allocation4 + $0x49] sm:$0xff]
      %v1897 = vld [vmem:[#allocation4 + $0x51] sm:$0xff]
      %v1898 = vld [vmem:[#allocation4 + $0x61] sm:$0xff]
      %v1899 = vld [vmem:[#allocation4 + $0x69] sm:$0xff]
      %v1900 = vld [vmem:[#allocation4 + $0x79] sm:$0xff]
      %v1901 = vld [vmem:[#allocation4 + $0x81] sm:$0xff]
      %v1902 = vld [vmem:[#allocation4 + $0x91] sm:$0xff]
      %v1903 = vld [vmem:[#allocation4 + $0x99] sm:$0xff]
      %v1904 = vld [vmem:[#allocation4 + $0xa9] sm:$0xff]
      %v1905 = vld [vmem:[#allocation4 + $0xb1] sm:$0xff]
      %v1906 = vld [vmem:[#allocation4 + $0xc1] sm:$0xff]
      %v1907 = vld [vmem:[#allocation4 + $0xc9] sm:$0xff]
      %v1908 = vld [vmem:[#allocation4 + $0xd9] sm:$0xff]
      %v1909 = vld [vmem:[#allocation4 + $0xe1] sm:$0xff]
      %v1910 = vld [vmem:[#allocation4 + $0xf1] sm:$0xff]
      %v1911 = vld [vmem:[#allocation4 + $0xf9] sm:$0xff]
      %v1912 = vld [vmem:[#allocation4 + $0x109] sm:$0xff]
      %v1913 = vld [vmem:[#allocation4 + $0x111] sm:$0xff]
      %v1914 = vld [vmem:[#allocation4 + $0x121] sm:$0xff]
      %v1915 = vld [vmem:[#allocation4 + $0x129] sm:$0xff]
      %v1916 = vld [vmem:[#allocation4 + $0x139] sm:$0xff]
      %v1917 = vld [vmem:[#allocation4 + $0x141] sm:$0xff]
      %v1918 = vld [vmem:[#allocation4 + $0x151] sm:$0xff]
      %v1919 = vld [vmem:[#allocation4 + $0x159] sm:$0xff]
      %v1920 = vld [vmem:[#allocation4 + $0x169] sm:$0xff]
      %v1921 = vld [vmem:[#allocation4 + $0x171] sm:$0xff]
      %v1922 = vpack.c.bf16 %v1891, %v1890
      %v1923 = vpack.c.bf16 %v1893, %v1892
      %v1924 = vpack.c.bf16 %v1895, %v1894
      %v1925 = vpack.c.bf16 %v1897, %v1896
      %v1926 = vpack.c.bf16 %v1899, %v1898
      %v1927 = vpack.c.bf16 %v1901, %v1900
      %v1928 = vpack.c.bf16 %v1903, %v1902
      %v1929 = vpack.c.bf16 %v1905, %v1904
      %v1930 = vpack.c.bf16 %v1907, %v1906
      %v1931 = vpack.c.bf16 %v1909, %v1908
      %v1932 = vpack.c.bf16 %v1911, %v1910
      %v1933 = vpack.c.bf16 %v1913, %v1912
      %v1934 = vpack.c.bf16 %v1915, %v1914
      %v1935 = vpack.c.bf16 %v1917, %v1916
      %v1936 = vpack.c.bf16 %v1919, %v1918
      %v1937 = vpack.c.bf16 %v1921, %v1920
      %1954 = vrot.lane.b32.xlu0 %v1922, 8
      %v1955 = vpop.permute.xlu0 %1954
      %1956 = vrot.lane.b32.xlu0 %v1923, 8
      %v1957 = vpop.permute.xlu0 %1956
      %1958 = vrot.lane.b32.xlu0 %v1924, 8
      %v1959 = vpop.permute.xlu0 %1958
      %1960 = vrot.lane.b32.xlu0 %v1925, 8
      %v1961 = vpop.permute.xlu0 %1960
      %1962 = vrot.lane.b32.xlu0 %v1926, 8
      %v1963 = vpop.permute.xlu0 %1962
      %1964 = vrot.lane.b32.xlu0 %v1927, 8
      %v1965 = vpop.permute.xlu0 %1964
      %1966 = vrot.lane.b32.xlu0 %v1928, 8
      %v1967 = vpop.permute.xlu0 %1966
      %1968 = vrot.lane.b32.xlu0 %v1929, 8
      %v1969 = vpop.permute.xlu0 %1968
      %1970 = vrot.lane.b32.xlu0 %v1930, 8
      %v1971 = vpop.permute.xlu0 %1970
      %1972 = vrot.lane.b32.xlu0 %v1931, 8
      %v1973 = vpop.permute.xlu0 %1972
      %1974 = vrot.lane.b32.xlu0 %v1932, 8
      %v1975 = vpop.permute.xlu0 %1974
      %1976 = vrot.lane.b32.xlu0 %v1933, 8
      %v1977 = vpop.permute.xlu0 %1976
      %1978 = vrot.lane.b32.xlu0 %v1934, 8
      %v1979 = vpop.permute.xlu0 %1978
      %1980 = vrot.lane.b32.xlu0 %v1935, 8
      %v1981 = vpop.permute.xlu0 %1980
      %1982 = vrot.lane.b32.xlu0 %v1936, 8
      %v1983 = vpop.permute.xlu0 %1982
      %1984 = vrot.lane.b32.xlu0 %v1937, 8
      %v1985 = vpop.permute.xlu0 %1984
      %vm2002 = vcmask 130112
      %2003 = vst.msk [vmem:[#allocation5] sm:$0xff] %vm2002, %v1955
      %2004 = vst.msk [vmem:[#allocation5 + $0x8] sm:$0xff] %vm2002, %v1957
      %2005 = vst.msk [vmem:[#allocation5 + $0x10] sm:$0xff] %vm2002, %v1959
      %2006 = vst.msk [vmem:[#allocation5 + $0x18] sm:$0xff] %vm2002, %v1961
      %2007 = vst.msk [vmem:[#allocation5 + $0x20] sm:$0xff] %vm2002, %v1963
      %2008 = vst.msk [vmem:[#allocation5 + $0x28] sm:$0xff] %vm2002, %v1965
      %2009 = vst.msk [vmem:[#allocation5 + $0x30] sm:$0xff] %vm2002, %v1967
      %2010 = vst.msk [vmem:[#allocation5 + $0x38] sm:$0xff] %vm2002, %v1969
      %2011 = vst.msk [vmem:[#allocation5 + $0x40] sm:$0xff] %vm2002, %v1971
      %2012 = vst.msk [vmem:[#allocation5 + $0x48] sm:$0xff] %vm2002, %v1973
      %2013 = vst.msk [vmem:[#allocation5 + $0x50] sm:$0xff] %vm2002, %v1975
      %2014 = vst.msk [vmem:[#allocation5 + $0x58] sm:$0xff] %vm2002, %v1977
      %2015 = vst.msk [vmem:[#allocation5 + $0x60] sm:$0xff] %vm2002, %v1979
      %2016 = vst.msk [vmem:[#allocation5 + $0x68] sm:$0xff] %vm2002, %v1981
      %2017 = vst.msk [vmem:[#allocation5 + $0x70] sm:$0xff] %vm2002, %v1983
      %2018 = vst.msk [vmem:[#allocation5 + $0x78] sm:$0xff] %vm2002, %v1985
      %v2019 = vld [vmem:[#allocation4 + $0x2] sm:$0xff]
      %v2020 = vld [vmem:[#allocation4 + $0xa] sm:$0xff]
      %v2021 = vld [vmem:[#allocation4 + $0x1a] sm:$0xff]
      %v2022 = vld [vmem:[#allocation4 + $0x22] sm:$0xff]
      %v2023 = vld [vmem:[#allocation4 + $0x32] sm:$0xff]
      %v2024 = vld [vmem:[#allocation4 + $0x3a] sm:$0xff]
      %v2025 = vld [vmem:[#allocation4 + $0x4a] sm:$0xff]
      %v2026 = vld [vmem:[#allocation4 + $0x52] sm:$0xff]
      %v2027 = vld [vmem:[#allocation4 + $0x62] sm:$0xff]
      %v2028 = vld [vmem:[#allocation4 + $0x6a] sm:$0xff]
      %v2029 = vld [vmem:[#allocation4 + $0x7a] sm:$0xff]
      %v2030 = vld [vmem:[#allocation4 + $0x82] sm:$0xff]
      %v2031 = vld [vmem:[#allocation4 + $0x92] sm:$0xff]
      %v2032 = vld [vmem:[#allocation4 + $0x9a] sm:$0xff]
      %v2033 = vld [vmem:[#allocation4 + $0xaa] sm:$0xff]
      %v2034 = vld [vmem:[#allocation4 + $0xb2] sm:$0xff]
      %v2035 = vld [vmem:[#allocation4 + $0xc2] sm:$0xff]
      %v2036 = vld [vmem:[#allocation4 + $0xca] sm:$0xff]
      %v2037 = vld [vmem:[#allocation4 + $0xda] sm:$0xff]
      %v2038 = vld [vmem:[#allocation4 + $0xe2] sm:$0xff]
      %v2039 = vld [vmem:[#allocation4 + $0xf2] sm:$0xff]
      %v2040 = vld [vmem:[#allocation4 + $0xfa] sm:$0xff]
      %v2041 = vld [vmem:[#allocation4 + $0x10a] sm:$0xff]
      %v2042 = vld [vmem:[#allocation4 + $0x112] sm:$0xff]
      %v2043 = vld [vmem:[#allocation4 + $0x122] sm:$0xff]
      %v2044 = vld [vmem:[#allocation4 + $0x12a] sm:$0xff]
      %v2045 = vld [vmem:[#allocation4 + $0x13a] sm:$0xff]
      %v2046 = vld [vmem:[#allocation4 + $0x142] sm:$0xff]
      %v2047 = vld [vmem:[#allocation4 + $0x152] sm:$0xff]
      %v2048 = vld [vmem:[#allocation4 + $0x15a] sm:$0xff]
      %v2049 = vld [vmem:[#allocation4 + $0x16a] sm:$0xff]
      %v2050 = vld [vmem:[#allocation4 + $0x172] sm:$0xff]
      %v2051 = vpack.c.bf16 %v2020, %v2019
      %v2052 = vpack.c.bf16 %v2022, %v2021
      %v2053 = vpack.c.bf16 %v2024, %v2023
      %v2054 = vpack.c.bf16 %v2026, %v2025
      %v2055 = vpack.c.bf16 %v2028, %v2027
      %v2056 = vpack.c.bf16 %v2030, %v2029
      %v2057 = vpack.c.bf16 %v2032, %v2031
      %v2058 = vpack.c.bf16 %v2034, %v2033
      %v2059 = vpack.c.bf16 %v2036, %v2035
      %v2060 = vpack.c.bf16 %v2038, %v2037
      %v2061 = vpack.c.bf16 %v2040, %v2039
      %v2062 = vpack.c.bf16 %v2042, %v2041
      %v2063 = vpack.c.bf16 %v2044, %v2043
      %v2064 = vpack.c.bf16 %v2046, %v2045
      %v2065 = vpack.c.bf16 %v2048, %v2047
      %v2066 = vpack.c.bf16 %v2050, %v2049
      %2083 = vrot.lane.b32.xlu0 %v2051, 16
      %v2084 = vpop.permute.xlu0 %2083
      %2085 = vrot.lane.b32.xlu0 %v2052, 16
      %v2086 = vpop.permute.xlu0 %2085
      %2087 = vrot.lane.b32.xlu0 %v2053, 16
      %v2088 = vpop.permute.xlu0 %2087
      %2089 = vrot.lane.b32.xlu0 %v2054, 16
      %v2090 = vpop.permute.xlu0 %2089
      %2091 = vrot.lane.b32.xlu0 %v2055, 16
      %v2092 = vpop.permute.xlu0 %2091
      %2093 = vrot.lane.b32.xlu0 %v2056, 16
      %v2094 = vpop.permute.xlu0 %2093
      %2095 = vrot.lane.b32.xlu0 %v2057, 16
      %v2096 = vpop.permute.xlu0 %2095
      %2097 = vrot.lane.b32.xlu0 %v2058, 16
      %v2098 = vpop.permute.xlu0 %2097
      %2099 = vrot.lane.b32.xlu0 %v2059, 16
      %v2100 = vpop.permute.xlu0 %2099
      %2101 = vrot.lane.b32.xlu0 %v2060, 16
      %v2102 = vpop.permute.xlu0 %2101
      %2103 = vrot.lane.b32.xlu0 %v2061, 16
      %v2104 = vpop.permute.xlu0 %2103
      %2105 = vrot.lane.b32.xlu0 %v2062, 16
      %v2106 = vpop.permute.xlu0 %2105
      %2107 = vrot.lane.b32.xlu0 %v2063, 16
      %v2108 = vpop.permute.xlu0 %2107
      %2109 = vrot.lane.b32.xlu0 %v2064, 16
      %v2110 = vpop.permute.xlu0 %2109
      %2111 = vrot.lane.b32.xlu0 %v2065, 16
      %v2112 = vpop.permute.xlu0 %2111
      %2113 = vrot.lane.b32.xlu0 %v2066, 16
      %v2114 = vpop.permute.xlu0 %2113
      %vm2131 = vcmask 195712
      %2132 = vst.msk [vmem:[#allocation5] sm:$0xff] %vm2131, %v2084
      %2133 = vst.msk [vmem:[#allocation5 + $0x8] sm:$0xff] %vm2131, %v2086
      %2134 = vst.msk [vmem:[#allocation5 + $0x10] sm:$0xff] %vm2131, %v2088
      %2135 = vst.msk [vmem:[#allocation5 + $0x18] sm:$0xff] %vm2131, %v2090
      %2136 = vst.msk [vmem:[#allocation5 + $0x20] sm:$0xff] %vm2131, %v2092
      %2137 = vst.msk [vmem:[#allocation5 + $0x28] sm:$0xff] %vm2131, %v2094
      %2138 = vst.msk [vmem:[#allocation5 + $0x30] sm:$0xff] %vm2131, %v2096
      %2139 = vst.msk [vmem:[#allocation5 + $0x38] sm:$0xff] %vm2131, %v2098
      %2140 = vst.msk [vmem:[#allocation5 + $0x40] sm:$0xff] %vm2131, %v2100
      %2141 = vst.msk [vmem:[#allocation5 + $0x48] sm:$0xff] %vm2131, %v2102
      %2142 = vst.msk [vmem:[#allocation5 + $0x50] sm:$0xff] %vm2131, %v2104
      %2143 = vst.msk [vmem:[#allocation5 + $0x58] sm:$0xff] %vm2131, %v2106
      %2144 = vst.msk [vmem:[#allocation5 + $0x60] sm:$0xff] %vm2131, %v2108
      %2145 = vst.msk [vmem:[#allocation5 + $0x68] sm:$0xff] %vm2131, %v2110
      %2146 = vst.msk [vmem:[#allocation5 + $0x70] sm:$0xff] %vm2131, %v2112
      %2147 = vst.msk [vmem:[#allocation5 + $0x78] sm:$0xff] %vm2131, %v2114
      %v2148 = vld [vmem:[%s1760] sm:$0xff]
      %v2149 = vld [vmem:[%s1760 + $0x8] sm:$0xff]
      %v2150 = vld [vmem:[%s1760 + $0x18] sm:$0xff]
      %v2151 = vld [vmem:[%s1760 + $0x20] sm:$0xff]
      %v2152 = vld [vmem:[%s1760 + $0x30] sm:$0xff]
      %v2153 = vld [vmem:[%s1760 + $0x38] sm:$0xff]
      %v2154 = vld [vmem:[%s1760 + $0x48] sm:$0xff]
      %v2155 = vld [vmem:[%s1760 + $0x50] sm:$0xff]
      %v2156 = vld [vmem:[%s1760 + $0x60] sm:$0xff]
      %v2157 = vld [vmem:[%s1760 + $0x68] sm:$0xff]
      %v2158 = vld [vmem:[%s1760 + $0x78] sm:$0xff]
      %v2159 = vld [vmem:[%s1760 + $0x80] sm:$0xff]
      %v2160 = vld [vmem:[%s1760 + $0x90] sm:$0xff]
      %v2161 = vld [vmem:[%s1760 + $0x98] sm:$0xff]
      %v2162 = vld [vmem:[%s1760 + $0xa8] sm:$0xff]
      %v2163 = vld [vmem:[%s1760 + $0xb0] sm:$0xff]
      %v2164 = vld [vmem:[%s1760 + $0xc0] sm:$0xff]
      %v2165 = vld [vmem:[%s1760 + $0xc8] sm:$0xff]
      %v2166 = vld [vmem:[%s1760 + $0xd8] sm:$0xff]
      %v2167 = vld [vmem:[%s1760 + $0xe0] sm:$0xff]
      %v2168 = vld [vmem:[%s1760 + $0xf0] sm:$0xff]
      %v2169 = vld [vmem:[%s1760 + $0xf8] sm:$0xff]
      %v2170 = vld [vmem:[%s1760 + $0x108] sm:$0xff]
      %v2171 = vld [vmem:[%s1760 + $0x110] sm:$0xff]
      %v2172 = vld [vmem:[%s1760 + $0x120] sm:$0xff]
      %v2173 = vld [vmem:[%s1760 + $0x128] sm:$0xff]
      %v2174 = vld [vmem:[%s1760 + $0x138] sm:$0xff]
      %v2175 = vld [vmem:[%s1760 + $0x140] sm:$0xff]
      %v2176 = vld [vmem:[%s1760 + $0x150] sm:$0xff]
      %v2177 = vld [vmem:[%s1760 + $0x158] sm:$0xff]
      %v2178 = vld [vmem:[%s1760 + $0x168] sm:$0xff]
      %v2179 = vld [vmem:[%s1760 + $0x170] sm:$0xff]
      %v2180 = vpack.c.bf16 %v2149, %v2148
      %v2181 = vpack.c.bf16 %v2151, %v2150
      %v2182 = vpack.c.bf16 %v2153, %v2152
      %v2183 = vpack.c.bf16 %v2155, %v2154
      %v2184 = vpack.c.bf16 %v2157, %v2156
      %v2185 = vpack.c.bf16 %v2159, %v2158
      %v2186 = vpack.c.bf16 %v2161, %v2160
      %v2187 = vpack.c.bf16 %v2163, %v2162
      %v2188 = vpack.c.bf16 %v2165, %v2164
      %v2189 = vpack.c.bf16 %v2167, %v2166
      %v2190 = vpack.c.bf16 %v2169, %v2168
      %v2191 = vpack.c.bf16 %v2171, %v2170
      %v2192 = vpack.c.bf16 %v2173, %v2172
      %v2193 = vpack.c.bf16 %v2175, %v2174
      %v2194 = vpack.c.bf16 %v2177, %v2176
      %v2195 = vpack.c.bf16 %v2179, %v2178
      %2212 = vrot.lane.b32.xlu0 %v2180, 24
      %v2213 = vpop.permute.xlu0 %2212
      %2214 = vrot.lane.b32.xlu0 %v2181, 24
      %v2215 = vpop.permute.xlu0 %2214
      %2216 = vrot.lane.b32.xlu0 %v2182, 24
      %v2217 = vpop.permute.xlu0 %2216
      %2218 = vrot.lane.b32.xlu0 %v2183, 24
      %v2219 = vpop.permute.xlu0 %2218
      %2220 = vrot.lane.b32.xlu0 %v2184, 24
      %v2221 = vpop.permute.xlu0 %2220
      %2222 = vrot.lane.b32.xlu0 %v2185, 24
      %v2223 = vpop.permute.xlu0 %2222
      %2224 = vrot.lane.b32.xlu0 %v2186, 24
      %v2225 = vpop.permute.xlu0 %2224
      %2226 = vrot.lane.b32.xlu0 %v2187, 24
      %v2227 = vpop.permute.xlu0 %2226
      %2228 = vrot.lane.b32.xlu0 %v2188, 24
      %v2229 = vpop.permute.xlu0 %2228
      %2230 = vrot.lane.b32.xlu0 %v2189, 24
      %v2231 = vpop.permute.xlu0 %2230
      %2232 = vrot.lane.b32.xlu0 %v2190, 24
      %v2233 = vpop.permute.xlu0 %2232
      %2234 = vrot.lane.b32.xlu0 %v2191, 24
      %v2235 = vpop.permute.xlu0 %2234
      %2236 = vrot.lane.b32.xlu0 %v2192, 24
      %v2237 = vpop.permute.xlu0 %2236
      %2238 = vrot.lane.b32.xlu0 %v2193, 24
      %v2239 = vpop.permute.xlu0 %2238
      %2240 = vrot.lane.b32.xlu0 %v2194, 24
      %v2241 = vpop.permute.xlu0 %2240
      %2242 = vrot.lane.b32.xlu0 %v2195, 24
      %v2243 = vpop.permute.xlu0 %2242
      %vm2260 = vcmask 261312
      %2261 = vst.msk [vmem:[#allocation5] sm:$0xff] %vm2260, %v2213
      %2262 = vst.msk [vmem:[#allocation5 + $0x8] sm:$0xff] %vm2260, %v2215
      %2263 = vst.msk [vmem:[#allocation5 + $0x10] sm:$0xff] %vm2260, %v2217
      %2264 = vst.msk [vmem:[#allocation5 + $0x18] sm:$0xff] %vm2260, %v2219
      %2265 = vst.msk [vmem:[#allocation5 + $0x20] sm:$0xff] %vm2260, %v2221
      %2266 = vst.msk [vmem:[#allocation5 + $0x28] sm:$0xff] %vm2260, %v2223
      %2267 = vst.msk [vmem:[#allocation5 + $0x30] sm:$0xff] %vm2260, %v2225
      %2268 = vst.msk [vmem:[#allocation5 + $0x38] sm:$0xff] %vm2260, %v2227
      %2269 = vst.msk [vmem:[#allocation5 + $0x40] sm:$0xff] %vm2260, %v2229
      %2270 = vst.msk [vmem:[#allocation5 + $0x48] sm:$0xff] %vm2260, %v2231
      %2271 = vst.msk [vmem:[#allocation5 + $0x50] sm:$0xff] %vm2260, %v2233
      %2272 = vst.msk [vmem:[#allocation5 + $0x58] sm:$0xff] %vm2260, %v2235
      %2273 = vst.msk [vmem:[#allocation5 + $0x60] sm:$0xff] %vm2260, %v2237
      %2274 = vst.msk [vmem:[#allocation5 + $0x68] sm:$0xff] %vm2260, %v2239
      %2275 = vst.msk [vmem:[#allocation5 + $0x70] sm:$0xff] %vm2260, %v2241
      %2276 = vst.msk [vmem:[#allocation5 + $0x78] sm:$0xff] %vm2260, %v2243
      %v2277 = vld [vmem:[%s1760 + $0x1] sm:$0xff]
      %v2278 = vld [vmem:[%s1760 + $0x9] sm:$0xff]
      %v2279 = vld [vmem:[%s1760 + $0x19] sm:$0xff]
      %v2280 = vld [vmem:[%s1760 + $0x21] sm:$0xff]
      %v2281 = vld [vmem:[%s1760 + $0x31] sm:$0xff]
      %v2282 = vld [vmem:[%s1760 + $0x39] sm:$0xff]
      %v2283 = vld [vmem:[%s1760 + $0x49] sm:$0xff]
      %v2284 = vld [vmem:[%s1760 + $0x51] sm:$0xff]
      %v2285 = vld [vmem:[%s1760 + $0x61] sm:$0xff]
      %v2286 = vld [vmem:[%s1760 + $0x69] sm:$0xff]
      %v2287 = vld [vmem:[%s1760 + $0x79] sm:$0xff]
      %v2288 = vld [vmem:[%s1760 + $0x81] sm:$0xff]
      %v2289 = vld [vmem:[%s1760 + $0x91] sm:$0xff]
      %v2290 = vld [vmem:[%s1760 + $0x99] sm:$0xff]
      %v2291 = vld [vmem:[%s1760 + $0xa9] sm:$0xff]
      %v2292 = vld [vmem:[%s1760 + $0xb1] sm:$0xff]
      %v2293 = vld [vmem:[%s1760 + $0xc1] sm:$0xff]
      %v2294 = vld [vmem:[%s1760 + $0xc9] sm:$0xff]
      %v2295 = vld [vmem:[%s1760 + $0xd9] sm:$0xff]
      %v2296 = vld [vmem:[%s1760 + $0xe1] sm:$0xff]
      %v2297 = vld [vmem:[%s1760 + $0xf1] sm:$0xff]
      %v2298 = vld [vmem:[%s1760 + $0xf9] sm:$0xff]
      %v2299 = vld [vmem:[%s1760 + $0x109] sm:$0xff]
      %v2300 = vld [vmem:[%s1760 + $0x111] sm:$0xff]
      %v2301 = vld [vmem:[%s1760 + $0x121] sm:$0xff]
      %v2302 = vld [vmem:[%s1760 + $0x129] sm:$0xff]
      %v2303 = vld [vmem:[%s1760 + $0x139] sm:$0xff]
      %v2304 = vld [vmem:[%s1760 + $0x141] sm:$0xff]
      %v2305 = vld [vmem:[%s1760 + $0x151] sm:$0xff]
      %v2306 = vld [vmem:[%s1760 + $0x159] sm:$0xff]
      %v2307 = vld [vmem:[%s1760 + $0x169] sm:$0xff]
      %v2308 = vld [vmem:[%s1760 + $0x171] sm:$0xff]
      %v2309 = vpack.c.bf16 %v2278, %v2277
      %v2310 = vpack.c.bf16 %v2280, %v2279
      %v2311 = vpack.c.bf16 %v2282, %v2281
      %v2312 = vpack.c.bf16 %v2284, %v2283
      %v2313 = vpack.c.bf16 %v2286, %v2285
      %v2314 = vpack.c.bf16 %v2288, %v2287
      %v2315 = vpack.c.bf16 %v2290, %v2289
      %v2316 = vpack.c.bf16 %v2292, %v2291
      %v2317 = vpack.c.bf16 %v2294, %v2293
      %v2318 = vpack.c.bf16 %v2296, %v2295
      %v2319 = vpack.c.bf16 %v2298, %v2297
      %v2320 = vpack.c.bf16 %v2300, %v2299
      %v2321 = vpack.c.bf16 %v2302, %v2301
      %v2322 = vpack.c.bf16 %v2304, %v2303
      %v2323 = vpack.c.bf16 %v2306, %v2305
      %v2324 = vpack.c.bf16 %v2308, %v2307
      %2341 = vrot.lane.b32.xlu0 %v2309, 32
      %v2342 = vpop.permute.xlu0 %2341
      %2343 = vrot.lane.b32.xlu0 %v2310, 32
      %v2344 = vpop.permute.xlu0 %2343
      %2345 = vrot.lane.b32.xlu0 %v2311, 32
      %v2346 = vpop.permute.xlu0 %2345
      %2347 = vrot.lane.b32.xlu0 %v2312, 32
      %v2348 = vpop.permute.xlu0 %2347
      %2349 = vrot.lane.b32.xlu0 %v2313, 32
      %v2350 = vpop.permute.xlu0 %2349
      %2351 = vrot.lane.b32.xlu0 %v2314, 32
      %v2352 = vpop.permute.xlu0 %2351
      %2353 = vrot.lane.b32.xlu0 %v2315, 32
      %v2354 = vpop.permute.xlu0 %2353
      %2355 = vrot.lane.b32.xlu0 %v2316, 32
      %v2356 = vpop.permute.xlu0 %2355
      %2357 = vrot.lane.b32.xlu0 %v2317, 32
      %v2358 = vpop.permute.xlu0 %2357
      %2359 = vrot.lane.b32.xlu0 %v2318, 32
      %v2360 = vpop.permute.xlu0 %2359
      %2361 = vrot.lane.b32.xlu0 %v2319, 32
      %v2362 = vpop.permute.xlu0 %2361
      %2363 = vrot.lane.b32.xlu0 %v2320, 32
      %v2364 = vpop.permute.xlu0 %2363
      %2365 = vrot.lane.b32.xlu0 %v2321, 32
      %v2366 = vpop.permute.xlu0 %2365
      %2367 = vrot.lane.b32.xlu0 %v2322, 32
      %v2368 = vpop.permute.xlu0 %2367
      %2369 = vrot.lane.b32.xlu0 %v2323, 32
      %v2370 = vpop.permute.xlu0 %2369
      %2371 = vrot.lane.b32.xlu0 %v2324, 32
      %v2372 = vpop.permute.xlu0 %2371
      %vm2389 = vcmask 326912
      %2390 = vst.msk [vmem:[#allocation5] sm:$0xff] %vm2389, %v2342
      %2391 = vst.msk [vmem:[#allocation5 + $0x8] sm:$0xff] %vm2389, %v2344
      %2392 = vst.msk [vmem:[#allocation5 + $0x10] sm:$0xff] %vm2389, %v2346
      %2393 = vst.msk [vmem:[#allocation5 + $0x18] sm:$0xff] %vm2389, %v2348
      %2394 = vst.msk [vmem:[#allocation5 + $0x20] sm:$0xff] %vm2389, %v2350
      %2395 = vst.msk [vmem:[#allocation5 + $0x28] sm:$0xff] %vm2389, %v2352
      %2396 = vst.msk [vmem:[#allocation5 + $0x30] sm:$0xff] %vm2389, %v2354
      %2397 = vst.msk [vmem:[#allocation5 + $0x38] sm:$0xff] %vm2389, %v2356
      %2398 = vst.msk [vmem:[#allocation5 + $0x40] sm:$0xff] %vm2389, %v2358
      %2399 = vst.msk [vmem:[#allocation5 + $0x48] sm:$0xff] %vm2389, %v2360
      %2400 = vst.msk [vmem:[#allocation5 + $0x50] sm:$0xff] %vm2389, %v2362
      %2401 = vst.msk [vmem:[#allocation5 + $0x58] sm:$0xff] %vm2389, %v2364
      %2402 = vst.msk [vmem:[#allocation5 + $0x60] sm:$0xff] %vm2389, %v2366
      %2403 = vst.msk [vmem:[#allocation5 + $0x68] sm:$0xff] %vm2389, %v2368
      %2404 = vst.msk [vmem:[#allocation5 + $0x70] sm:$0xff] %vm2389, %v2370
      %2405 = vst.msk [vmem:[#allocation5 + $0x78] sm:$0xff] %vm2389, %v2372
      %v2406 = vld [vmem:[%s1760 + $0x2] sm:$0xff]
      %v2407 = vld [vmem:[%s1760 + $0xa] sm:$0xff]
      %v2408 = vld [vmem:[%s1760 + $0x1a] sm:$0xff]
      %v2409 = vld [vmem:[%s1760 + $0x22] sm:$0xff]
      %v2410 = vld [vmem:[%s1760 + $0x32] sm:$0xff]
      %v2411 = vld [vmem:[%s1760 + $0x3a] sm:$0xff]
      %v2412 = vld [vmem:[%s1760 + $0x4a] sm:$0xff]
      %v2413 = vld [vmem:[%s1760 + $0x52] sm:$0xff]
      %v2414 = vld [vmem:[%s1760 + $0x62] sm:$0xff]
      %v2415 = vld [vmem:[%s1760 + $0x6a] sm:$0xff]
      %v2416 = vld [vmem:[%s1760 + $0x7a] sm:$0xff]
      %v2417 = vld [vmem:[%s1760 + $0x82] sm:$0xff]
      %v2418 = vld [vmem:[%s1760 + $0x92] sm:$0xff]
      %v2419 = vld [vmem:[%s1760 + $0x9a] sm:$0xff]
      %v2420 = vld [vmem:[%s1760 + $0xaa] sm:$0xff]
      %v2421 = vld [vmem:[%s1760 + $0xb2] sm:$0xff]
      %v2422 = vld [vmem:[%s1760 + $0xc2] sm:$0xff]
      %v2423 = vld [vmem:[%s1760 + $0xca] sm:$0xff]
      %v2424 = vld [vmem:[%s1760 + $0xda] sm:$0xff]
      %v2425 = vld [vmem:[%s1760 + $0xe2] sm:$0xff]
      %v2426 = vld [vmem:[%s1760 + $0xf2] sm:$0xff]
      %v2427 = vld [vmem:[%s1760 + $0xfa] sm:$0xff]
      %v2428 = vld [vmem:[%s1760 + $0x10a] sm:$0xff]
      %v2429 = vld [vmem:[%s1760 + $0x112] sm:$0xff]
      %v2430 = vld [vmem:[%s1760 + $0x122] sm:$0xff]
      %v2431 = vld [vmem:[%s1760 + $0x12a] sm:$0xff]
      %v2432 = vld [vmem:[%s1760 + $0x13a] sm:$0xff]
      %v2433 = vld [vmem:[%s1760 + $0x142] sm:$0xff]
      %v2434 = vld [vmem:[%s1760 + $0x152] sm:$0xff]
      %v2435 = vld [vmem:[%s1760 + $0x15a] sm:$0xff]
      %v2436 = vld [vmem:[%s1760 + $0x16a] sm:$0xff]
      %v2437 = vld [vmem:[%s1760 + $0x172] sm:$0xff]
      %v2438 = vpack.c.bf16 %v2407, %v2406
      %v2439 = vpack.c.bf16 %v2409, %v2408
      %v2440 = vpack.c.bf16 %v2411, %v2410
      %v2441 = vpack.c.bf16 %v2413, %v2412
      %v2442 = vpack.c.bf16 %v2415, %v2414
      %v2443 = vpack.c.bf16 %v2417, %v2416
      %v2444 = vpack.c.bf16 %v2419, %v2418
      %v2445 = vpack.c.bf16 %v2421, %v2420
      %v2446 = vpack.c.bf16 %v2423, %v2422
      %v2447 = vpack.c.bf16 %v2425, %v2424
      %v2448 = vpack.c.bf16 %v2427, %v2426
      %v2449 = vpack.c.bf16 %v2429, %v2428
      %v2450 = vpack.c.bf16 %v2431, %v2430
      %v2451 = vpack.c.bf16 %v2433, %v2432
      %v2452 = vpack.c.bf16 %v2435, %v2434
      %v2453 = vpack.c.bf16 %v2437, %v2436
      %2470 = vrot.lane.b32.xlu0 %v2438, 40
      %v2471 = vpop.permute.xlu0 %2470
      %2472 = vrot.lane.b32.xlu0 %v2439, 40
      %v2473 = vpop.permute.xlu0 %2472
      %2474 = vrot.lane.b32.xlu0 %v2440, 40
      %v2475 = vpop.permute.xlu0 %2474
      %2476 = vrot.lane.b32.xlu0 %v2441, 40
      %v2477 = vpop.permute.xlu0 %2476
      %2478 = vrot.lane.b32.xlu0 %v2442, 40
      %v2479 = vpop.permute.xlu0 %2478
      %2480 = vrot.lane.b32.xlu0 %v2443, 40
      %v2481 = vpop.permute.xlu0 %2480
      %2482 = vrot.lane.b32.xlu0 %v2444, 40
      %v2483 = vpop.permute.xlu0 %2482
      %2484 = vrot.lane.b32.xlu0 %v2445, 40
      %v2485 = vpop.permute.xlu0 %2484
      %2486 = vrot.lane.b32.xlu0 %v2446, 40
      %v2487 = vpop.permute.xlu0 %2486
      %2488 = vrot.lane.b32.xlu0 %v2447, 40
      %v2489 = vpop.permute.xlu0 %2488
      %2490 = vrot.lane.b32.xlu0 %v2448, 40
      %v2491 = vpop.permute.xlu0 %2490
      %2492 = vrot.lane.b32.xlu0 %v2449, 40
      %v2493 = vpop.permute.xlu0 %2492
      %2494 = vrot.lane.b32.xlu0 %v2450, 40
      %v2495 = vpop.permute.xlu0 %2494
      %2496 = vrot.lane.b32.xlu0 %v2451, 40
      %v2497 = vpop.permute.xlu0 %2496
      %2498 = vrot.lane.b32.xlu0 %v2452, 40
      %v2499 = vpop.permute.xlu0 %2498
      %2500 = vrot.lane.b32.xlu0 %v2453, 40
      %v2501 = vpop.permute.xlu0 %2500
      %vm2518 = vcmask 392512
      %2519 = vst.msk [vmem:[#allocation5] sm:$0xff] %vm2518, %v2471
      %2520 = vst.msk [vmem:[#allocation5 + $0x8] sm:$0xff] %vm2518, %v2473
      %2521 = vst.msk [vmem:[#allocation5 + $0x10] sm:$0xff] %vm2518, %v2475
      %2522 = vst.msk [vmem:[#allocation5 + $0x18] sm:$0xff] %vm2518, %v2477
      %2523 = vst.msk [vmem:[#allocation5 + $0x20] sm:$0xff] %vm2518, %v2479
      %2524 = vst.msk [vmem:[#allocation5 + $0x28] sm:$0xff] %vm2518, %v2481
      %2525 = vst.msk [vmem:[#allocation5 + $0x30] sm:$0xff] %vm2518, %v2483
      %2526 = vst.msk [vmem:[#allocation5 + $0x38] sm:$0xff] %vm2518, %v2485
      %2527 = vst.msk [vmem:[#allocation5 + $0x40] sm:$0xff] %vm2518, %v2487
      %2528 = vst.msk [vmem:[#allocation5 + $0x48] sm:$0xff] %vm2518, %v2489
      %2529 = vst.msk [vmem:[#allocation5 + $0x50] sm:$0xff] %vm2518, %v2491
      %2530 = vst.msk [vmem:[#allocation5 + $0x58] sm:$0xff] %vm2518, %v2493
      %2531 = vst.msk [vmem:[#allocation5 + $0x60] sm:$0xff] %vm2518, %v2495
      %2532 = vst.msk [vmem:[#allocation5 + $0x68] sm:$0xff] %vm2518, %v2497
      %2533 = vst.msk [vmem:[#allocation5 + $0x70] sm:$0xff] %vm2518, %v2499
      %2534 = vst.msk [vmem:[#allocation5 + $0x78] sm:$0xff] %vm2518, %v2501
      %s2535 = scalar_lea.vmem [#allocation4], 48
      %v2536 = vld [vmem:[%s2535] sm:$0xff]
      %v2537 = vld [vmem:[%s2535 + $0x8] sm:$0xff]
      %v2538 = vld [vmem:[%s2535 + $0x18] sm:$0xff]
      %v2539 = vld [vmem:[%s2535 + $0x20] sm:$0xff]
      %v2540 = vld [vmem:[%s2535 + $0x30] sm:$0xff]
      %v2541 = vld [vmem:[%s2535 + $0x38] sm:$0xff]
      %v2542 = vld [vmem:[%s2535 + $0x48] sm:$0xff]
      %v2543 = vld [vmem:[%s2535 + $0x50] sm:$0xff]
      %v2544 = vld [vmem:[%s2535 + $0x60] sm:$0xff]
      %v2545 = vld [vmem:[%s2535 + $0x68] sm:$0xff]
      %v2546 = vld [vmem:[%s2535 + $0x78] sm:$0xff]
      %v2547 = vld [vmem:[%s2535 + $0x80] sm:$0xff]
      %v2548 = vld [vmem:[%s2535 + $0x90] sm:$0xff]
      %v2549 = vld [vmem:[%s2535 + $0x98] sm:$0xff]
      %v2550 = vld [vmem:[%s2535 + $0xa8] sm:$0xff]
      %v2551 = vld [vmem:[%s2535 + $0xb0] sm:$0xff]
      %v2552 = vld [vmem:[%s2535 + $0xc0] sm:$0xff]
      %v2553 = vld [vmem:[%s2535 + $0xc8] sm:$0xff]
      %v2554 = vld [vmem:[%s2535 + $0xd8] sm:$0xff]
      %v2555 = vld [vmem:[%s2535 + $0xe0] sm:$0xff]
      %v2556 = vld [vmem:[%s2535 + $0xf0] sm:$0xff]
      %v2557 = vld [vmem:[%s2535 + $0xf8] sm:$0xff]
      %v2558 = vld [vmem:[%s2535 + $0x108] sm:$0xff]
      %v2559 = vld [vmem:[%s2535 + $0x110] sm:$0xff]
      %v2560 = vld [vmem:[%s2535 + $0x120] sm:$0xff]
      %v2561 = vld [vmem:[%s2535 + $0x128] sm:$0xff]
      %v2562 = vld [vmem:[%s2535 + $0x138] sm:$0xff]
      %v2563 = vld [vmem:[%s2535 + $0x140] sm:$0xff]
      %v2564 = vld [vmem:[%s2535 + $0x150] sm:$0xff]
      %v2565 = vld [vmem:[%s2535 + $0x158] sm:$0xff]
      %v2566 = vld [vmem:[%s2535 + $0x168] sm:$0xff]
      %v2567 = vld [vmem:[%s2535 + $0x170] sm:$0xff]
      %v2568 = vpack.c.bf16 %v2537, %v2536
      %v2569 = vpack.c.bf16 %v2539, %v2538
      %v2570 = vpack.c.bf16 %v2541, %v2540
      %v2571 = vpack.c.bf16 %v2543, %v2542
      %v2572 = vpack.c.bf16 %v2545, %v2544
      %v2573 = vpack.c.bf16 %v2547, %v2546
      %v2574 = vpack.c.bf16 %v2549, %v2548
      %v2575 = vpack.c.bf16 %v2551, %v2550
      %v2576 = vpack.c.bf16 %v2553, %v2552
      %v2577 = vpack.c.bf16 %v2555, %v2554
      %v2578 = vpack.c.bf16 %v2557, %v2556
      %v2579 = vpack.c.bf16 %v2559, %v2558
      %v2580 = vpack.c.bf16 %v2561, %v2560
      %v2581 = vpack.c.bf16 %v2563, %v2562
      %v2582 = vpack.c.bf16 %v2565, %v2564
      %v2583 = vpack.c.bf16 %v2567, %v2566
      %2600 = vrot.lane.b32.xlu0 %v2568, 48
      %v2601 = vpop.permute.xlu0 %2600
      %2602 = vrot.lane.b32.xlu0 %v2569, 48
      %v2603 = vpop.permute.xlu0 %2602
      %2604 = vrot.lane.b32.xlu0 %v2570, 48
      %v2605 = vpop.permute.xlu0 %2604
      %2606 = vrot.lane.b32.xlu0 %v2571, 48
      %v2607 = vpop.permute.xlu0 %2606
      %2608 = vrot.lane.b32.xlu0 %v2572, 48
      %v2609 = vpop.permute.xlu0 %2608
      %2610 = vrot.lane.b32.xlu0 %v2573, 48
      %v2611 = vpop.permute.xlu0 %2610
      %2612 = vrot.lane.b32.xlu0 %v2574, 48
      %v2613 = vpop.permute.xlu0 %2612
      %2614 = vrot.lane.b32.xlu0 %v2575, 48
      %v2615 = vpop.permute.xlu0 %2614
      %2616 = vrot.lane.b32.xlu0 %v2576, 48
      %v2617 = vpop.permute.xlu0 %2616
      %2618 = vrot.lane.b32.xlu0 %v2577, 48
      %v2619 = vpop.permute.xlu0 %2618
      %2620 = vrot.lane.b32.xlu0 %v2578, 48
      %v2621 = vpop.permute.xlu0 %2620
      %2622 = vrot.lane.b32.xlu0 %v2579, 48
      %v2623 = vpop.permute.xlu0 %2622
      %2624 = vrot.lane.b32.xlu0 %v2580, 48
      %v2625 = vpop.permute.xlu0 %2624
      %2626 = vrot.lane.b32.xlu0 %v2581, 48
      %v2627 = vpop.permute.xlu0 %2626
      %2628 = vrot.lane.b32.xlu0 %v2582, 48
      %v2629 = vpop.permute.xlu0 %2628
      %2630 = vrot.lane.b32.xlu0 %v2583, 48
      %v2631 = vpop.permute.xlu0 %2630
      %vm2648 = vcmask 458112
      %2649 = vst.msk [vmem:[#allocation5] sm:$0xff] %vm2648, %v2601
      %2650 = vst.msk [vmem:[#allocation5 + $0x8] sm:$0xff] %vm2648, %v2603
      %2651 = vst.msk [vmem:[#allocation5 + $0x10] sm:$0xff] %vm2648, %v2605
      %2652 = vst.msk [vmem:[#allocation5 + $0x18] sm:$0xff] %vm2648, %v2607
      %2653 = vst.msk [vmem:[#allocation5 + $0x20] sm:$0xff] %vm2648, %v2609
      %2654 = vst.msk [vmem:[#allocation5 + $0x28] sm:$0xff] %vm2648, %v2611
      %2655 = vst.msk [vmem:[#allocation5 + $0x30] sm:$0xff] %vm2648, %v2613
      %2656 = vst.msk [vmem:[#allocation5 + $0x38] sm:$0xff] %vm2648, %v2615
      %2657 = vst.msk [vmem:[#allocation5 + $0x40] sm:$0xff] %vm2648, %v2617
      %2658 = vst.msk [vmem:[#allocation5 + $0x48] sm:$0xff] %vm2648, %v2619
      %2659 = vst.msk [vmem:[#allocation5 + $0x50] sm:$0xff] %vm2648, %v2621
      %2660 = vst.msk [vmem:[#allocation5 + $0x58] sm:$0xff] %vm2648, %v2623
      %2661 = vst.msk [vmem:[#allocation5 + $0x60] sm:$0xff] %vm2648, %v2625
      %2662 = vst.msk [vmem:[#allocation5 + $0x68] sm:$0xff] %vm2648, %v2627
      %2663 = vst.msk [vmem:[#allocation5 + $0x70] sm:$0xff] %vm2648, %v2629
      %2664 = vst.msk [vmem:[#allocation5 + $0x78] sm:$0xff] %vm2648, %v2631
      %v2665 = vld [vmem:[%s2535 + $0x1] sm:$0xff]
      %v2666 = vld [vmem:[%s2535 + $0x9] sm:$0xff]
      %v2667 = vld [vmem:[%s2535 + $0x19] sm:$0xff]
      %v2668 = vld [vmem:[%s2535 + $0x21] sm:$0xff]
      %v2669 = vld [vmem:[%s2535 + $0x31] sm:$0xff]
      %v2670 = vld [vmem:[%s2535 + $0x39] sm:$0xff]
      %v2671 = vld [vmem:[%s2535 + $0x49] sm:$0xff]
      %v2672 = vld [vmem:[%s2535 + $0x51] sm:$0xff]
      %v2673 = vld [vmem:[%s2535 + $0x61] sm:$0xff]
      %v2674 = vld [vmem:[%s2535 + $0x69] sm:$0xff]
      %v2675 = vld [vmem:[%s2535 + $0x79] sm:$0xff]
      %v2676 = vld [vmem:[%s2535 + $0x81] sm:$0xff]
      %v2677 = vld [vmem:[%s2535 + $0x91] sm:$0xff]
      %v2678 = vld [vmem:[%s2535 + $0x99] sm:$0xff]
      %v2679 = vld [vmem:[%s2535 + $0xa9] sm:$0xff]
      %v2680 = vld [vmem:[%s2535 + $0xb1] sm:$0xff]
      %v2681 = vld [vmem:[%s2535 + $0xc1] sm:$0xff]
      %v2682 = vld [vmem:[%s2535 + $0xc9] sm:$0xff]
      %v2683 = vld [vmem:[%s2535 + $0xd9] sm:$0xff]
      %v2684 = vld [vmem:[%s2535 + $0xe1] sm:$0xff]
      %v2685 = vld [vmem:[%s2535 + $0xf1] sm:$0xff]
      %v2686 = vld [vmem:[%s2535 + $0xf9] sm:$0xff]
      %v2687 = vld [vmem:[%s2535 + $0x109] sm:$0xff]
      %v2688 = vld [vmem:[%s2535 + $0x111] sm:$0xff]
      %v2689 = vld [vmem:[%s2535 + $0x121] sm:$0xff]
      %v2690 = vld [vmem:[%s2535 + $0x129] sm:$0xff]
      %v2691 = vld [vmem:[%s2535 + $0x139] sm:$0xff]
      %v2692 = vld [vmem:[%s2535 + $0x141] sm:$0xff]
      %v2693 = vld [vmem:[%s2535 + $0x151] sm:$0xff]
      %v2694 = vld [vmem:[%s2535 + $0x159] sm:$0xff]
      %v2695 = vld [vmem:[%s2535 + $0x169] sm:$0xff]
      %v2696 = vld [vmem:[%s2535 + $0x171] sm:$0xff]
      %v2697 = vpack.c.bf16 %v2666, %v2665
      %v2698 = vpack.c.bf16 %v2668, %v2667
      %v2699 = vpack.c.bf16 %v2670, %v2669
      %v2700 = vpack.c.bf16 %v2672, %v2671
      %v2701 = vpack.c.bf16 %v2674, %v2673
      %v2702 = vpack.c.bf16 %v2676, %v2675
      %v2703 = vpack.c.bf16 %v2678, %v2677
      %v2704 = vpack.c.bf16 %v2680, %v2679
      %v2705 = vpack.c.bf16 %v2682, %v2681
      %v2706 = vpack.c.bf16 %v2684, %v2683
      %v2707 = vpack.c.bf16 %v2686, %v2685
      %v2708 = vpack.c.bf16 %v2688, %v2687
      %v2709 = vpack.c.bf16 %v2690, %v2689
      %v2710 = vpack.c.bf16 %v2692, %v2691
      %v2711 = vpack.c.bf16 %v2694, %v2693
      %v2712 = vpack.c.bf16 %v2696, %v2695
      %2729 = vrot.lane.b32.xlu0 %v2697, 56
      %v2730 = vpop.permute.xlu0 %2729
      %2731 = vrot.lane.b32.xlu0 %v2698, 56
      %v2732 = vpop.permute.xlu0 %2731
      %2733 = vrot.lane.b32.xlu0 %v2699, 56
      %v2734 = vpop.permute.xlu0 %2733
      %2735 = vrot.lane.b32.xlu0 %v2700, 56
      %v2736 = vpop.permute.xlu0 %2735
      %2737 = vrot.lane.b32.xlu0 %v2701, 56
      %v2738 = vpop.permute.xlu0 %2737
      %2739 = vrot.lane.b32.xlu0 %v2702, 56
      %v2740 = vpop.permute.xlu0 %2739
      %2741 = vrot.lane.b32.xlu0 %v2703, 56
      %v2742 = vpop.permute.xlu0 %2741
      %2743 = vrot.lane.b32.xlu0 %v2704, 56
      %v2744 = vpop.permute.xlu0 %2743
      %2745 = vrot.lane.b32.xlu0 %v2705, 56
      %v2746 = vpop.permute.xlu0 %2745
      %2747 = vrot.lane.b32.xlu0 %v2706, 56
      %v2748 = vpop.permute.xlu0 %2747
      %2749 = vrot.lane.b32.xlu0 %v2707, 56
      %v2750 = vpop.permute.xlu0 %2749
      %2751 = vrot.lane.b32.xlu0 %v2708, 56
      %v2752 = vpop.permute.xlu0 %2751
      %2753 = vrot.lane.b32.xlu0 %v2709, 56
      %v2754 = vpop.permute.xlu0 %2753
      %2755 = vrot.lane.b32.xlu0 %v2710, 56
      %v2756 = vpop.permute.xlu0 %2755
      %2757 = vrot.lane.b32.xlu0 %v2711, 56
      %v2758 = vpop.permute.xlu0 %2757
      %2759 = vrot.lane.b32.xlu0 %v2712, 56
      %v2760 = vpop.permute.xlu0 %2759
      %vm2777 = vcmask 523712
      %2778 = vst.msk [vmem:[#allocation5] sm:$0xff] %vm2777, %v2730
      %2779 = vst.msk [vmem:[#allocation5 + $0x8] sm:$0xff] %vm2777, %v2732
      %2780 = vst.msk [vmem:[#allocation5 + $0x10] sm:$0xff] %vm2777, %v2734
      %2781 = vst.msk [vmem:[#allocation5 + $0x18] sm:$0xff] %vm2777, %v2736
      %2782 = vst.msk [vmem:[#allocation5 + $0x20] sm:$0xff] %vm2777, %v2738
      %2783 = vst.msk [vmem:[#allocation5 + $0x28] sm:$0xff] %vm2777, %v2740
      %2784 = vst.msk [vmem:[#allocation5 + $0x30] sm:$0xff] %vm2777, %v2742
      %2785 = vst.msk [vmem:[#allocation5 + $0x38] sm:$0xff] %vm2777, %v2744
      %2786 = vst.msk [vmem:[#allocation5 + $0x40] sm:$0xff] %vm2777, %v2746
      %2787 = vst.msk [vmem:[#allocation5 + $0x48] sm:$0xff] %vm2777, %v2748
      %2788 = vst.msk [vmem:[#allocation5 + $0x50] sm:$0xff] %vm2777, %v2750
      %2789 = vst.msk [vmem:[#allocation5 + $0x58] sm:$0xff] %vm2777, %v2752
      %2790 = vst.msk [vmem:[#allocation5 + $0x60] sm:$0xff] %vm2777, %v2754
      %2791 = vst.msk [vmem:[#allocation5 + $0x68] sm:$0xff] %vm2777, %v2756
      %2792 = vst.msk [vmem:[#allocation5 + $0x70] sm:$0xff] %vm2777, %v2758
      %2793 = vst.msk [vmem:[#allocation5 + $0x78] sm:$0xff] %vm2777, %v2760
      %v2794 = vld [vmem:[%s2535 + $0x2] sm:$0xff]
      %v2795 = vld [vmem:[%s2535 + $0xa] sm:$0xff]
      %v2796 = vld [vmem:[%s2535 + $0x1a] sm:$0xff]
      %v2797 = vld [vmem:[%s2535 + $0x22] sm:$0xff]
      %v2798 = vld [vmem:[%s2535 + $0x32] sm:$0xff]
      %v2799 = vld [vmem:[%s2535 + $0x3a] sm:$0xff]
      %v2800 = vld [vmem:[%s2535 + $0x4a] sm:$0xff]
      %v2801 = vld [vmem:[%s2535 + $0x52] sm:$0xff]
      %v2802 = vld [vmem:[%s2535 + $0x62] sm:$0xff]
      %v2803 = vld [vmem:[%s2535 + $0x6a] sm:$0xff]
      %v2804 = vld [vmem:[%s2535 + $0x7a] sm:$0xff]
      %v2805 = vld [vmem:[%s2535 + $0x82] sm:$0xff]
      %v2806 = vld [vmem:[%s2535 + $0x92] sm:$0xff]
      %v2807 = vld [vmem:[%s2535 + $0x9a] sm:$0xff]
      %v2808 = vld [vmem:[%s2535 + $0xaa] sm:$0xff]
      %v2809 = vld [vmem:[%s2535 + $0xb2] sm:$0xff]
      %v2810 = vld [vmem:[%s2535 + $0xc2] sm:$0xff]
      %v2811 = vld [vmem:[%s2535 + $0xca] sm:$0xff]
      %v2812 = vld [vmem:[%s2535 + $0xda] sm:$0xff]
      %v2813 = vld [vmem:[%s2535 + $0xe2] sm:$0xff]
      %v2814 = vld [vmem:[%s2535 + $0xf2] sm:$0xff]
      %v2815 = vld [vmem:[%s2535 + $0xfa] sm:$0xff]
      %v2816 = vld [vmem:[%s2535 + $0x10a] sm:$0xff]
      %v2817 = vld [vmem:[%s2535 + $0x112] sm:$0xff]
      %v2818 = vld [vmem:[%s2535 + $0x122] sm:$0xff]
      %v2819 = vld [vmem:[%s2535 + $0x12a] sm:$0xff]
      %v2820 = vld [vmem:[%s2535 + $0x13a] sm:$0xff]
      %v2821 = vld [vmem:[%s2535 + $0x142] sm:$0xff]
      %v2822 = vld [vmem:[%s2535 + $0x152] sm:$0xff]
      %v2823 = vld [vmem:[%s2535 + $0x15a] sm:$0xff]
      %v2824 = vld [vmem:[%s2535 + $0x16a] sm:$0xff]
      %v2825 = vld [vmem:[%s2535 + $0x172] sm:$0xff]
      %v2826 = vpack.c.bf16 %v2795, %v2794
      %v2827 = vpack.c.bf16 %v2797, %v2796
      %v2828 = vpack.c.bf16 %v2799, %v2798
      %v2829 = vpack.c.bf16 %v2801, %v2800
      %v2830 = vpack.c.bf16 %v2803, %v2802
      %v2831 = vpack.c.bf16 %v2805, %v2804
      %v2832 = vpack.c.bf16 %v2807, %v2806
      %v2833 = vpack.c.bf16 %v2809, %v2808
      %v2834 = vpack.c.bf16 %v2811, %v2810
      %v2835 = vpack.c.bf16 %v2813, %v2812
      %v2836 = vpack.c.bf16 %v2815, %v2814
      %v2837 = vpack.c.bf16 %v2817, %v2816
      %v2838 = vpack.c.bf16 %v2819, %v2818
      %v2839 = vpack.c.bf16 %v2821, %v2820
      %v2840 = vpack.c.bf16 %v2823, %v2822
      %v2841 = vpack.c.bf16 %v2825, %v2824
      %2858 = vrot.lane.b32.xlu0 %v2826, 64
      %v2859 = vpop.permute.xlu0 %2858
      %2860 = vrot.lane.b32.xlu0 %v2827, 64
      %v2861 = vpop.permute.xlu0 %2860
      %2862 = vrot.lane.b32.xlu0 %v2828, 64
      %v2863 = vpop.permute.xlu0 %2862
      %2864 = vrot.lane.b32.xlu0 %v2829, 64
      %v2865 = vpop.permute.xlu0 %2864
      %2866 = vrot.lane.b32.xlu0 %v2830, 64
      %v2867 = vpop.permute.xlu0 %2866
      %2868 = vrot.lane.b32.xlu0 %v2831, 64
      %v2869 = vpop.permute.xlu0 %2868
      %2870 = vrot.lane.b32.xlu0 %v2832, 64
      %v2871 = vpop.permute.xlu0 %2870
      %2872 = vrot.lane.b32.xlu0 %v2833, 64
      %v2873 = vpop.permute.xlu0 %2872
      %2874 = vrot.lane.b32.xlu0 %v2834, 64
      %v2875 = vpop.permute.xlu0 %2874
      %2876 = vrot.lane.b32.xlu0 %v2835, 64
      %v2877 = vpop.permute.xlu0 %2876
      %2878 = vrot.lane.b32.xlu0 %v2836, 64
      %v2879 = vpop.permute.xlu0 %2878
      %2880 = vrot.lane.b32.xlu0 %v2837, 64
      %v2881 = vpop.permute.xlu0 %2880
      %2882 = vrot.lane.b32.xlu0 %v2838, 64
      %v2883 = vpop.permute.xlu0 %2882
      %2884 = vrot.lane.b32.xlu0 %v2839, 64
      %v2885 = vpop.permute.xlu0 %2884
      %2886 = vrot.lane.b32.xlu0 %v2840, 64
      %v2887 = vpop.permute.xlu0 %2886
      %2888 = vrot.lane.b32.xlu0 %v2841, 64
      %v2889 = vpop.permute.xlu0 %2888
      %vm2906 = vcmask 589312
      %2907 = vst.msk [vmem:[#allocation5] sm:$0xff] %vm2906, %v2859
      %2908 = vst.msk [vmem:[#allocation5 + $0x8] sm:$0xff] %vm2906, %v2861
      %2909 = vst.msk [vmem:[#allocation5 + $0x10] sm:$0xff] %vm2906, %v2863
      %2910 = vst.msk [vmem:[#allocation5 + $0x18] sm:$0xff] %vm2906, %v2865
      %2911 = vst.msk [vmem:[#allocation5 + $0x20] sm:$0xff] %vm2906, %v2867
      %2912 = vst.msk [vmem:[#allocation5 + $0x28] sm:$0xff] %vm2906, %v2869
      %2913 = vst.msk [vmem:[#allocation5 + $0x30] sm:$0xff] %vm2906, %v2871
      %2914 = vst.msk [vmem:[#allocation5 + $0x38] sm:$0xff] %vm2906, %v2873
      %2915 = vst.msk [vmem:[#allocation5 + $0x40] sm:$0xff] %vm2906, %v2875
      %2916 = vst.msk [vmem:[#allocation5 + $0x48] sm:$0xff] %vm2906, %v2877
      %2917 = vst.msk [vmem:[#allocation5 + $0x50] sm:$0xff] %vm2906, %v2879
      %2918 = vst.msk [vmem:[#allocation5 + $0x58] sm:$0xff] %vm2906, %v2881
      %2919 = vst.msk [vmem:[#allocation5 + $0x60] sm:$0xff] %vm2906, %v2883
      %2920 = vst.msk [vmem:[#allocation5 + $0x68] sm:$0xff] %vm2906, %v2885
      %2921 = vst.msk [vmem:[#allocation5 + $0x70] sm:$0xff] %vm2906, %v2887
      %2922 = vst.msk [vmem:[#allocation5 + $0x78] sm:$0xff] %vm2906, %v2889
      %v2923 = vld [vmem:[#allocation5] sm:$0xff]
      %v2924 = vld [vmem:[#allocation5 + $0x8] sm:$0xff]
      %v2925 = vld [vmem:[#allocation5 + $0x10] sm:$0xff]
      %v2926 = vld [vmem:[#allocation5 + $0x18] sm:$0xff]
      %v2927 = vld [vmem:[#allocation5 + $0x20] sm:$0xff]
      %v2928 = vld [vmem:[#allocation5 + $0x28] sm:$0xff]
      %v2929 = vld [vmem:[#allocation5 + $0x30] sm:$0xff]
      %v2930 = vld [vmem:[#allocation5 + $0x38] sm:$0xff]
      %v2931 = vld [vmem:[#allocation5 + $0x40] sm:$0xff]
      %v2932 = vld [vmem:[#allocation5 + $0x48] sm:$0xff]
      %v2933 = vld [vmem:[#allocation5 + $0x50] sm:$0xff]
      %v2934 = vld [vmem:[#allocation5 + $0x58] sm:$0xff]
      %v2935 = vld [vmem:[#allocation5 + $0x60] sm:$0xff]
      %v2936 = vld [vmem:[#allocation5 + $0x68] sm:$0xff]
      %v2937 = vld [vmem:[#allocation5 + $0x70] sm:$0xff]
      %v2938 = vld [vmem:[#allocation5 + $0x78] sm:$0xff]
      %v2939 = vld [vmem:[%s3] sm:$0xf]
      %v2940 = vld [vmem:[%s3 + $0x4] sm:$0xf]
      %v2941 = vld [vmem:[%s3 + $0x8] sm:$0xf]
      %v2942 = vld [vmem:[%s3 + $0xc] sm:$0xf]
      %v2943 = vld [vmem:[%s3 + $0x10] sm:$0xf]
      %v2944 = vld [vmem:[%s3 + $0x14] sm:$0xf]
      %v2945 = vld [vmem:[%s3 + $0x18] sm:$0xf]
      %v2946 = vld [vmem:[%s3 + $0x1c] sm:$0xf]
      %v2947 = vld [vmem:[%s3 + $0x20] sm:$0xf]
      %v2948 = vld [vmem:[%s4] sm:$0x1]
      %v2950 = vlaneseq
      %v2951 = vshrl.u32 %v2950, 7
      %v2952 = vsub.s32 0, %v2951
      %v2953 = vrot.slane %v2948, %v2952
      %v2964 = vunpack.c.l.b16 %v2939
      %v2965 = vunpack.c.l.b16 %v2940
      %v2966 = vunpack.c.l.b16 %v2941
      %v2967 = vunpack.c.l.b16 %v2942
      %v2968 = vunpack.c.l.b16 %v2943
      %v2969 = vunpack.c.l.b16 %v2944
      %v2970 = vunpack.c.l.b16 %v2945
      %v2971 = vunpack.c.l.b16 %v2946
      %v2972 = vunpack.c.l.b16 %v2947
      %v2973 = vpack.c.b16 %v2965, %v2964
      %v2974 = vpack.c.b16 %v2967, %v2966
      %v2975 = vpack.c.b16 %v2969, %v2968
      %v2976 = vpack.c.b16 %v2971, %v2970
      %v2977 = vpack.c.b16 %v2972, %v2972
      %vm2982 = vcmask 588800
      %v2984 = vsel %vm2982, %v2923, 0
      %v2987 = vsel %vm2982, %v2924, 0
      %v2990 = vsel %vm2982, %v2925, 0
      %v2993 = vsel %vm2982, %v2926, 0
      %v2996 = vsel %vm2982, %v2927, 0
      %v2999 = vsel %vm2982, %v2928, 0
      %v3002 = vsel %vm2982, %v2929, 0
      %v3005 = vsel %vm2982, %v2930, 0
      %v3008 = vsel %vm2982, %v2931, 0
      %v3011 = vsel %vm2982, %v2932, 0
      %v3014 = vsel %vm2982, %v2933, 0
      %v3017 = vsel %vm2982, %v2934, 0
      %v3020 = vsel %vm2982, %v2935, 0
      %v3023 = vsel %vm2982, %v2936, 0
      %v3026 = vsel %vm2982, %v2937, 0
      %v3029 = vsel %vm2982, %v2938, 0
      %vm3031 = vcmask 1043456
      %v3033 = vsel %vm3031, %v2977, 0
      %3035 = vmatprep.subr.bf16.mxu0 0
      %3036 = vmatpush1.bf16.msra.mxu0 %v2973
      %3037 = vmatprep.subr.bf16.mxu0 0
      %3038 = vmatpush1.bf16.msra.mxu0 %v2974
      %3039 = vmatprep.subr.bf16.mxu0 0
      %3040 = vmatpush1.bf16.msra.mxu0 %v2975
      %3041 = vmatprep.subr.bf16.mxu0 0
      %3042 = vmatpush1.bf16.msra.mxu0 %v2976
      %3043 = vmatprep.subr.bf16.mxu0 0
      %3044 = vmatpush1.bf16.msra.mxu0 %v3033
      %3045 = vmatprep.subr.bf16.mxu0 0
      %3046 = vmatpush1.bf16.msra.mxu0 0
      %3047 = vmatprep.subr.bf16.mxu0 0
      %3048 = vmatpush1.bf16.msra.mxu0 0
      %3049 = vmatprep.subr.bf16.mxu0 0
      %3050 = vmatpush1.bf16.msra.mxu0 0
      %3051 = vmatprep.subr.bf16.mxu0 0
      %3052 = vmatpush1.bf16.msra.mxu0 0
      %3053 = vmatprep.subr.bf16.mxu0 0
      %3054 = vmatpush1.bf16.msra.mxu0 0
      %3055 = vmatprep.subr.bf16.mxu0 0
      %3056 = vmatpush1.bf16.msra.mxu0 0
      %3057 = vmatprep.subr.bf16.mxu0 0
      %3058 = vmatpush1.bf16.msra.mxu0 0
      %3059 = vmatprep.subr.bf16.mxu0 0
      %3060 = vmatpush1.bf16.msra.mxu0 0
      %3061 = vmatprep.subr.bf16.mxu0 0
      %3062 = vmatpush1.bf16.msra.mxu0 0
      %3063 = vmatprep.subr.bf16.mxu0 0
      %3064 = vmatpush1.bf16.msra.mxu0 0
      %3065 = vmatprep.subr.bf16.mxu0 0
      %3066 = vmatpush1.bf16.msra.mxu0 0
      %3067 = vmatprep.mubr.bf16.mxu0 0
      %3068 = vmatmul.mubr.bf16.gmra.mrb[0].mxu0 %v2984
      %v3069 = vpop.f32.mrb[0].mxu0
      %v3070 = vadd.f32 %v2953, %v3069
      %v3071 = vpop.f32.mrb[0].mxu0
      %v3072 = vpop.f32.mrb[0].mxu0
      %v3073 = vadd.f32 %v2953, %v3072
      %v3074 = vpop.f32.mrb[0].mxu0
      %3075 = vmatprep.mubr.bf16.mxu0 0
      %3076 = vmatmul.mubr.bf16.gmra.mrb[0].mxu0 %v2987
      %v3077 = vpop.f32.mrb[0].mxu0
      %v3078 = vadd.f32 %v2953, %v3077
      %v3079 = vpop.f32.mrb[0].mxu0
      %v3080 = vpop.f32.mrb[0].mxu0
      %v3081 = vadd.f32 %v2953, %v3080
      %v3082 = vpop.f32.mrb[0].mxu0
      %3083 = vmatprep.mubr.bf16.mxu0 0
      %3084 = vmatmul.mubr.bf16.gmra.mrb[0].mxu0 %v2990
      %v3085 = vpop.f32.mrb[0].mxu0
      %v3086 = vadd.f32 %v2953, %v3085
      %v3087 = vpop.f32.mrb[0].mxu0
      %v3088 = vpop.f32.mrb[0].mxu0
      %v3089 = vadd.f32 %v2953, %v3088
      %v3090 = vpop.f32.mrb[0].mxu0
      %3091 = vmatprep.mubr.bf16.mxu0 0
      %3092 = vmatmul.mubr.bf16.gmra.mrb[0].mxu0 %v2993
      %v3093 = vpop.f32.mrb[0].mxu0
      %v3094 = vadd.f32 %v2953, %v3093
      %v3095 = vpop.f32.mrb[0].mxu0
      %v3096 = vpop.f32.mrb[0].mxu0
      %v3097 = vadd.f32 %v2953, %v3096
      %v3098 = vpop.f32.mrb[0].mxu0
      %3099 = vmatprep.mubr.bf16.mxu0 0
      %3100 = vmatmul.mubr.bf16.gmra.mrb[0].mxu0 %v2996
      %v3101 = vpop.f32.mrb[0].mxu0
      %v3102 = vadd.f32 %v2953, %v3101
      %v3103 = vpop.f32.mrb[0].mxu0
      %v3104 = vpop.f32.mrb[0].mxu0
      %v3105 = vadd.f32 %v2953, %v3104
      %v3106 = vpop.f32.mrb[0].mxu0
      %3107 = vmatprep.mubr.bf16.mxu0 0
      %3108 = vmatmul.mubr.bf16.gmra.mrb[0].mxu0 %v2999
      %v3109 = vpop.f32.mrb[0].mxu0
      %v3110 = vadd.f32 %v2953, %v3109
      %v3111 = vpop.f32.mrb[0].mxu0
      %v3112 = vpop.f32.mrb[0].mxu0
      %v3113 = vadd.f32 %v2953, %v3112
      %v3114 = vpop.f32.mrb[0].mxu0
      %3115 = vmatprep.mubr.bf16.mxu0 0
      %3116 = vmatmul.mubr.bf16.gmra.mrb[0].mxu0 %v3002
      %v3117 = vpop.f32.mrb[0].mxu0
      %v3118 = vadd.f32 %v2953, %v3117
      %v3119 = vpop.f32.mrb[0].mxu0
      %v3120 = vpop.f32.mrb[0].mxu0
      %v3121 = vadd.f32 %v2953, %v3120
      %v3122 = vpop.f32.mrb[0].mxu0
      %3123 = vmatprep.mubr.bf16.mxu0 0
      %3124 = vmatmul.mubr.bf16.gmra.mrb[0].mxu0 %v3005
      %v3125 = vpop.f32.mrb[0].mxu0
      %v3126 = vadd.f32 %v2953, %v3125
      %v3127 = vpop.f32.mrb[0].mxu0
      %v3128 = vpop.f32.mrb[0].mxu0
      %v3129 = vadd.f32 %v2953, %v3128
      %v3130 = vpop.f32.mrb[0].mxu0
      %3131 = vmatprep.mubr.bf16.mxu0 0
      %3132 = vmatmul.mubr.bf16.gmra.mrb[0].mxu0 %v3008
      %v3133 = vpop.f32.mrb[0].mxu0
      %v3134 = vadd.f32 %v2953, %v3133
      %v3135 = vpop.f32.mrb[0].mxu0
      %v3136 = vpop.f32.mrb[0].mxu0
      %v3137 = vadd.f32 %v2953, %v3136
      %v3138 = vpop.f32.mrb[0].mxu0
      %3139 = vmatprep.mubr.bf16.mxu0 0
      %3140 = vmatmul.mubr.bf16.gmra.mrb[0].mxu0 %v3011
      %v3141 = vpop.f32.mrb[0].mxu0
      %v3142 = vadd.f32 %v2953, %v3141
      %v3143 = vpop.f32.mrb[0].mxu0
      %v3144 = vpop.f32.mrb[0].mxu0
      %v3145 = vadd.f32 %v2953, %v3144
      %v3146 = vpop.f32.mrb[0].mxu0
      %3147 = vmatprep.mubr.bf16.mxu0 0
      %3148 = vmatmul.mubr.bf16.gmra.mrb[0].mxu0 %v3014
      %v3149 = vpop.f32.mrb[0].mxu0
      %v3150 = vadd.f32 %v2953, %v3149
      %v3151 = vpop.f32.mrb[0].mxu0
      %v3152 = vpop.f32.mrb[0].mxu0
      %v3153 = vadd.f32 %v2953, %v3152
      %v3154 = vpop.f32.mrb[0].mxu0
      %3155 = vmatprep.mubr.bf16.mxu0 0
      %3156 = vmatmul.mubr.bf16.gmra.mrb[0].mxu0 %v3017
      %v3157 = vpop.f32.mrb[0].mxu0
      %v3158 = vadd.f32 %v2953, %v3157
      %v3159 = vpop.f32.mrb[0].mxu0
      %v3160 = vpop.f32.mrb[0].mxu0
      %v3161 = vadd.f32 %v2953, %v3160
      %v3162 = vpop.f32.mrb[0].mxu0
      %3163 = vmatprep.mubr.bf16.mxu0 0
      %3164 = vmatmul.mubr.bf16.gmra.mrb[0].mxu0 %v3020
      %v3165 = vpop.f32.mrb[0].mxu0
      %v3166 = vadd.f32 %v2953, %v3165
      %v3167 = vpop.f32.mrb[0].mxu0
      %v3168 = vpop.f32.mrb[0].mxu0
      %v3169 = vadd.f32 %v2953, %v3168
      %v3170 = vpop.f32.mrb[0].mxu0
      %3171 = vmatprep.mubr.bf16.mxu0 0
      %3172 = vmatmul.mubr.bf16.gmra.mrb[0].mxu0 %v3023
      %v3173 = vpop.f32.mrb[0].mxu0
      %v3174 = vadd.f32 %v2953, %v3173
      %v3175 = vpop.f32.mrb[0].mxu0
      %v3176 = vpop.f32.mrb[0].mxu0
      %v3177 = vadd.f32 %v2953, %v3176
      %v3178 = vpop.f32.mrb[0].mxu0
      %3179 = vmatprep.mubr.bf16.mxu0 0
      %3180 = vmatmul.mubr.bf16.gmra.mrb[0].mxu0 %v3026
      %v3181 = vpop.f32.mrb[0].mxu0
      %v3182 = vadd.f32 %v2953, %v3181
      %v3183 = vpop.f32.mrb[0].mxu0
      %v3184 = vpop.f32.mrb[0].mxu0
      %v3185 = vadd.f32 %v2953, %v3184
      %v3186 = vpop.f32.mrb[0].mxu0
      %3187 = vmatprep.mubr.bf16.mxu0 0
      %3188 = vmatmul.mubr.bf16.gmra.mrb[0].mxu0 %v3029
      %v3189 = vpop.f32.mrb[0].mxu0
      %v3190 = vadd.f32 %v2953, %v3189
      %v3191 = vpop.f32.mrb[0].mxu0
      %v3192 = vpop.f32.mrb[0].mxu0
      %v3193 = vadd.f32 %v2953, %v3192
      %v3194 = vpop.f32.mrb[0].mxu0
      %3195 = vdwg.mxu0
      %v3196 = vmax.f32 %v3070, 0.0
      %v3197 = vmax.f32 %v3073, 0.0
      %v3198 = vmax.f32 %v3078, 0.0
      %v3199 = vmax.f32 %v3081, 0.0
      %v3200 = vmax.f32 %v3086, 0.0
      %v3201 = vmax.f32 %v3089, 0.0
      %v3202 = vmax.f32 %v3094, 0.0
      %v3203 = vmax.f32 %v3097, 0.0
      %v3204 = vmax.f32 %v3102, 0.0
      %v3205 = vmax.f32 %v3105, 0.0
      %v3206 = vmax.f32 %v3110, 0.0
      %v3207 = vmax.f32 %v3113, 0.0
      %v3208 = vmax.f32 %v3118, 0.0
      %v3209 = vmax.f32 %v3121, 0.0
      %v3210 = vmax.f32 %v3126, 0.0
      %v3211 = vmax.f32 %v3129, 0.0
      %v3212 = vmax.f32 %v3134, 0.0
      %v3213 = vmax.f32 %v3137, 0.0
      %v3214 = vmax.f32 %v3142, 0.0
      %v3215 = vmax.f32 %v3145, 0.0
      %v3216 = vmax.f32 %v3150, 0.0
      %v3217 = vmax.f32 %v3153, 0.0
      %v3218 = vmax.f32 %v3158, 0.0
      %v3219 = vmax.f32 %v3161, 0.0
      %v3220 = vmax.f32 %v3166, 0.0
      %v3221 = vmax.f32 %v3169, 0.0
      %v3222 = vmax.f32 %v3174, 0.0
      %v3223 = vmax.f32 %v3177, 0.0
      %v3224 = vmax.f32 %v3182, 0.0
      %v3225 = vmax.f32 %v3185, 0.0
      %v3226 = vmax.f32 %v3190, 0.0
      %v3227 = vmax.f32 %v3193, 0.0
      %3228 = vxpose.xlu0.b32.start [1/16] %v3196, 128
      %3229 = vxpose.xlu0.b32.cont [2/16] %v3197, 128
      %3230 = vxpose.xlu0.b32.cont [3/16] %v3198, 128
      %3231 = vxpose.xlu0.b32.cont [4/16] %v3199, 128
      %3232 = vxpose.xlu0.b32.cont [5/16] %v3200, 128
      %3233 = vxpose.xlu0.b32.cont [6/16] %v3201, 128
      %3234 = vxpose.xlu0.b32.cont [7/16] %v3202, 128
      %3235 = vxpose.xlu0.b32.cont [8/16] %v3203, 128
      %3236 = vxpose.xlu0.b32.cont [9/16] %v3204, 128
      %3237 = vxpose.xlu0.b32.cont [10/16] %v3205, 128
      %3238 = vxpose.xlu0.b32.cont [11/16] %v3206, 128
      %3239 = vxpose.xlu0.b32.cont [12/16] %v3207, 128
      %3240 = vxpose.xlu0.b32.cont [13/16] %v3208, 128
      %3241 = vxpose.xlu0.b32.cont [14/16] %v3209, 128
      %3242 = vxpose.xlu0.b32.cont [15/16] %v3210, 128
      %3243 = vxpose.xlu0.b32.end [16/16] %v3211, 128
      %v3244 = vpop.trf.xlu0
      %v3245 = vpop.trf.xlu0
      %v3246 = vpop.trf.xlu0
      %v3247 = vpop.trf.xlu0
      %v3248 = vpop.trf.xlu0
      %v3249 = vpop.trf.xlu0
      %v3250 = vpop.trf.xlu0
      %v3251 = vpop.trf.xlu0
      %v3252 = vpop.trf.xlu0
      %v3253 = vpop.trf.xlu0
      %v3254 = vpop.trf.xlu0
      %v3255 = vpop.trf.xlu0
      %v3256 = vpop.trf.xlu0
      %v3257 = vpop.trf.xlu0
      %v3258 = vpop.trf.xlu0
      %v3259 = vpop.trf.xlu0
      %3260 = vxpose.xlu0.b32.start [1/16] %v3212, 128
      %3261 = vxpose.xlu0.b32.cont [2/16] %v3213, 128
      %3262 = vxpose.xlu0.b32.cont [3/16] %v3214, 128
      %3263 = vxpose.xlu0.b32.cont [4/16] %v3215, 128
      %3264 = vxpose.xlu0.b32.cont [5/16] %v3216, 128
      %3265 = vxpose.xlu0.b32.cont [6/16] %v3217, 128
      %3266 = vxpose.xlu0.b32.cont [7/16] %v3218, 128
      %3267 = vxpose.xlu0.b32.cont [8/16] %v3219, 128
      %3268 = vxpose.xlu0.b32.cont [9/16] %v3220, 128
      %3269 = vxpose.xlu0.b32.cont [10/16] %v3221, 128
      %3270 = vxpose.xlu0.b32.cont [11/16] %v3222, 128
      %3271 = vxpose.xlu0.b32.cont [12/16] %v3223, 128
      %3272 = vxpose.xlu0.b32.cont [13/16] %v3224, 128
      %3273 = vxpose.xlu0.b32.cont [14/16] %v3225, 128
      %3274 = vxpose.xlu0.b32.cont [15/16] %v3226, 128
      %3275 = vxpose.xlu0.b32.end [16/16] %v3227, 128
      %v3276 = vpop.trf.xlu0
      %v3277 = vpop.trf.xlu0
      %v3278 = vpop.trf.xlu0
      %v3279 = vpop.trf.xlu0
      %v3280 = vpop.trf.xlu0
      %v3281 = vpop.trf.xlu0
      %v3282 = vpop.trf.xlu0
      %v3283 = vpop.trf.xlu0
      %v3284 = vpop.trf.xlu0
      %v3285 = vpop.trf.xlu0
      %v3286 = vpop.trf.xlu0
      %v3287 = vpop.trf.xlu0
      %v3288 = vpop.trf.xlu0
      %v3289 = vpop.trf.xlu0
      %v3290 = vpop.trf.xlu0
      %v3291 = vpop.trf.xlu0
      %3292 = vst [vmem:[%s224] sm:$0xff] %v3244
      %3293 = vst [vmem:[%s224 + $0x8] sm:$0xff] %v3276
      %3294 = vst [vmem:[%s224 + $0x10] sm:$0xff] %v3245
      %3295 = vst [vmem:[%s224 + $0x18] sm:$0xff] %v3277
      %p3296 = scmp.lt.s32.totalorder %s16, 1
      %s3297 = scalar_select %p3296, %s16, 1
      %s3298 = smul.addr %s3297, 4
      %s3299 = smul.addr %s3298, 8
      %s3300 = scalar_lea.vmem %s5, %s3299
      // Predicated region
      $region41: #{decoder_block_v2.1} parent=39 // pred_check
        %p3301 = pneg %p144
      $region42: #{decoder_block_v2.1} parent=39 // pred_check_branch
        %3303 = sbr.rel (%p3301) target = $region44
      $region43: #{decoder_block_v2.1} parent=39 // pred_region
        _
      $region44: #{decoder_block_v2.1} parent=39 // pred_fallthru
        _
    $region40: #{decoder_block_v2.1} parent=5 // pred_fallthru
      _
    %p3304 = scmp.le.s32.totalorder 2, %s11
    // Predicated region
    $region45: #{decoder_block_v2.1} parent=5 // pred_check
      %p3305 = pneg %p3304
    $region46: #{decoder_block_v2.1} parent=5 // pred_check_branch
      %3307 = sbr.rel (%p3305) target = $region48
    $region47: #{decoder_block_v2.1} parent=5 // pred_region
      %s3308 = ssub.s32 %s11, 2
      // Predicated region
      $region49: #{decoder_block_v2.1} parent=47 // pred_check
        %p3309 = pneg %p150
      $region50: #{decoder_block_v2.1} parent=47 // pred_check_branch
        %3311 = sbr.rel (%p3309) target = $region52
      $region51: #{decoder_block_v2.1} parent=47 // pred_region
        %p3312 = scmp.lt.s32.totalorder %s17, 1
        %s3313 = scalar_select %p3312, %s17, 1
        %s3314 = smul.addr %s3313, 4
        %s3315 = smul.addr %s3314, 8
        %s3316 = scalar_lea.vmem %s5, %s3315
      $region52: #{decoder_block_v2.1} parent=47 // pred_fallthru
        _
    $region48: #{decoder_block_v2.1} parent=5 // pred_fallthru
      _
  $region6: #{decoder_block_v2.1} parent=0 // loop_footer
    %s15 = sadd.s32 1, %s11
  $region7: #{decoder_block_v2.1} parent=0 // loop_footer_branch
    %10 = sbr.rel target = $region3
  $region8: #{decoder_block_v2.1} parent=0 // loop_exit
    _

</llo_original>
